<compile_context>
chip_gen: v7x
topology: tpu7x:2x2x1
jax: 0.10.0
libtpu: 0.0.40
codegen_flags: <defaults>
</compile_context>

<pallas_src>
import jax
import jax.numpy as jnp
from jax import lax
from jax.experimental import pallas as pl
from jax.experimental.pallas import tpu as pltpu

# ---------------- configuration (small, consistent with the torch module) ---
B = 2            # batch size
T = 8            # max sequence length
DIM_W = 16       # args.dim_w
DIM_POS = 8      # args.dim_pos
HID = 16         # args.dim_bilstm_hidden
H2 = 2 * HID     # BiLSTM output dim (32)
GH = 3 * H2      # GRU gate width (96)
L = 6            # len(args.label2id)
LPAD = 128       # lane-dense padded label/class dim (multiple of 128)
NNER = 5         # Cg output classes (fixed to 5 in the module)
NPOS = 5         # len(args.pos2id)
VOCAB = 20       # args.vocab_size
ROUNDS = 2       # args.rounds
IN_DIM = DIM_W + DIM_POS
BT = B * T
BTT = B * T * T
NEG = -1e30      # additive mask / padded-class bias


# ---------------- fused Pallas kernel: rounds loop + NER/RC heads -----------
def _fused_kernel(h_ref, maskadd_ref, wenc_ref, wprob_ref, bias_ref,
                  ner_ref, rc_ref):
    """All refs live in VMEM; single program (no grid).

    h_ref       (BT, H2)      BiLSTM output, flattened
    maskadd_ref (BTT, 1)      additive mask: 0 valid, -1e30 masked (rows = (b,i,k))
    wenc_ref    (H2, 6*LPAD)  [CgT | W1T | W2T | CrT | GRUg_WhhT | GRUr_WhhT],
                              each block 128-lane aligned, zero padded
    wprob_ref   (LPAD, 2*LPAD)[GRUg_WihT | GRUr_WihT], zero-padded rows/lanes
    bias_ref    (8, LPAD)     rows: b_cg(-1e30 pad) | b_lr | b_cr | g_bih | g_bhh
                              | r_bih | r_bhh | 0
    ner_ref     (BT, LPAD)    final Cg logits (padded lanes = -1e30)
    rc_ref      (BTT, LPAD)   final pairwise Cr logits (padded lanes = 0)
    """
    h0 = h_ref[...]                           # (BT, H2)
    maskadd = maskadd_ref[...]                # (BTT, 1)
    wenc = wenc_ref[...]                      # (H2, 768)
    wprob = wprob_ref[...]                    # (128, 256)
    biases = bias_ref[...]                    # (8, 128)

    # 128-lane-aligned weight blocks (leading-lane sub-slices only; no rotates)
    wcg_t = wenc[:, 0 * LPAD:1 * LPAD]            # (H2, LPAD)
    w1_t = wenc[:, 1 * LPAD:1 * LPAD + H2]        # (H2, H2)
    w2_t = wenc[:, 2 * LPAD:2 * LPAD + H2]        # (H2, H2)
    wcr_t = wenc[:, 3 * LPAD:4 * LPAD]            # (H2, LPAD)
    whhg_t = wenc[:, 4 * LPAD:4 * LPAD + GH]      # (H2, GH)
    whhr_t = wenc[:, 5 * LPAD:5 * LPAD + GH]      # (H2, GH)
    wihg_t = wprob[:, 0:GH]                       # (LPAD, GH)
    wihr_t = wprob[:, LPAD:LPAD + GH]             # (LPAD, GH)

    bcg = biases[0:1, :]                          # (1, LPAD), padded lanes -1e30
    blr = biases[1:2, :H2]                        # (1, H2)
    bcr = biases[2:3, :]                          # (1, LPAD)
    bihg = biases[3:4, :GH]
    bhhg = biases[4:5, :GH]
    bihr = biases[5:6, :GH]
    bhhr = biases[6:7, :GH]

    def cg_logits(hg):
        return jnp.dot(hg, wcg_t, preferred_element_type=jnp.float32) + bcg

    def relation_logits(hr):
        # two separate Lr dots (no in-vreg lane-32 split of a fused result)
        a = jnp.dot(hr, w1_t, preferred_element_type=jnp.float32) + blr    # (BT,H2)
        b = jnp.dot(hr, w2_t, preferred_element_type=jnp.float32)          # (BT,H2)
        pre = a.reshape(B, T, 1, H2) + b.reshape(B, 1, T, H2)              # (B,T,T,H2)
        act = jnp.maximum(pre, 0.0).reshape(BTT, H2)                       # ReLU, flat
        # no bias here: bcr is lane-constant, added after the masked max
        return jnp.dot(act, wcr_t, preferred_element_type=jnp.float32)     # (BTT,LPAD)

    def gru(gi, gh, h):
        r = jax.nn.sigmoid(gi[:, :H2] + gh[:, :H2])
        z = jax.nn.sigmoid(gi[:, H2:2 * H2] + gh[:, H2:2 * H2])
        n = jnp.tanh(gi[:, 2 * H2:] + r * gh[:, 2 * H2:])
        return (1.0 - z) * n + z * h

    Hcur, Hg, Hr = h0, h0, h0
    for _ in range(ROUNDS):                   # static, unrolled (ROUNDS=2)
        # NER branch: softmax(Cg(Hg)); padded class lanes carry -1e30 bias -> prob 0
        lg = cg_logits(Hg)                                                 # (BT,LPAD)
        lg_max = jnp.max(lg, axis=-1, keepdims=True)
        e = jnp.exp(lg - lg_max)
        pg = e / jnp.sum(e, axis=-1, keepdims=True)                        # (BT,LPAD)

        # relation branch: masked max over k on LOGITS, sigmoid on the reduced tile
        lr_l = relation_logits(Hr) + maskadd                               # (BTT,LPAD)
        mx = jnp.max(lr_l.reshape(BT, T, LPAD), axis=1)                    # (BT,LPAD)
        pr = jax.nn.sigmoid(mx + bcr)                                      # (BT,LPAD)

        # GRU cells; hidden state is the current H (as in the reference).
        # Padded prob lanes hit zero-padded weight rows -> contribute nothing.
        gi_g = jnp.dot(pg, wihg_t, preferred_element_type=jnp.float32) + bihg
        gh_g = jnp.dot(Hcur, whhg_t, preferred_element_type=jnp.float32) + bhhg
        Hg = gru(gi_g, gh_g, Hcur)
        gi_r = jnp.dot(pr, wihr_t, preferred_element_type=jnp.float32) + bihr
        gh_r = jnp.dot(Hcur, whhr_t, preferred_element_type=jnp.float32) + bhhr
        Hr = gru(gi_r, gh_r, Hcur)
        Hcur = Hcur + Hr + Hg

    # heads: lane-dense 128-wide stores, logits only (sigmoid/BCE in wrapper)
    ner_ref[...] = cg_logits(Hg)                                           # (BT,LPAD)
    rc_ref[...] = relation_logits(Hr) + bcr                                # (BTT,LPAD)


def rounds_and_heads(H, maskadd, wenc, wprob, bias):
    """One pallas_call for the full refinement loop + both heads."""
    ner_logits, rc_logits = pl.pallas_call(
        _fused_kernel,
        out_shape=(jax.ShapeDtypeStruct((BT, LPAD), jnp.float32),
                   jax.ShapeDtypeStruct((BTT, LPAD), jnp.float32)),
        in_specs=[pl.BlockSpec(memory_space=pltpu.MemorySpace.VMEM)] * 5,
        out_specs=(pl.BlockSpec(memory_space=pltpu.MemorySpace.VMEM),
                   pl.BlockSpec(memory_space=pltpu.MemorySpace.VMEM)),
    )(H.reshape(BT, H2), maskadd, wenc, wprob, bias)
    return ner_logits, rc_logits


def prep_fused_weights(params):
    """Pack all round-loop / head weights into 3 lane-aligned slabs (done once)."""
    def pad_lanes(w):                                    # (rows, cols<=128) -> (rows,128)
        return jnp.zeros((w.shape[0], LPAD), jnp.float32).at[:, :w.shape[1]].set(w)

    def pad_both(w):                                     # -> (128, 128)
        out = jnp.zeros((LPAD, LPAD), jnp.float32)
        return out.at[:w.shape[0], :w.shape[1]].set(w)

    wcg_t = params["w_cg"].T                 # (H2, NNER)
    w1_t = params["w_lr"][:, :H2].T          # (H2, H2)  Lr on Hr_i
    w2_t = params["w_lr"][:, H2:].T          # (H2, H2)  Lr on Hr_k
    wcr_t = params["w_cr"].T                 # (H2, L)
    whhg_t = params["grug_Whh"].T            # (H2, GH)
    whhr_t = params["grur_Whh"].T            # (H2, GH)
    wenc = jnp.concatenate(
        [pad_lanes(w) for w in (wcg_t, w1_t, w2_t, wcr_t, whhg_t, whhr_t)], axis=1)

    wihg_t = params["grug_Wih"].T            # (NNER, GH)
    wihr_t = params["grur_Wih"].T            # (L, GH)
    wprob = jnp.concatenate([pad_both(wihg_t), pad_both(wihr_t)], axis=1)

    bias = jnp.zeros((8, LPAD), jnp.float32)
    bias = bias.at[0, :].set(NEG)                            # padded Cg classes -> -inf
    bias = bias.at[0, :NNER].set(params["b_cg"])
    bias = bias.at[1, :H2].set(params["b_lr"])
    bias = bias.at[2, :L].set(params["b_cr"])
    bias = bias.at[3, :GH].set(params["grug_bih"])
    bias = bias.at[4, :GH].set(params["grug_bhh"])
    bias = bias.at[5, :GH].set(params["grur_bih"])
    bias = bias.at[6, :GH].set(params["grur_bhh"])
    return wenc, wprob, bias


# ---------------- plain-JAX glue: BiLSTM encoder (packed semantics) ---------
# TODO(synk): the BiLSTM recurrence stays in plain JAX (serial lax.scan); at
# these sizes there is no Pallas win, but the input projection is hoisted.
def lstm_dir(x, lens, Wih, Whh, bih, bhh, reverse):
    Bsz, Tlen, _ = x.shape
    Hd = Whh.shape[1]
    # input projection for every timestep in ONE matmul, outside the scan
    gates_x = jnp.einsum("bti,gi->btg", x, Wih) + (bih + bhh)     # (B, T, 4H)
    h0 = jnp.zeros((Bsz, Hd), jnp.float32)
    c0 = jnp.zeros((Bsz, Hd), jnp.float32)
    ts = jnp.arange(Tlen - 1, -1, -1) if reverse else jnp.arange(Tlen)

    def step(carry, t):
        h, c = carry
        gates = gates_x[:, t, :] + h @ Whh.T
        i, f, g, o = jnp.split(gates, 4, axis=1)
        i = jax.nn.sigmoid(i)
        f = jax.nn.sigmoid(f)
        g = jnp.tanh(g)
        o = jax.nn.sigmoid(o)
        c_new = f * c + i * g
        h_new = o * jnp.tanh(c_new)
        valid = (t < lens)[:, None]            # pack_padded: only valid steps run
        h_out = jnp.where(valid, h_new, 0.0)   # pad_packed: zeros past length
        return (jnp.where(valid, h_new, h), jnp.where(valid, c_new, c)), h_out

    _, outs = lax.scan(step, (h0, c0), ts)     # (T, B, H)
    outs = jnp.transpose(outs, (1, 0, 2))
    if reverse:
        outs = outs[:, ::-1, :]
    return outs


# ---------------- parameter construction (deterministic) --------------------
def make_params(key):
    ks = jax.random.split(key, 24)
    k = iter(ks)

    def init(shape, scale=0.1):
        return scale * jax.random.normal(next(k), shape, jnp.float32)

    emb = init((VOCAB, DIM_W)).at[0].set(0.0)        # padding_idx=0
    pos_emb = init((NPOS, DIM_POS)).at[0].set(0.0)   # padding_idx=0
    p = dict(
        emb=emb, pos_emb=pos_emb,
        # BiLSTM (1 layer) forward / reverse
        lstm_Wih_f=init((4 * HID, IN_DIM)), lstm_Whh_f=init((4 * HID, HID)),
        lstm_bih_f=init((4 * HID,)), lstm_bhh_f=init((4 * HID,)),
        lstm_Wih_r=init((4 * HID, IN_DIM)), lstm_Whh_r=init((4 * HID, HID)),
        lstm_bih_r=init((4 * HID,)), lstm_bhh_r=init((4 * HID,)),
        # GRU cells
        grug_Wih=init((3 * H2, NNER)), grug_Whh=init((3 * H2, H2)),
        grug_bih=init((3 * H2,)), grug_bhh=init((3 * H2,)),
        grur_Wih=init((3 * H2, L)), grur_Whh=init((3 * H2, H2)),
        grur_bih=init((3 * H2,)), grur_bhh=init((3 * H2,)),
        # Linear layers
        w_lr=init((H2, 2 * H2)), b_lr=init((H2,)),
        w_cr=init((L, H2)), b_cr=init((L,)),
        w_cg=init((NNER, H2)), b_cg=init((NNER,)),
    )
    return p


# ---------------- full forward ----------------------------------------------
def forward(params, tokens, pos, mask_s, ner_labels, rc_labels):
    lens = mask_s.sum(axis=1)                                  # (B,)
    tok_emb = params["emb"][tokens]                            # (B, T, DIM_W)
    pos_e = params["pos_emb"][pos]                             # (B, T, DIM_POS)
    rnn_in = jnp.concatenate([tok_emb, pos_e], axis=2)
    # TODO(synk): nn.Dropout treated as identity (inference-mode dropout).

    fwd = lstm_dir(rnn_in, lens, params["lstm_Wih_f"], params["lstm_Whh_f"],
                   params["lstm_bih_f"], params["lstm_bhh_f"], reverse=False)
    bwd = lstm_dir(rnn_in, lens, params["lstm_Wih_r"], params["lstm_Whh_r"],
                   params["lstm_bih_r"], params["lstm_bhh_r"], reverse=True)
    H = jnp.concatenate([fwd, bwd], axis=2)                    # (B, T, H2)

    len_i = lens.astype(jnp.int32)
    ii = jnp.arange(T)[None, :, None]
    kk = jnp.arange(T)[None, None, :]
    in_range = (ii < len_i[:, None, None]) & (kk < len_i[:, None, None])
    mask_RC = jnp.where(in_range, mask_s[:, None, :], 0.0)     # (B, T, T)

    # additive logit mask: 0 where valid, -1e30 where masked (rows = (b, i, k))
    maskadd = ((mask_RC - 1.0) * -NEG).reshape(BTT, 1)
    wenc, wprob, bias = prep_fused_weights(params)

    # single fused kernel: rounds loop + NER/RC heads
    ner_logits_pad, rc_logits_pad = rounds_and_heads(H, maskadd, wenc, wprob, bias)

    # NER head / loss (on the first NNER lanes)
    logits_cg = ner_logits_pad[:, :NNER].reshape(B, T, NNER)
    ner_pred = jnp.argmax(logits_cg, axis=2) * mask_s.astype(jnp.int32)
    lse = jax.nn.logsumexp(logits_cg, axis=2)
    picked = jnp.take_along_axis(logits_cg, ner_labels[..., None], axis=2)[..., 0]
    ner_loss = ((lse - picked) * mask_s).sum() / B

    # RC head / loss from LOGITS (numerically stable BCE-with-logits)
    rc_logits = rc_logits_pad[:, :L].reshape(B, T, T, L)
    rc_pred = jax.nn.sigmoid(rc_logits) * mask_RC[..., None]
    bce = jax.nn.softplus(rc_logits) - rc_labels * rc_logits
    rc_loss = (bce.sum(axis=3) * mask_RC).sum() / B

    return ner_loss, rc_loss, ner_pred, rc_pred


# ---------------- main -------------------------------------------------------
if __name__ == "__main__":
    root = jax.random.PRNGKey(0)
    k_tok, k_pos, k_ner, k_rc, k_param = jax.random.split(root, 5)

    lens = jnp.array([T, 6], dtype=jnp.int32)                  # sorted decreasing
    valid = (jnp.arange(T)[None, :] < lens[:, None])
    mask_s = valid.astype(jnp.float32)                         # (B, T)

    tokens = jax.random.randint(k_tok, (B, T), 1, VOCAB) * valid.astype(jnp.int32)
    pos = jax.random.randint(k_pos, (B, T), 1, NPOS) * valid.astype(jnp.int32)
    ner_labels = jax.random.randint(k_ner, (B, T), 0, NNER)
    rc_labels = jax.random.bernoulli(k_rc, 0.1, (B, T, T, L)).astype(jnp.float32)

    params = make_params(k_param)

    fwd_fn = jax.jit(forward)
    ner_loss, rc_loss, ner_pred, rc_pred = fwd_fn(params, tokens, pos, mask_s,
                                                  ner_labels, rc_labels)
    jax.block_until_ready((ner_loss, rc_loss, ner_pred, rc_pred))

    assert ner_pred.shape == (B, T)
    assert rc_pred.shape == (B, T, T, L)
    assert jnp.isfinite(ner_loss) and jnp.isfinite(rc_loss)
    print("KERNEL_OK")
</pallas_src>

<mosaic_0001>
module attributes {stable_mosaic.version = 11 : i64} {
  func.func @_fused_kernel(%arg0: memref<16x32xf32, #tpu.memory_space<vmem>>, %arg1: memref<128x1xf32, #tpu.memory_space<vmem>>, %arg2: memref<32x768xf32, #tpu.memory_space<vmem>>, %arg3: memref<128x256xf32, #tpu.memory_space<vmem>>, %arg4: memref<8x128xf32, #tpu.memory_space<vmem>>, %arg5: memref<16x128xf32, #tpu.memory_space<vmem>>, %arg6: memref<128x128xf32, #tpu.memory_space<vmem>>) attributes {dimension_semantics = [], scalar_prefetch = 0 : i64, scratch_operands = 0 : i64, tpu.core_type = #tpu.core_type<tc>} {
    %c0 = arith.constant 0 : index
    %c0_0 = arith.constant 0 : index
    %0 = vector.load %arg0[%c0, %c0_0] : memref<16x32xf32, #tpu.memory_space<vmem>>, vector<16x32xf32>
    %c0_1 = arith.constant 0 : index
    %c0_2 = arith.constant 0 : index
    %1 = vector.load %arg1[%c0_1, %c0_2] : memref<128x1xf32, #tpu.memory_space<vmem>>, vector<128x1xf32>
    %c0_3 = arith.constant 0 : index
    %c0_4 = arith.constant 0 : index
    %2 = vector.load %arg2[%c0_3, %c0_4] : memref<32x768xf32, #tpu.memory_space<vmem>>, vector<32x768xf32>
    %c0_5 = arith.constant 0 : index
    %c0_6 = arith.constant 0 : index
    %3 = vector.load %arg3[%c0_5, %c0_6] : memref<128x256xf32, #tpu.memory_space<vmem>>, vector<128x256xf32>
    %c0_7 = arith.constant 0 : index
    %c0_8 = arith.constant 0 : index
    %4 = vector.load %arg4[%c0_7, %c0_8] : memref<8x128xf32, #tpu.memory_space<vmem>>, vector<8x128xf32>
    %5 = vector.extract_strided_slice %2 {offsets = [0, 0], sizes = [32, 128], strides = [1, 1]} : vector<32x768xf32> to vector<32x128xf32>
    %6 = vector.extract_strided_slice %2 {offsets = [0, 128], sizes = [32, 32], strides = [1, 1]} : vector<32x768xf32> to vector<32x32xf32>
    %7 = vector.extract_strided_slice %2 {offsets = [0, 256], sizes = [32, 32], strides = [1, 1]} : vector<32x768xf32> to vector<32x32xf32>
    %8 = vector.extract_strided_slice %2 {offsets = [0, 384], sizes = [32, 128], strides = [1, 1]} : vector<32x768xf32> to vector<32x128xf32>
    %9 = vector.extract_strided_slice %2 {offsets = [0, 512], sizes = [32, 96], strides = [1, 1]} : vector<32x768xf32> to vector<32x96xf32>
    %10 = vector.extract_strided_slice %2 {offsets = [0, 640], sizes = [32, 96], strides = [1, 1]} : vector<32x768xf32> to vector<32x96xf32>
    %11 = vector.extract_strided_slice %3 {offsets = [0, 0], sizes = [128, 96], strides = [1, 1]} : vector<128x256xf32> to vector<128x96xf32>
    %12 = vector.extract_strided_slice %3 {offsets = [0, 128], sizes = [128, 96], strides = [1, 1]} : vector<128x256xf32> to vector<128x96xf32>
    %13 = vector.extract_strided_slice %4 {offsets = [0, 0], sizes = [1, 128], strides = [1, 1]} : vector<8x128xf32> to vector<1x128xf32>
    %14 = vector.extract_strided_slice %4 {offsets = [1, 0], sizes = [1, 32], strides = [1, 1]} : vector<8x128xf32> to vector<1x32xf32>
    %15 = vector.extract_strided_slice %4 {offsets = [2, 0], sizes = [1, 128], strides = [1, 1]} : vector<8x128xf32> to vector<1x128xf32>
    %16 = vector.extract_strided_slice %4 {offsets = [3, 0], sizes = [1, 96], strides = [1, 1]} : vector<8x128xf32> to vector<1x96xf32>
    %17 = vector.extract_strided_slice %4 {offsets = [4, 0], sizes = [1, 96], strides = [1, 1]} : vector<8x128xf32> to vector<1x96xf32>
    %18 = vector.extract_strided_slice %4 {offsets = [5, 0], sizes = [1, 96], strides = [1, 1]} : vector<8x128xf32> to vector<1x96xf32>
    %19 = vector.extract_strided_slice %4 {offsets = [6, 0], sizes = [1, 96], strides = [1, 1]} : vector<8x128xf32> to vector<1x96xf32>
    %cst = arith.constant dense<0.000000e+00> : vector<16x128xf32>
    %20 = tpu.matmul %0, %5, %cst {dimension_numbers = #tpu.dot_dimension_numbers<[1], [0], [0], [1], [0, 0, 1, 1], [], []>} : vector<16x32xf32>, vector<32x128xf32>, vector<16x128xf32> -> vector<16x128xf32>
    %21 = vector.broadcast %13 : vector<1x128xf32> to vector<16x128xf32>
    %22 = arith.addf %20, %21 : vector<16x128xf32>
    %cst_9 = arith.constant dense<0xFF800000> : vector<16xf32>
    %23 = vector.multi_reduction <maximumf>, %22, %cst_9 [1] : vector<16x128xf32> to vector<16xf32>
    %24 = vector.shape_cast %23 : vector<16xf32> to vector<16x1xf32>
    %25 = vector.broadcast %24 : vector<16x1xf32> to vector<16x128xf32>
    %26 = arith.subf %22, %25 : vector<16x128xf32>
    %27 = math.exp %26 : vector<16x128xf32>
    %cst_10 = arith.constant dense<0.000000e+00> : vector<16xf32>
    %28 = vector.multi_reduction <add>, %27, %cst_10 [1] : vector<16x128xf32> to vector<16xf32>
    %29 = vector.shape_cast %28 : vector<16xf32> to vector<16x1xf32>
    %30 = vector.broadcast %29 : vector<16x1xf32> to vector<16x128xf32>
    %31 = arith.divf %27, %30 : vector<16x128xf32>
    %cst_11 = arith.constant dense<0.000000e+00> : vector<16x32xf32>
    %32 = tpu.matmul %0, %6, %cst_11 {dimension_numbers = #tpu.dot_dimension_numbers<[1], [0], [0], [1], [0, 0, 1, 1], [], []>} : vector<16x32xf32>, vector<32x32xf32>, vector<16x32xf32> -> vector<16x32xf32>
    %33 = vector.broadcast %14 : vector<1x32xf32> to vector<16x32xf32>
    %34 = arith.addf %32, %33 : vector<16x32xf32>
    %cst_12 = arith.constant dense<0.000000e+00> : vector<16x32xf32>
    %35 = tpu.matmul %0, %7, %cst_12 {dimension_numbers = #tpu.dot_dimension_numbers<[1], [0], [0], [1], [0, 0, 1, 1], [], []>} : vector<16x32xf32>, vector<32x32xf32>, vector<16x32xf32> -> vector<16x32xf32>
    %36 = vector.shape_cast %34 : vector<16x32xf32> to vector<2x8x1x32xf32>
    %37 = vector.shape_cast %35 : vector<16x32xf32> to vector<2x1x8x32xf32>
    %38 = vector.broadcast %36 : vector<2x8x1x32xf32> to vector<2x8x8x32xf32>
    %39 = vector.broadcast %37 : vector<2x1x8x32xf32> to vector<2x8x8x32xf32>
    %40 = arith.addf %38, %39 : vector<2x8x8x32xf32>
    %cst_13 = arith.constant 0.000000e+00 : f32
    %41 = vector.broadcast %cst_13 : f32 to vector<2x8x8x32xf32>
    %42 = arith.maximumf %40, %41 : vector<2x8x8x32xf32>
    %43 = vector.shape_cast %42 : vector<2x8x8x32xf32> to vector<128x32xf32>
    %cst_14 = arith.constant dense<0.000000e+00> : vector<128x128xf32>
    %44 = tpu.matmul %43, %8, %cst_14 {dimension_numbers = #tpu.dot_dimension_numbers<[1], [0], [0], [1], [0, 0, 1, 1], [], []>} : vector<128x32xf32>, vector<32x128xf32>, vector<128x128xf32> -> vector<128x128xf32>
    %45 = vector.broadcast %1 : vector<128x1xf32> to vector<128x128xf32>
    %46 = arith.addf %44, %45 : vector<128x128xf32>
    %47 = vector.shape_cast %46 : vector<128x128xf32> to vector<16x8x128xf32>
    %cst_15 = arith.constant dense<0xFF800000> : vector<16x128xf32>
    %48 = vector.multi_reduction <maximumf>, %47, %cst_15 [1] : vector<16x8x128xf32> to vector<16x128xf32>
    %49 = vector.broadcast %15 : vector<1x128xf32> to vector<16x128xf32>
    %50 = arith.addf %48, %49 : vector<16x128xf32>
    %51 = arith.negf %50 : vector<16x128xf32>
    %52 = math.exp %51 : vector<16x128xf32>
    %cst_16 = arith.constant 1.000000e+00 : f32
    %53 = vector.broadcast %cst_16 : f32 to vector<16x128xf32>
    %54 = arith.addf %53, %52 : vector<16x128xf32>
    %55 = arith.divf %53, %54 : vector<16x128xf32>
    %cst_17 = arith.constant dense<0.000000e+00> : vector<16x96xf32>
    %56 = tpu.matmul %31, %11, %cst_17 {dimension_numbers = #tpu.dot_dimension_numbers<[1], [0], [0], [1], [0, 0, 1, 1], [], []>} : vector<16x128xf32>, vector<128x96xf32>, vector<16x96xf32> -> vector<16x96xf32>
    %57 = vector.broadcast %16 : vector<1x96xf32> to vector<16x96xf32>
    %58 = arith.addf %56, %57 : vector<16x96xf32>
    %cst_18 = arith.constant dense<0.000000e+00> : vector<16x96xf32>
    %59 = tpu.matmul %0, %9, %cst_18 {dimension_numbers = #tpu.dot_dimension_numbers<[1], [0], [0], [1], [0, 0, 1, 1], [], []>} : vector<16x32xf32>, vector<32x96xf32>, vector<16x96xf32> -> vector<16x96xf32>
    %60 = vector.broadcast %17 : vector<1x96xf32> to vector<16x96xf32>
    %61 = arith.addf %59, %60 : vector<16x96xf32>
    %62 = vector.extract_strided_slice %58 {offsets = [0, 0], sizes = [16, 32], strides = [1, 1]} : vector<16x96xf32> to vector<16x32xf32>
    %63 = vector.extract_strided_slice %61 {offsets = [0, 0], sizes = [16, 32], strides = [1, 1]} : vector<16x96xf32> to vector<16x32xf32>
    %64 = arith.addf %62, %63 : vector<16x32xf32>
    %65 = arith.negf %64 : vector<16x32xf32>
    %66 = math.exp %65 : vector<16x32xf32>
    %cst_19 = arith.constant 1.000000e+00 : f32
    %67 = vector.broadcast %cst_19 : f32 to vector<16x32xf32>
    %68 = arith.addf %67, %66 : vector<16x32xf32>
    %69 = arith.divf %67, %68 : vector<16x32xf32>
    %70 = vector.extract_strided_slice %58 {offsets = [0, 32], sizes = [16, 32], strides = [1, 1]} : vector<16x96xf32> to vector<16x32xf32>
    %71 = vector.extract_strided_slice %61 {offsets = [0, 32], sizes = [16, 32], strides = [1, 1]} : vector<16x96xf32> to vector<16x32xf32>
    %72 = arith.addf %70, %71 : vector<16x32xf32>
    %73 = arith.negf %72 : vector<16x32xf32>
    %74 = math.exp %73 : vector<16x32xf32>
    %cst_20 = arith.constant 1.000000e+00 : f32
    %75 = vector.broadcast %cst_20 : f32 to vector<16x32xf32>
    %76 = arith.addf %75, %74 : vector<16x32xf32>
    %77 = arith.divf %75, %76 : vector<16x32xf32>
    %78 = vector.extract_strided_slice %58 {offsets = [0, 64], sizes = [16, 32], strides = [1, 1]} : vector<16x96xf32> to vector<16x32xf32>
    %79 = vector.extract_strided_slice %61 {offsets = [0, 64], sizes = [16, 32], strides = [1, 1]} : vector<16x96xf32> to vector<16x32xf32>
    %80 = arith.mulf %69, %79 : vector<16x32xf32>
    %81 = arith.addf %78, %80 : vector<16x32xf32>
    %82 = math.tanh %81 : vector<16x32xf32>
    %cst_21 = arith.constant 1.000000e+00 : f32
    %83 = vector.broadcast %cst_21 : f32 to vector<16x32xf32>
    %84 = arith.subf %83, %77 : vector<16x32xf32>
    %85 = arith.mulf %84, %82 : vector<16x32xf32>
    %86 = arith.mulf %77, %0 : vector<16x32xf32>
    %87 = arith.addf %85, %86 : vector<16x32xf32>
    %cst_22 = arith.constant dense<0.000000e+00> : vector<16x96xf32>
    %88 = tpu.matmul %55, %12, %cst_22 {dimension_numbers = #tpu.dot_dimension_numbers<[1], [0], [0], [1], [0, 0, 1, 1], [], []>} : vector<16x128xf32>, vector<128x96xf32>, vector<16x96xf32> -> vector<16x96xf32>
    %89 = vector.broadcast %18 : vector<1x96xf32> to vector<16x96xf32>
    %90 = arith.addf %88, %89 : vector<16x96xf32>
    %cst_23 = arith.constant dense<0.000000e+00> : vector<16x96xf32>
    %91 = tpu.matmul %0, %10, %cst_23 {dimension_numbers = #tpu.dot_dimension_numbers<[1], [0], [0], [1], [0, 0, 1, 1], [], []>} : vector<16x32xf32>, vector<32x96xf32>, vector<16x96xf32> -> vector<16x96xf32>
    %92 = vector.broadcast %19 : vector<1x96xf32> to vector<16x96xf32>
    %93 = arith.addf %91, %92 : vector<16x96xf32>
    %94 = vector.extract_strided_slice %90 {offsets = [0, 0], sizes = [16, 32], strides = [1, 1]} : vector<16x96xf32> to vector<16x32xf32>
    %95 = vector.extract_strided_slice %93 {offsets = [0, 0], sizes = [16, 32], strides = [1, 1]} : vector<16x96xf32> to vector<16x32xf32>
    %96 = arith.addf %94, %95 : vector<16x32xf32>
    %97 = arith.negf %96 : vector<16x32xf32>
    %98 = math.exp %97 : vector<16x32xf32>
    %cst_24 = arith.constant 1.000000e+00 : f32
    %99 = vector.broadcast %cst_24 : f32 to vector<16x32xf32>
    %100 = arith.addf %99, %98 : vector<16x32xf32>
    %101 = arith.divf %99, %100 : vector<16x32xf32>
    %102 = vector.extract_strided_slice %90 {offsets = [0, 32], sizes = [16, 32], strides = [1, 1]} : vector<16x96xf32> to vector<16x32xf32>
    %103 = vector.extract_strided_slice %93 {offsets = [0, 32], sizes = [16, 32], strides = [1, 1]} : vector<16x96xf32> to vector<16x32xf32>
    %104 = arith.addf %102, %103 : vector<16x32xf32>
    %105 = arith.negf %104 : vector<16x32xf32>
    %106 = math.exp %105 : vector<16x32xf32>
    %cst_25 = arith.constant 1.000000e+00 : f32
    %107 = vector.broadcast %cst_25 : f32 to vector<16x32xf32>
    %108 = arith.addf %107, %106 : vector<16x32xf32>
    %109 = arith.divf %107, %108 : vector<16x32xf32>
    %110 = vector.extract_strided_slice %90 {offsets = [0, 64], sizes = [16, 32], strides = [1, 1]} : vector<16x96xf32> to vector<16x32xf32>
    %111 = vector.extract_strided_slice %93 {offsets = [0, 64], sizes = [16, 32], strides = [1, 1]} : vector<16x96xf32> to vector<16x32xf32>
    %112 = arith.mulf %101, %111 : vector<16x32xf32>
    %113 = arith.addf %110, %112 : vector<16x32xf32>
    %114 = math.tanh %113 : vector<16x32xf32>
    %cst_26 = arith.constant 1.000000e+00 : f32
    %115 = vector.broadcast %cst_26 : f32 to vector<16x32xf32>
    %116 = arith.subf %115, %109 : vector<16x32xf32>
    %117 = arith.mulf %116, %114 : vector<16x32xf32>
    %118 = arith.mulf %109, %0 : vector<16x32xf32>
    %119 = arith.addf %117, %118 : vector<16x32xf32>
    %120 = arith.addf %0, %119 : vector<16x32xf32>
    %121 = arith.addf %120, %87 : vector<16x32xf32>
    %cst_27 = arith.constant dense<0.000000e+00> : vector<16x128xf32>
    %122 = tpu.matmul %87, %5, %cst_27 {dimension_numbers = #tpu.dot_dimension_numbers<[1], [0], [0], [1], [0, 0, 1, 1], [], []>} : vector<16x32xf32>, vector<32x128xf32>, vector<16x128xf32> -> vector<16x128xf32>
    %123 = vector.broadcast %13 : vector<1x128xf32> to vector<16x128xf32>
    %124 = arith.addf %122, %123 : vector<16x128xf32>
    %cst_28 = arith.constant dense<0xFF800000> : vector<16xf32>
    %125 = vector.multi_reduction <maximumf>, %124, %cst_28 [1] : vector<16x128xf32> to vector<16xf32>
    %126 = vector.shape_cast %125 : vector<16xf32> to vector<16x1xf32>
    %127 = vector.broadcast %126 : vector<16x1xf32> to vector<16x128xf32>
    %128 = arith.subf %124, %127 : vector<16x128xf32>
    %129 = math.exp %128 : vector<16x128xf32>
    %cst_29 = arith.constant dense<0.000000e+00> : vector<16xf32>
    %130 = vector.multi_reduction <add>, %129, %cst_29 [1] : vector<16x128xf32> to vector<16xf32>
    %131 = vector.shape_cast %130 : vector<16xf32> to vector<16x1xf32>
    %132 = vector.broadcast %131 : vector<16x1xf32> to vector<16x128xf32>
    %133 = arith.divf %129, %132 : vector<16x128xf32>
    %cst_30 = arith.constant dense<0.000000e+00> : vector<16x32xf32>
    %134 = tpu.matmul %119, %6, %cst_30 {dimension_numbers = #tpu.dot_dimension_numbers<[1], [0], [0], [1], [0, 0, 1, 1], [], []>} : vector<16x32xf32>, vector<32x32xf32>, vector<16x32xf32> -> vector<16x32xf32>
    %135 = vector.broadcast %14 : vector<1x32xf32> to vector<16x32xf32>
    %136 = arith.addf %134, %135 : vector<16x32xf32>
    %cst_31 = arith.constant dense<0.000000e+00> : vector<16x32xf32>
    %137 = tpu.matmul %119, %7, %cst_31 {dimension_numbers = #tpu.dot_dimension_numbers<[1], [0], [0], [1], [0, 0, 1, 1], [], []>} : vector<16x32xf32>, vector<32x32xf32>, vector<16x32xf32> -> vector<16x32xf32>
    %138 = vector.shape_cast %136 : vector<16x32xf32> to vector<2x8x1x32xf32>
    %139 = vector.shape_cast %137 : vector<16x32xf32> to vector<2x1x8x32xf32>
    %140 = vector.broadcast %138 : vector<2x8x1x32xf32> to vector<2x8x8x32xf32>
    %141 = vector.broadcast %139 : vector<2x1x8x32xf32> to vector<2x8x8x32xf32>
    %142 = arith.addf %140, %141 : vector<2x8x8x32xf32>
    %cst_32 = arith.constant 0.000000e+00 : f32
    %143 = vector.broadcast %cst_32 : f32 to vector<2x8x8x32xf32>
    %144 = arith.maximumf %142, %143 : vector<2x8x8x32xf32>
    %145 = vector.shape_cast %144 : vector<2x8x8x32xf32> to vector<128x32xf32>
    %cst_33 = arith.constant dense<0.000000e+00> : vector<128x128xf32>
    %146 = tpu.matmul %145, %8, %cst_33 {dimension_numbers = #tpu.dot_dimension_numbers<[1], [0], [0], [1], [0, 0, 1, 1], [], []>} : vector<128x32xf32>, vector<32x128xf32>, vector<128x128xf32> -> vector<128x128xf32>
    %147 = vector.broadcast %1 : vector<128x1xf32> to vector<128x128xf32>
    %148 = arith.addf %146, %147 : vector<128x128xf32>
    %149 = vector.shape_cast %148 : vector<128x128xf32> to vector<16x8x128xf32>
    %cst_34 = arith.constant dense<0xFF800000> : vector<16x128xf32>
    %150 = vector.multi_reduction <maximumf>, %149, %cst_34 [1] : vector<16x8x128xf32> to vector<16x128xf32>
    %151 = vector.broadcast %15 : vector<1x128xf32> to vector<16x128xf32>
    %152 = arith.addf %150, %151 : vector<16x128xf32>
    %153 = arith.negf %152 : vector<16x128xf32>
    %154 = math.exp %153 : vector<16x128xf32>
    %cst_35 = arith.constant 1.000000e+00 : f32
    %155 = vector.broadcast %cst_35 : f32 to vector<16x128xf32>
    %156 = arith.addf %155, %154 : vector<16x128xf32>
    %157 = arith.divf %155, %156 : vector<16x128xf32>
    %cst_36 = arith.constant dense<0.000000e+00> : vector<16x96xf32>
    %158 = tpu.matmul %133, %11, %cst_36 {dimension_numbers = #tpu.dot_dimension_numbers<[1], [0], [0], [1], [0, 0, 1, 1], [], []>} : vector<16x128xf32>, vector<128x96xf32>, vector<16x96xf32> -> vector<16x96xf32>
    %159 = vector.broadcast %16 : vector<1x96xf32> to vector<16x96xf32>
    %160 = arith.addf %158, %159 : vector<16x96xf32>
    %cst_37 = arith.constant dense<0.000000e+00> : vector<16x96xf32>
    %161 = tpu.matmul %121, %9, %cst_37 {dimension_numbers = #tpu.dot_dimension_numbers<[1], [0], [0], [1], [0, 0, 1, 1], [], []>} : vector<16x32xf32>, vector<32x96xf32>, vector<16x96xf32> -> vector<16x96xf32>
    %162 = vector.broadcast %17 : vector<1x96xf32> to vector<16x96xf32>
    %163 = arith.addf %161, %162 : vector<16x96xf32>
    %164 = vector.extract_strided_slice %160 {offsets = [0, 0], sizes = [16, 32], strides = [1, 1]} : vector<16x96xf32> to vector<16x32xf32>
    %165 = vector.extract_strided_slice %163 {offsets = [0, 0], sizes = [16, 32], strides = [1, 1]} : vector<16x96xf32> to vector<16x32xf32>
    %166 = arith.addf %164, %165 : vector<16x32xf32>
    %167 = arith.negf %166 : vector<16x32xf32>
    %168 = math.exp %167 : vector<16x32xf32>
    %cst_38 = arith.constant 1.000000e+00 : f32
    %169 = vector.broadcast %cst_38 : f32 to vector<16x32xf32>
    %170 = arith.addf %169, %168 : vector<16x32xf32>
    %171 = arith.divf %169, %170 : vector<16x32xf32>
    %172 = vector.extract_strided_slice %160 {offsets = [0, 32], sizes = [16, 32], strides = [1, 1]} : vector<16x96xf32> to vector<16x32xf32>
    %173 = vector.extract_strided_slice %163 {offsets = [0, 32], sizes = [16, 32], strides = [1, 1]} : vector<16x96xf32> to vector<16x32xf32>
    %174 = arith.addf %172, %173 : vector<16x32xf32>
    %175 = arith.negf %174 : vector<16x32xf32>
    %176 = math.exp %175 : vector<16x32xf32>
    %cst_39 = arith.constant 1.000000e+00 : f32
    %177 = vector.broadcast %cst_39 : f32 to vector<16x32xf32>
    %178 = arith.addf %177, %176 : vector<16x32xf32>
    %179 = arith.divf %177, %178 : vector<16x32xf32>
    %180 = vector.extract_strided_slice %160 {offsets = [0, 64], sizes = [16, 32], strides = [1, 1]} : vector<16x96xf32> to vector<16x32xf32>
    %181 = vector.extract_strided_slice %163 {offsets = [0, 64], sizes = [16, 32], strides = [1, 1]} : vector<16x96xf32> to vector<16x32xf32>
    %182 = arith.mulf %171, %181 : vector<16x32xf32>
    %183 = arith.addf %180, %182 : vector<16x32xf32>
    %184 = math.tanh %183 : vector<16x32xf32>
    %cst_40 = arith.constant 1.000000e+00 : f32
    %185 = vector.broadcast %cst_40 : f32 to vector<16x32xf32>
    %186 = arith.subf %185, %179 : vector<16x32xf32>
    %187 = arith.mulf %186, %184 : vector<16x32xf32>
    %188 = arith.mulf %179, %121 : vector<16x32xf32>
    %189 = arith.addf %187, %188 : vector<16x32xf32>
    %cst_41 = arith.constant dense<0.000000e+00> : vector<16x96xf32>
    %190 = tpu.matmul %157, %12, %cst_41 {dimension_numbers = #tpu.dot_dimension_numbers<[1], [0], [0], [1], [0, 0, 1, 1], [], []>} : vector<16x128xf32>, vector<128x96xf32>, vector<16x96xf32> -> vector<16x96xf32>
    %191 = vector.broadcast %18 : vector<1x96xf32> to vector<16x96xf32>
    %192 = arith.addf %190, %191 : vector<16x96xf32>
    %cst_42 = arith.constant dense<0.000000e+00> : vector<16x96xf32>
    %193 = tpu.matmul %121, %10, %cst_42 {dimension_numbers = #tpu.dot_dimension_numbers<[1], [0], [0], [1], [0, 0, 1, 1], [], []>} : vector<16x32xf32>, vector<32x96xf32>, vector<16x96xf32> -> vector<16x96xf32>
    %194 = vector.broadcast %19 : vector<1x96xf32> to vector<16x96xf32>
    %195 = arith.addf %193, %194 : vector<16x96xf32>
    %196 = vector.extract_strided_slice %192 {offsets = [0, 0], sizes = [16, 32], strides = [1, 1]} : vector<16x96xf32> to vector<16x32xf32>
    %197 = vector.extract_strided_slice %195 {offsets = [0, 0], sizes = [16, 32], strides = [1, 1]} : vector<16x96xf32> to vector<16x32xf32>
    %198 = arith.addf %196, %197 : vector<16x32xf32>
    %199 = arith.negf %198 : vector<16x32xf32>
    %200 = math.exp %199 : vector<16x32xf32>
    %cst_43 = arith.constant 1.000000e+00 : f32
    %201 = vector.broadcast %cst_43 : f32 to vector<16x32xf32>
    %202 = arith.addf %201, %200 : vector<16x32xf32>
    %203 = arith.divf %201, %202 : vector<16x32xf32>
    %204 = vector.extract_strided_slice %192 {offsets = [0, 32], sizes = [16, 32], strides = [1, 1]} : vector<16x96xf32> to vector<16x32xf32>
    %205 = vector.extract_strided_slice %195 {offsets = [0, 32], sizes = [16, 32], strides = [1, 1]} : vector<16x96xf32> to vector<16x32xf32>
    %206 = arith.addf %204, %205 : vector<16x32xf32>
    %207 = arith.negf %206 : vector<16x32xf32>
    %208 = math.exp %207 : vector<16x32xf32>
    %cst_44 = arith.constant 1.000000e+00 : f32
    %209 = vector.broadcast %cst_44 : f32 to vector<16x32xf32>
    %210 = arith.addf %209, %208 : vector<16x32xf32>
    %211 = arith.divf %209, %210 : vector<16x32xf32>
    %212 = vector.extract_strided_slice %192 {offsets = [0, 64], sizes = [16, 32], strides = [1, 1]} : vector<16x96xf32> to vector<16x32xf32>
    %213 = vector.extract_strided_slice %195 {offsets = [0, 64], sizes = [16, 32], strides = [1, 1]} : vector<16x96xf32> to vector<16x32xf32>
    %214 = arith.mulf %203, %213 : vector<16x32xf32>
    %215 = arith.addf %212, %214 : vector<16x32xf32>
    %216 = math.tanh %215 : vector<16x32xf32>
    %cst_45 = arith.constant 1.000000e+00 : f32
    %217 = vector.broadcast %cst_45 : f32 to vector<16x32xf32>
    %218 = arith.subf %217, %211 : vector<16x32xf32>
    %219 = arith.mulf %218, %216 : vector<16x32xf32>
    %220 = arith.mulf %211, %121 : vector<16x32xf32>
    %221 = arith.addf %219, %220 : vector<16x32xf32>
    %cst_46 = arith.constant dense<0.000000e+00> : vector<16x128xf32>
    %222 = tpu.matmul %189, %5, %cst_46 {dimension_numbers = #tpu.dot_dimension_numbers<[1], [0], [0], [1], [0, 0, 1, 1], [], []>} : vector<16x32xf32>, vector<32x128xf32>, vector<16x128xf32> -> vector<16x128xf32>
    %223 = vector.broadcast %13 : vector<1x128xf32> to vector<16x128xf32>
    %224 = arith.addf %222, %223 : vector<16x128xf32>
    %c0_47 = arith.constant 0 : index
    %c0_48 = arith.constant 0 : index
    %225 = vector.load %arg5[%c0_47, %c0_48] : memref<16x128xf32, #tpu.memory_space<vmem>>, vector<16x128xf32>
    tpu.vector_store %arg5[%c0_47, %c0_48], %224 {strides = array<i32>} : memref<16x128xf32, #tpu.memory_space<vmem>>, vector<16x128xf32>,
    %cst_49 = arith.constant dense<0.000000e+00> : vector<16x32xf32>
    %226 = tpu.matmul %221, %6, %cst_49 {dimension_numbers = #tpu.dot_dimension_numbers<[1], [0], [0], [1], [0, 0, 1, 1], [], []>} : vector<16x32xf32>, vector<32x32xf32>, vector<16x32xf32> -> vector<16x32xf32>
    %227 = vector.broadcast %14 : vector<1x32xf32> to vector<16x32xf32>
    %228 = arith.addf %226, %227 : vector<16x32xf32>
    %cst_50 = arith.constant dense<0.000000e+00> : vector<16x32xf32>
    %229 = tpu.matmul %221, %7, %cst_50 {dimension_numbers = #tpu.dot_dimension_numbers<[1], [0], [0], [1], [0, 0, 1, 1], [], []>} : vector<16x32xf32>, vector<32x32xf32>, vector<16x32xf32> -> vector<16x32xf32>
    %230 = vector.shape_cast %228 : vector<16x32xf32> to vector<2x8x1x32xf32>
    %231 = vector.shape_cast %229 : vector<16x32xf32> to vector<2x1x8x32xf32>
    %232 = vector.broadcast %230 : vector<2x8x1x32xf32> to vector<2x8x8x32xf32>
    %233 = vector.broadcast %231 : vector<2x1x8x32xf32> to vector<2x8x8x32xf32>
    %234 = arith.addf %232, %233 : vector<2x8x8x32xf32>
    %cst_51 = arith.constant 0.000000e+00 : f32
    %235 = vector.broadcast %cst_51 : f32 to vector<2x8x8x32xf32>
    %236 = arith.maximumf %234, %235 : vector<2x8x8x32xf32>
    %237 = vector.shape_cast %236 : vector<2x8x8x32xf32> to vector<128x32xf32>
    %cst_52 = arith.constant dense<0.000000e+00> : vector<128x128xf32>
    %238 = tpu.matmul %237, %8, %cst_52 {dimension_numbers = #tpu.dot_dimension_numbers<[1], [0], [0], [1], [0, 0, 1, 1], [], []>} : vector<128x32xf32>, vector<32x128xf32>, vector<128x128xf32> -> vector<128x128xf32>
    %239 = vector.broadcast %15 : vector<1x128xf32> to vector<128x128xf32>
    %240 = arith.addf %238, %239 : vector<128x128xf32>
    %c0_53 = arith.constant 0 : index
    %c0_54 = arith.constant 0 : index
    %241 = vector.load %arg6[%c0_53, %c0_54] : memref<128x128xf32, #tpu.memory_space<vmem>>, vector<128x128xf32>
    tpu.vector_store %arg6[%c0_53, %c0_54], %240 {strides = array<i32>} : memref<128x128xf32, #tpu.memory_space<vmem>>, vector<128x128xf32>,
    return
  }
}

</mosaic_0001>

<llo_original>
// kernel: custom-call.3
$region0: #{custom-call.3}
  %s0 = inlined_call_operand.vmem [shape: f32[2,16], index: 0, kind: output, shape index: {}]

// kernel: custom-call.2
$region0: #{custom-call.2}
  %s0 = inlined_call_operand.vmem [shape: bf16[2,16], index: 0, kind: output, shape index: {}]

// kernel: forward.1
$region0: #{forward.1}
  #allocation0 [shape = 'u32[]', space=smem, size = 0x4, offset = 0x4, fixed_abs, tag = 'smem constant byte address 0x4 - core index']
  #allocation1 [shape = 'u32[144,128]{1,0:T(1,128)}', space=vmem, size = 0x12000, scoped, tag = 'internal scratch']
  %s0 = inlined_call_operand.vmem [shape: f32[16,32], index: 0, kind: input, shape index: {}]
  %s1 = inlined_call_operand.vmem [shape: f32[128,1], index: 1, kind: input, shape index: {}]
  %s2 = inlined_call_operand.vmem [shape: f32[32,768], index: 2, kind: input, shape index: {}]
  %s3 = inlined_call_operand.vmem [shape: f32[128,256], index: 3, kind: input, shape index: {}]
  %s4 = inlined_call_operand.vmem [shape: f32[8,128], index: 4, kind: input, shape index: {}]
  %s5 = inlined_call_operand.vmem [shape: f32[16,128], index: 5, kind: output, shape index: {0}]
  %s6 = inlined_call_operand.vmem [shape: f32[128,128], index: 6, kind: output, shape index: {1}]
  %7 = xla_tuple %s5, %s6
  %s8 = sld [smem:[#allocation0]]
  $region38: #{forward.1} parent=0
    _
  %s10 = ssub.s32 1, %s8
  %s11 = scalar_select 0, %s10, %s8
  // Predicated region
  $region2: #{forward.1} parent=0 // pred_check
    _
  $region3: #{forward.1} parent=0 // pred_check_branch
    %13 = sbr.rel (0) target = $region5
  $region4: #{forward.1} parent=0 // pred_region
    _
  $region5: #{forward.1} parent=0 // pred_fallthru
    _
  // Predicated region
  $region6: #{forward.1} parent=0 // pred_check
    _
  $region7: #{forward.1} parent=0 // pred_check_branch
    %15 = sbr.rel (0) target = $region9
  $region8: #{forward.1} parent=0 // pred_region
    _
  $region9: #{forward.1} parent=0 // pred_fallthru
    _
  // Predicated region
  $region10: #{forward.1} parent=0 // pred_check
    _
  $region11: #{forward.1} parent=0 // pred_check_branch
    %17 = sbr.rel (0) target = $region13
  $region12: #{forward.1} parent=0 // pred_region
    _
  $region13: #{forward.1} parent=0 // pred_fallthru
    _
  // Predicated region
  $region14: #{forward.1} parent=0 // pred_check
    _
  $region15: #{forward.1} parent=0 // pred_check_branch
    %19 = sbr.rel (0) target = $region17
  $region16: #{forward.1} parent=0 // pred_region
    _
  $region17: #{forward.1} parent=0 // pred_fallthru
    _
  // Predicated region
  $region18: #{forward.1} parent=0 // pred_check
    _
  $region19: #{forward.1} parent=0 // pred_check_branch
    %21 = sbr.rel (0) target = $region21
  $region20: #{forward.1} parent=0 // pred_region
    _
  $region21: #{forward.1} parent=0 // pred_fallthru
    _
  %v22 = vld [vmem:[%s0] sm:$0xff]
  %v23 = vld [vmem:[%s0 + $0x8] sm:$0xff]
  %v24 = vld [vmem:[%s1] sm:$0xff]
  %v25 = vld [vmem:[%s1 + $0x8] sm:$0xff]
  %v26 = vld [vmem:[%s1 + $0x10] sm:$0xff]
  %v27 = vld [vmem:[%s1 + $0x18] sm:$0xff]
  %v28 = vld [vmem:[%s1 + $0x20] sm:$0xff]
  %v29 = vld [vmem:[%s1 + $0x28] sm:$0xff]
  %v30 = vld [vmem:[%s1 + $0x30] sm:$0xff]
  %v31 = vld [vmem:[%s1 + $0x38] sm:$0xff]
  %v32 = vld [vmem:[%s1 + $0x40] sm:$0xff]
  %v33 = vld [vmem:[%s1 + $0x48] sm:$0xff]
  %v34 = vld [vmem:[%s1 + $0x50] sm:$0xff]
  %v35 = vld [vmem:[%s1 + $0x58] sm:$0xff]
  %v36 = vld [vmem:[%s1 + $0x60] sm:$0xff]
  %v37 = vld [vmem:[%s1 + $0x68] sm:$0xff]
  %v38 = vld [vmem:[%s1 + $0x70] sm:$0xff]
  %v39 = vld [vmem:[%s1 + $0x78] sm:$0xff]
  %v40 = vld [vmem:[%s2] sm:$0xff]
  %v41 = vld [vmem:[%s2 + $0x8] sm:$0xff]
  %v42 = vld [vmem:[%s2 + $0x10] sm:$0xff]
  %v43 = vld [vmem:[%s2 + $0x18] sm:$0xff]
  %v44 = vld [vmem:[%s2 + $0x20] sm:$0xff]
  %v45 = vld [vmem:[%s2 + $0x28] sm:$0xff]
  %v46 = vld [vmem:[%s2 + $0x30] sm:$0xff]
  %v47 = vld [vmem:[%s2 + $0x38] sm:$0xff]
  %v48 = vld [vmem:[%s2 + $0x40] sm:$0xff]
  %v49 = vld [vmem:[%s2 + $0x48] sm:$0xff]
  %v50 = vld [vmem:[%s2 + $0x50] sm:$0xff]
  %v51 = vld [vmem:[%s2 + $0x58] sm:$0xff]
  %v52 = vld [vmem:[%s2 + $0x60] sm:$0xff]
  %v53 = vld [vmem:[%s2 + $0x68] sm:$0xff]
  %v54 = vld [vmem:[%s2 + $0x70] sm:$0xff]
  %v55 = vld [vmem:[%s2 + $0x78] sm:$0xff]
  %v56 = vld [vmem:[%s2 + $0x80] sm:$0xff]
  %v57 = vld [vmem:[%s2 + $0x88] sm:$0xff]
  %v58 = vld [vmem:[%s2 + $0x90] sm:$0xff]
  %v59 = vld [vmem:[%s2 + $0x98] sm:$0xff]
  %v60 = vld [vmem:[%s2 + $0xa0] sm:$0xff]
  %v61 = vld [vmem:[%s2 + $0xa8] sm:$0xff]
  %v62 = vld [vmem:[%s2 + $0xb0] sm:$0xff]
  %v63 = vld [vmem:[%s2 + $0xb8] sm:$0xff]
  %v64 = vld [vmem:[%s3] sm:$0xff]
  %v65 = vld [vmem:[%s3 + $0x8] sm:$0xff]
  %v66 = vld [vmem:[%s3 + $0x10] sm:$0xff]
  %v67 = vld [vmem:[%s3 + $0x18] sm:$0xff]
  %v68 = vld [vmem:[%s3 + $0x20] sm:$0xff]
  %v69 = vld [vmem:[%s3 + $0x28] sm:$0xff]
  %v70 = vld [vmem:[%s3 + $0x30] sm:$0xff]
  %v71 = vld [vmem:[%s3 + $0x38] sm:$0xff]
  %v72 = vld [vmem:[%s3 + $0x40] sm:$0xff]
  %v73 = vld [vmem:[%s3 + $0x48] sm:$0xff]
  %v74 = vld [vmem:[%s3 + $0x50] sm:$0xff]
  %v75 = vld [vmem:[%s3 + $0x58] sm:$0xff]
  %v76 = vld [vmem:[%s3 + $0x60] sm:$0xff]
  %v77 = vld [vmem:[%s3 + $0x68] sm:$0xff]
  %v78 = vld [vmem:[%s3 + $0x70] sm:$0xff]
  %v79 = vld [vmem:[%s3 + $0x78] sm:$0xff]
  %v80 = vld [vmem:[%s3 + $0x80] sm:$0xff]
  %v81 = vld [vmem:[%s3 + $0x88] sm:$0xff]
  %v82 = vld [vmem:[%s3 + $0x90] sm:$0xff]
  %v83 = vld [vmem:[%s3 + $0x98] sm:$0xff]
  %v84 = vld [vmem:[%s3 + $0xa0] sm:$0xff]
  %v85 = vld [vmem:[%s3 + $0xa8] sm:$0xff]
  %v86 = vld [vmem:[%s3 + $0xb0] sm:$0xff]
  %v87 = vld [vmem:[%s3 + $0xb8] sm:$0xff]
  %v88 = vld [vmem:[%s3 + $0xc0] sm:$0xff]
  %v89 = vld [vmem:[%s3 + $0xc8] sm:$0xff]
  %v90 = vld [vmem:[%s3 + $0xd0] sm:$0xff]
  %v91 = vld [vmem:[%s3 + $0xd8] sm:$0xff]
  %v92 = vld [vmem:[%s3 + $0xe0] sm:$0xff]
  %v93 = vld [vmem:[%s3 + $0xe8] sm:$0xff]
  %v94 = vld [vmem:[%s3 + $0xf0] sm:$0xff]
  %v95 = vld [vmem:[%s3 + $0xf8] sm:$0xff]
  %v96 = vld [vmem:[%s4] sm:$0xff]
  %v97 = vlaneseq
  %v98 = vshrl.u32 %v97, 7
  %v99 = vsub.s32 0, %v98
  %v100 = vrot.slane %v96, %v99
  %vm101 = vcmask 261120
  %v103 = vsel %vm101, %v22, 0
  %v106 = vsel %vm101, %v23, 0
  %108 = vmatprep.subr.mxu0 0.0
  %109 = vmatpush1.msra.mxu0 %v40
  %110 = vmatprep.subr.mxu0 0.0
  %111 = vmatpush1.msra.mxu0 %v46
  %112 = vmatprep.subr.mxu0 0.0
  %113 = vmatpush1.msra.mxu0 %v52
  %114 = vmatprep.subr.mxu0 0.0
  %115 = vmatpush1.msra.mxu0 %v58
  %116 = vmatprep.subr.mxu0 0.0
  %117 = vmatpush1.msra.mxu0 0.0
  %118 = vmatprep.subr.mxu0 0.0
  %119 = vmatpush1.msra.mxu0 0.0
  %120 = vmatprep.subr.mxu0 0.0
  %121 = vmatpush1.msra.mxu0 0.0
  %122 = vmatprep.subr.mxu0 0.0
  %123 = vmatpush1.msra.mxu0 0.0
  %124 = vmatprep.subr.mxu0 0.0
  %125 = vmatpush1.msra.mxu0 0.0
  %126 = vmatprep.subr.mxu0 0.0
  %127 = vmatpush1.msra.mxu0 0.0
  %128 = vmatprep.subr.mxu0 0.0
  %129 = vmatpush1.msra.mxu0 0.0
  %130 = vmatprep.subr.mxu0 0.0
  %131 = vmatpush1.msra.mxu0 0.0
  %132 = vmatprep.subr.mxu0 0.0
  %133 = vmatpush1.msra.mxu0 0.0
  %134 = vmatprep.subr.mxu0 0.0
  %135 = vmatpush1.msra.mxu0 0.0
  %136 = vmatprep.subr.mxu0 0.0
  %137 = vmatpush1.msra.mxu0 0.0
  %138 = vmatprep.subr.mxu0 0.0
  %139 = vmatpush1.msra.mxu0 0.0
  %140 = vmatprep.subr.mxu0 0.0
  %141 = vmatpush1.msra.mxu0 0.0
  %142 = vmatprep.subr.mxu0 0.0
  %143 = vmatpush1.msra.mxu0 0.0
  %144 = vmatprep.subr.mxu0 0.0
  %145 = vmatpush1.msra.mxu0 0.0
  %146 = vmatprep.subr.mxu0 0.0
  %147 = vmatpush1.msra.mxu0 0.0
  %148 = vmatprep.subr.mxu0 0.0
  %149 = vmatpush1.msra.mxu0 0.0
  %150 = vmatprep.subr.mxu0 0.0
  %151 = vmatpush1.msra.mxu0 0.0
  %152 = vmatprep.subr.mxu0 0.0
  %153 = vmatpush1.msra.mxu0 0.0
  %154 = vmatprep.subr.mxu0 0.0
  %155 = vmatpush1.msra.mxu0 0.0
  %156 = vmatprep.subr.mxu0 0.0
  %157 = vmatpush1.msra.mxu0 0.0
  %158 = vmatprep.subr.mxu0 0.0
  %159 = vmatpush1.msra.mxu0 0.0
  %160 = vmatprep.subr.mxu0 0.0
  %161 = vmatpush1.msra.mxu0 0.0
  %162 = vmatprep.subr.mxu0 0.0
  %163 = vmatpush1.msra.mxu0 0.0
  %164 = vmatprep.subr.mxu0 0.0
  %165 = vmatpush1.msra.mxu0 0.0
  %166 = vmatprep.subr.mxu0 0.0
  %167 = vmatpush1.msra.mxu0 0.0
  %168 = vmatprep.subr.mxu0 0.0
  %169 = vmatpush1.msra.mxu0 0.0
  %170 = vmatprep.subr.mxu0 0.0
  %171 = vmatpush1.msra.mxu0 0.0
  %172 = vmatprep.mubr.f32.mxu0 0.0
  %173 = vmatmul.mubr.f32.gmra.mrb[0].mxu0 %v103
  %v174 = vpop.f32.mrb[0].mxu0
  %v175 = vadd.f32 %v100, %v174
  %v176 = vpop.f32.mrb[0].mxu0
  %177 = vmatprep.mubr.f32.mxu0 0.0
  %178 = vmatmul.mubr.f32.gmra.mrb[0].mxu0 %v106
  %v179 = vpop.f32.mrb[0].mxu0
  %v180 = vadd.f32 %v100, %v179
  %v181 = vpop.f32.mrb[0].mxu0
  %182 = vdwg.mxu0
  %183 = vmax.xlane.f32.xlu0 %v175
  %v184 = vpop.xlane.xlu0 %183
  %185 = vmax.xlane.f32.xlu0 %v180
  %v186 = vpop.xlane.xlu0 %185
  %v187 = vsub.f32 %v175, %v184
  %v188 = vsub.f32 %v180, %v186
  %v189 = vmul.f32 %v187, 1.442695
  %v190 = vpow.pop %v189
  %v191 = vmul.f32 %v188, 1.442695
  %v192 = vpow.pop %v191
  %193 = vadd.xlane.f32.xlu0 %v190
  %v194 = vpop.xlane.xlu0 %193
  %195 = vadd.xlane.f32.xlu0 %v192
  %v196 = vpop.xlane.xlu0 %195
  %v197 = vrcp.pop %v194
  %v198 = vmul.f32 %v190, %v197
  %v199 = vrcp.pop %v196
  %v200 = vmul.f32 %v192, %v199
  %v201 = vlaneseq
  %v202 = vshrl.u32 %v201, 7
  %v203 = vsub.s32 1, %v202
  %v204 = vrot.slane %v96, %v203
  %205 = vmatprep.subr.mxu0 0.0
  %206 = vmatpush1.msra.mxu0 %v41
  %207 = vmatprep.subr.mxu0 0.0
  %208 = vmatpush1.msra.mxu0 %v47
  %209 = vmatprep.subr.mxu0 0.0
  %210 = vmatpush1.msra.mxu0 %v53
  %211 = vmatprep.subr.mxu0 0.0
  %212 = vmatpush1.msra.mxu0 %v59
  %213 = vmatprep.subr.mxu0 0.0
  %214 = vmatpush1.msra.mxu0 0.0
  %215 = vmatprep.subr.mxu0 0.0
  %216 = vmatpush1.msra.mxu0 0.0
  %217 = vmatprep.subr.mxu0 0.0
  %218 = vmatpush1.msra.mxu0 0.0
  %219 = vmatprep.subr.mxu0 0.0
  %220 = vmatpush1.msra.mxu0 0.0
  %221 = vmatprep.subr.mxu0 0.0
  %222 = vmatpush1.msra.mxu0 0.0
  %223 = vmatprep.subr.mxu0 0.0
  %224 = vmatpush1.msra.mxu0 0.0
  %225 = vmatprep.subr.mxu0 0.0
  %226 = vmatpush1.msra.mxu0 0.0
  %227 = vmatprep.subr.mxu0 0.0
  %228 = vmatpush1.msra.mxu0 0.0
  %229 = vmatprep.subr.mxu0 0.0
  %230 = vmatpush1.msra.mxu0 0.0
  %231 = vmatprep.subr.mxu0 0.0
  %232 = vmatpush1.msra.mxu0 0.0
  %233 = vmatprep.subr.mxu0 0.0
  %234 = vmatpush1.msra.mxu0 0.0
  %235 = vmatprep.subr.mxu0 0.0
  %236 = vmatpush1.msra.mxu0 0.0
  %237 = vmatprep.subr.mxu0 0.0
  %238 = vmatpush1.msra.mxu0 0.0
  %239 = vmatprep.subr.mxu0 0.0
  %240 = vmatpush1.msra.mxu0 0.0
  %241 = vmatprep.subr.mxu0 0.0
  %242 = vmatpush1.msra.mxu0 0.0
  %243 = vmatprep.subr.mxu0 0.0
  %244 = vmatpush1.msra.mxu0 0.0
  %245 = vmatprep.subr.mxu0 0.0
  %246 = vmatpush1.msra.mxu0 0.0
  %247 = vmatprep.subr.mxu0 0.0
  %248 = vmatpush1.msra.mxu0 0.0
  %249 = vmatprep.subr.mxu0 0.0
  %250 = vmatpush1.msra.mxu0 0.0
  %251 = vmatprep.subr.mxu0 0.0
  %252 = vmatpush1.msra.mxu0 0.0
  %253 = vmatprep.subr.mxu0 0.0
  %254 = vmatpush1.msra.mxu0 0.0
  %255 = vmatprep.subr.mxu0 0.0
  %256 = vmatpush1.msra.mxu0 0.0
  %257 = vmatprep.subr.mxu0 0.0
  %258 = vmatpush1.msra.mxu0 0.0
  %259 = vmatprep.subr.mxu0 0.0
  %260 = vmatpush1.msra.mxu0 0.0
  %261 = vmatprep.subr.mxu0 0.0
  %262 = vmatpush1.msra.mxu0 0.0
  %263 = vmatprep.subr.mxu0 0.0
  %264 = vmatpush1.msra.mxu0 0.0
  %265 = vmatprep.subr.mxu0 0.0
  %266 = vmatpush1.msra.mxu0 0.0
  %267 = vmatprep.subr.mxu0 0.0
  %268 = vmatpush1.msra.mxu0 0.0
  %269 = vmatprep.mubr.f32.mxu0 0.0
  %270 = vmatmul.mubr.f32.gmra.mrb[0].mxu0 %v103
  %v271 = vpop.f32.mrb[0].mxu0
  %v272 = vadd.f32 %v204, %v271
  %v273 = vpop.f32.mrb[0].mxu0
  %274 = vmatprep.mubr.f32.mxu0 0.0
  %275 = vmatmul.mubr.f32.gmra.mrb[0].mxu0 %v106
  %v276 = vpop.f32.mrb[0].mxu0
  %v277 = vadd.f32 %v204, %v276
  %v278 = vpop.f32.mrb[0].mxu0
  %279 = vdwg.mxu0
  %280 = vmatprep.subr.mxu0 0.0
  %281 = vmatpush1.msra.mxu0 %v42
  %282 = vmatprep.subr.mxu0 0.0
  %283 = vmatpush1.msra.mxu0 %v48
  %284 = vmatprep.subr.mxu0 0.0
  %285 = vmatpush1.msra.mxu0 %v54
  %286 = vmatprep.subr.mxu0 0.0
  %287 = vmatpush1.msra.mxu0 %v60
  %288 = vmatprep.subr.mxu0 0.0
  %289 = vmatpush1.msra.mxu0 0.0
  %290 = vmatprep.subr.mxu0 0.0
  %291 = vmatpush1.msra.mxu0 0.0
  %292 = vmatprep.subr.mxu0 0.0
  %293 = vmatpush1.msra.mxu0 0.0
  %294 = vmatprep.subr.mxu0 0.0
  %295 = vmatpush1.msra.mxu0 0.0
  %296 = vmatprep.subr.mxu0 0.0
  %297 = vmatpush1.msra.mxu0 0.0
  %298 = vmatprep.subr.mxu0 0.0
  %299 = vmatpush1.msra.mxu0 0.0
  %300 = vmatprep.subr.mxu0 0.0
  %301 = vmatpush1.msra.mxu0 0.0
  %302 = vmatprep.subr.mxu0 0.0
  %303 = vmatpush1.msra.mxu0 0.0
  %304 = vmatprep.subr.mxu0 0.0
  %305 = vmatpush1.msra.mxu0 0.0
  %306 = vmatprep.subr.mxu0 0.0
  %307 = vmatpush1.msra.mxu0 0.0
  %308 = vmatprep.subr.mxu0 0.0
  %309 = vmatpush1.msra.mxu0 0.0
  %310 = vmatprep.subr.mxu0 0.0
  %311 = vmatpush1.msra.mxu0 0.0
  %312 = vmatprep.subr.mxu0 0.0
  %313 = vmatpush1.msra.mxu0 0.0
  %314 = vmatprep.subr.mxu0 0.0
  %315 = vmatpush1.msra.mxu0 0.0
  %316 = vmatprep.subr.mxu0 0.0
  %317 = vmatpush1.msra.mxu0 0.0
  %318 = vmatprep.subr.mxu0 0.0
  %319 = vmatpush1.msra.mxu0 0.0
  %320 = vmatprep.subr.mxu0 0.0
  %321 = vmatpush1.msra.mxu0 0.0
  %322 = vmatprep.subr.mxu0 0.0
  %323 = vmatpush1.msra.mxu0 0.0
  %324 = vmatprep.subr.mxu0 0.0
  %325 = vmatpush1.msra.mxu0 0.0
  %326 = vmatprep.subr.mxu0 0.0
  %327 = vmatpush1.msra.mxu0 0.0
  %328 = vmatprep.subr.mxu0 0.0
  %329 = vmatpush1.msra.mxu0 0.0
  %330 = vmatprep.subr.mxu0 0.0
  %331 = vmatpush1.msra.mxu0 0.0
  %332 = vmatprep.subr.mxu0 0.0
  %333 = vmatpush1.msra.mxu0 0.0
  %334 = vmatprep.subr.mxu0 0.0
  %335 = vmatpush1.msra.mxu0 0.0
  %336 = vmatprep.subr.mxu0 0.0
  %337 = vmatpush1.msra.mxu0 0.0
  %338 = vmatprep.subr.mxu0 0.0
  %339 = vmatpush1.msra.mxu0 0.0
  %340 = vmatprep.subr.mxu0 0.0
  %341 = vmatpush1.msra.mxu0 0.0
  %342 = vmatprep.subr.mxu0 0.0
  %343 = vmatpush1.msra.mxu0 0.0
  %344 = vmatprep.mubr.f32.mxu0 0.0
  %345 = vmatmul.mubr.f32.gmra.mrb[0].mxu0 %v103
  %v346 = vpop.f32.mrb[0].mxu0
  %v347 = vadd.f32 0.0, %v346
  %v348 = vpop.f32.mrb[0].mxu0
  %349 = vmatprep.mubr.f32.mxu0 0.0
  %350 = vmatmul.mubr.f32.gmra.mrb[0].mxu0 %v106
  %v351 = vpop.f32.mrb[0].mxu0
  %v352 = vadd.f32 0.0, %v351
  %v353 = vpop.f32.mrb[0].mxu0
  %354 = vdwg.mxu0
  %v357 = vcombine.high %v272, %v272
  %v359 = vunpack.c.l.s4 1966171168
  %v360 = vunpack.c.0.s8 %v359
  %v361 = vlaneseq
  %v362 = vshrl.u32 %v361, 7
  %v363 = vsub.s32 %v360, %v362
  %v364 = vrot.slane %v272, %v363
  %v366 = vunpack.c.l.s4 1966171168
  %v367 = vunpack.c.0.s8 %v366
  %v368 = vlaneseq
  %v369 = vshrl.u32 %v368, 7
  %v370 = vsub.s32 %v367, %v369
  %v371 = vrot.slane %v357, %v370
  %v372 = vcombine.high %v364, %v364
  %v373 = vcombine.high %v371, %v371
  %v375 = vunpack.c.l.s4 1966171168
  %v376 = vunpack.c.0.s8 %v375
  %v377 = vlaneseq
  %v378 = vshrl.u32 %v377, 7
  %v379 = vsub.s32 %v376, %v378
  %v380 = vrot.slane %v364, %v379
  %v382 = vunpack.c.l.s4 1966171168
  %v383 = vunpack.c.0.s8 %v382
  %v384 = vlaneseq
  %v385 = vshrl.u32 %v384, 7
  %v386 = vsub.s32 %v383, %v385
  %v387 = vrot.slane %v371, %v386
  %v389 = vunpack.c.l.s4 1966171168
  %v390 = vunpack.c.0.s8 %v389
  %v391 = vlaneseq
  %v392 = vshrl.u32 %v391, 7
  %v393 = vsub.s32 %v390, %v392
  %v394 = vrot.slane %v372, %v393
  %v396 = vunpack.c.l.s4 1966171168
  %v397 = vunpack.c.0.s8 %v396
  %v398 = vlaneseq
  %v399 = vshrl.u32 %v398, 7
  %v400 = vsub.s32 %v397, %v399
  %v401 = vrot.slane %v373, %v400
  %v402 = vcombine.high %v380, %v380
  %v403 = vcombine.high %v387, %v387
  %v404 = vcombine.high %v394, %v394
  %v405 = vcombine.high %v401, %v401
  %v406 = vcombine.high %v277, %v277
  %v408 = vunpack.c.l.s4 1966171168
  %v409 = vunpack.c.0.s8 %v408
  %v410 = vlaneseq
  %v411 = vshrl.u32 %v410, 7
  %v412 = vsub.s32 %v409, %v411
  %v413 = vrot.slane %v277, %v412
  %v415 = vunpack.c.l.s4 1966171168
  %v416 = vunpack.c.0.s8 %v415
  %v417 = vlaneseq
  %v418 = vshrl.u32 %v417, 7
  %v419 = vsub.s32 %v416, %v418
  %v420 = vrot.slane %v406, %v419
  %v421 = vcombine.high %v413, %v413
  %v422 = vcombine.high %v420, %v420
  %v424 = vunpack.c.l.s4 1966171168
  %v425 = vunpack.c.0.s8 %v424
  %v426 = vlaneseq
  %v427 = vshrl.u32 %v426, 7
  %v428 = vsub.s32 %v425, %v427
  %v429 = vrot.slane %v413, %v428
  %v431 = vunpack.c.l.s4 1966171168
  %v432 = vunpack.c.0.s8 %v431
  %v433 = vlaneseq
  %v434 = vshrl.u32 %v433, 7
  %v435 = vsub.s32 %v432, %v434
  %v436 = vrot.slane %v420, %v435
  %v438 = vunpack.c.l.s4 1966171168
  %v439 = vunpack.c.0.s8 %v438
  %v440 = vlaneseq
  %v441 = vshrl.u32 %v440, 7
  %v442 = vsub.s32 %v439, %v441
  %v443 = vrot.slane %v421, %v442
  %v445 = vunpack.c.l.s4 1966171168
  %v446 = vunpack.c.0.s8 %v445
  %v447 = vlaneseq
  %v448 = vshrl.u32 %v447, 7
  %v449 = vsub.s32 %v446, %v448
  %v450 = vrot.slane %v422, %v449
  %v451 = vcombine.high %v429, %v429
  %v452 = vcombine.high %v436, %v436
  %v453 = vcombine.high %v443, %v443
  %v454 = vcombine.high %v450, %v450
  %v455 = vlaneseq
  %v456 = vshrl.u32 %v455, 7
  %v457 = vsub.s32 0, %v456
  %v458 = vrot.slane %v380, %v457
  %v459 = vlaneseq
  %v460 = vshrl.u32 %v459, 7
  %v461 = vsub.s32 0, %v460
  %v462 = vrot.slane %v394, %v461
  %v463 = vlaneseq
  %v464 = vshrl.u32 %v463, 7
  %v465 = vsub.s32 0, %v464
  %v466 = vrot.slane %v402, %v465
  %v467 = vlaneseq
  %v468 = vshrl.u32 %v467, 7
  %v469 = vsub.s32 0, %v468
  %v470 = vrot.slane %v404, %v469
  %v471 = vlaneseq
  %v472 = vshrl.u32 %v471, 7
  %v473 = vsub.s32 0, %v472
  %v474 = vrot.slane %v387, %v473
  %v475 = vlaneseq
  %v476 = vshrl.u32 %v475, 7
  %v477 = vsub.s32 0, %v476
  %v478 = vrot.slane %v401, %v477
  %v479 = vlaneseq
  %v480 = vshrl.u32 %v479, 7
  %v481 = vsub.s32 0, %v480
  %v482 = vrot.slane %v403, %v481
  %v483 = vlaneseq
  %v484 = vshrl.u32 %v483, 7
  %v485 = vsub.s32 0, %v484
  %v486 = vrot.slane %v405, %v485
  %v487 = vlaneseq
  %v488 = vshrl.u32 %v487, 7
  %v489 = vsub.s32 0, %v488
  %v490 = vrot.slane %v429, %v489
  %v491 = vlaneseq
  %v492 = vshrl.u32 %v491, 7
  %v493 = vsub.s32 0, %v492
  %v494 = vrot.slane %v443, %v493
  %v495 = vlaneseq
  %v496 = vshrl.u32 %v495, 7
  %v497 = vsub.s32 0, %v496
  %v498 = vrot.slane %v451, %v497
  %v499 = vlaneseq
  %v500 = vshrl.u32 %v499, 7
  %v501 = vsub.s32 0, %v500
  %v502 = vrot.slane %v453, %v501
  %v503 = vlaneseq
  %v504 = vshrl.u32 %v503, 7
  %v505 = vsub.s32 0, %v504
  %v506 = vrot.slane %v436, %v505
  %v507 = vlaneseq
  %v508 = vshrl.u32 %v507, 7
  %v509 = vsub.s32 0, %v508
  %v510 = vrot.slane %v450, %v509
  %v511 = vlaneseq
  %v512 = vshrl.u32 %v511, 7
  %v513 = vsub.s32 0, %v512
  %v514 = vrot.slane %v452, %v513
  %v515 = vlaneseq
  %v516 = vshrl.u32 %v515, 7
  %v517 = vsub.s32 0, %v516
  %v518 = vrot.slane %v454, %v517
  %v535 = vadd.f32 %v458, %v347
  %v536 = vadd.f32 %v462, %v347
  %v537 = vadd.f32 %v466, %v347
  %v538 = vadd.f32 %v470, %v347
  %v539 = vadd.f32 %v474, %v347
  %v540 = vadd.f32 %v478, %v347
  %v541 = vadd.f32 %v482, %v347
  %v542 = vadd.f32 %v486, %v347
  %v543 = vadd.f32 %v490, %v352
  %v544 = vadd.f32 %v494, %v352
  %v545 = vadd.f32 %v498, %v352
  %v546 = vadd.f32 %v502, %v352
  %v547 = vadd.f32 %v506, %v352
  %v548 = vadd.f32 %v510, %v352
  %v549 = vadd.f32 %v514, %v352
  %v550 = vadd.f32 %v518, %v352
  %v551 = vmax.f32 %v535, 0.0
  %v552 = vmax.f32 %v536, 0.0
  %v553 = vmax.f32 %v537, 0.0
  %v554 = vmax.f32 %v538, 0.0
  %v555 = vmax.f32 %v539, 0.0
  %v556 = vmax.f32 %v540, 0.0
  %v557 = vmax.f32 %v541, 0.0
  %v558 = vmax.f32 %v542, 0.0
  %v559 = vmax.f32 %v543, 0.0
  %v560 = vmax.f32 %v544, 0.0
  %v561 = vmax.f32 %v545, 0.0
  %v562 = vmax.f32 %v546, 0.0
  %v563 = vmax.f32 %v547, 0.0
  %v564 = vmax.f32 %v548, 0.0
  %v565 = vmax.f32 %v549, 0.0
  %v566 = vmax.f32 %v550, 0.0
  %568 = vset.pattern.permute.xlu0 0
  %569 = vperm.xlu0 %568, %v24
  %v570 = vpop.permute.xlu0 %569
  %573 = vset.pattern.permute.xlu0 0
  %574 = vperm.xlu0 %573, %v25
  %v575 = vpop.permute.xlu0 %574
  %578 = vset.pattern.permute.xlu0 0
  %579 = vperm.xlu0 %578, %v26
  %v580 = vpop.permute.xlu0 %579
  %583 = vset.pattern.permute.xlu0 0
  %584 = vperm.xlu0 %583, %v27
  %v585 = vpop.permute.xlu0 %584
  %588 = vset.pattern.permute.xlu0 0
  %589 = vperm.xlu0 %588, %v28
  %v590 = vpop.permute.xlu0 %589
  %593 = vset.pattern.permute.xlu0 0
  %594 = vperm.xlu0 %593, %v29
  %v595 = vpop.permute.xlu0 %594
  %598 = vset.pattern.permute.xlu0 0
  %599 = vperm.xlu0 %598, %v30
  %v600 = vpop.permute.xlu0 %599
  %603 = vset.pattern.permute.xlu0 0
  %604 = vperm.xlu0 %603, %v31
  %v605 = vpop.permute.xlu0 %604
  %608 = vset.pattern.permute.xlu0 0
  %609 = vperm.xlu0 %608, %v32
  %v610 = vpop.permute.xlu0 %609
  %613 = vset.pattern.permute.xlu0 0
  %614 = vperm.xlu0 %613, %v33
  %v615 = vpop.permute.xlu0 %614
  %618 = vset.pattern.permute.xlu0 0
  %619 = vperm.xlu0 %618, %v34
  %v620 = vpop.permute.xlu0 %619
  %623 = vset.pattern.permute.xlu0 0
  %624 = vperm.xlu0 %623, %v35
  %v625 = vpop.permute.xlu0 %624
  %628 = vset.pattern.permute.xlu0 0
  %629 = vperm.xlu0 %628, %v36
  %v630 = vpop.permute.xlu0 %629
  %633 = vset.pattern.permute.xlu0 0
  %634 = vperm.xlu0 %633, %v37
  %v635 = vpop.permute.xlu0 %634
  %638 = vset.pattern.permute.xlu0 0
  %639 = vperm.xlu0 %638, %v38
  %v640 = vpop.permute.xlu0 %639
  %643 = vset.pattern.permute.xlu0 0
  %644 = vperm.xlu0 %643, %v39
  %v645 = vpop.permute.xlu0 %644
  %v648 = vsel %vm101, %v551, 0
  %v651 = vsel %vm101, %v552, 0
  %v654 = vsel %vm101, %v553, 0
  %v657 = vsel %vm101, %v554, 0
  %v660 = vsel %vm101, %v555, 0
  %v663 = vsel %vm101, %v556, 0
  %v666 = vsel %vm101, %v557, 0
  %v669 = vsel %vm101, %v558, 0
  %v672 = vsel %vm101, %v559, 0
  %v675 = vsel %vm101, %v560, 0
  %v678 = vsel %vm101, %v561, 0
  %v681 = vsel %vm101, %v562, 0
  %v684 = vsel %vm101, %v563, 0
  %v687 = vsel %vm101, %v564, 0
  %v690 = vsel %vm101, %v565, 0
  %v693 = vsel %vm101, %v566, 0
  %695 = vmatprep.subr.mxu0 0.0
  %696 = vmatpush1.msra.mxu0 %v43
  %697 = vmatprep.subr.mxu0 0.0
  %698 = vmatpush1.msra.mxu0 %v49
  %699 = vmatprep.subr.mxu0 0.0
  %700 = vmatpush1.msra.mxu0 %v55
  %701 = vmatprep.subr.mxu0 0.0
  %702 = vmatpush1.msra.mxu0 %v61
  %703 = vmatprep.subr.mxu0 0.0
  %704 = vmatpush1.msra.mxu0 0.0
  %705 = vmatprep.subr.mxu0 0.0
  %706 = vmatpush1.msra.mxu0 0.0
  %707 = vmatprep.subr.mxu0 0.0
  %708 = vmatpush1.msra.mxu0 0.0
  %709 = vmatprep.subr.mxu0 0.0
  %710 = vmatpush1.msra.mxu0 0.0
  %711 = vmatprep.subr.mxu0 0.0
  %712 = vmatpush1.msra.mxu0 0.0
  %713 = vmatprep.subr.mxu0 0.0
  %714 = vmatpush1.msra.mxu0 0.0
  %715 = vmatprep.subr.mxu0 0.0
  %716 = vmatpush1.msra.mxu0 0.0
  %717 = vmatprep.subr.mxu0 0.0
  %718 = vmatpush1.msra.mxu0 0.0
  %719 = vmatprep.subr.mxu0 0.0
  %720 = vmatpush1.msra.mxu0 0.0
  %721 = vmatprep.subr.mxu0 0.0
  %722 = vmatpush1.msra.mxu0 0.0
  %723 = vmatprep.subr.mxu0 0.0
  %724 = vmatpush1.msra.mxu0 0.0
  %725 = vmatprep.subr.mxu0 0.0
  %726 = vmatpush1.msra.mxu0 0.0
  %727 = vmatprep.subr.mxu0 0.0
  %728 = vmatpush1.msra.mxu0 0.0
  %729 = vmatprep.subr.mxu0 0.0
  %730 = vmatpush1.msra.mxu0 0.0
  %731 = vmatprep.subr.mxu0 0.0
  %732 = vmatpush1.msra.mxu0 0.0
  %733 = vmatprep.subr.mxu0 0.0
  %734 = vmatpush1.msra.mxu0 0.0
  %735 = vmatprep.subr.mxu0 0.0
  %736 = vmatpush1.msra.mxu0 0.0
  %737 = vmatprep.subr.mxu0 0.0
  %738 = vmatpush1.msra.mxu0 0.0
  %739 = vmatprep.subr.mxu0 0.0
  %740 = vmatpush1.msra.mxu0 0.0
  %741 = vmatprep.subr.mxu0 0.0
  %742 = vmatpush1.msra.mxu0 0.0
  %743 = vmatprep.subr.mxu0 0.0
  %744 = vmatpush1.msra.mxu0 0.0
  %745 = vmatprep.subr.mxu0 0.0
  %746 = vmatpush1.msra.mxu0 0.0
  %747 = vmatprep.subr.mxu0 0.0
  %748 = vmatpush1.msra.mxu0 0.0
  %749 = vmatprep.subr.mxu0 0.0
  %750 = vmatpush1.msra.mxu0 0.0
  %751 = vmatprep.subr.mxu0 0.0
  %752 = vmatpush1.msra.mxu0 0.0
  %753 = vmatprep.subr.mxu0 0.0
  %754 = vmatpush1.msra.mxu0 0.0
  %755 = vmatprep.subr.mxu0 0.0
  %756 = vmatpush1.msra.mxu0 0.0
  %757 = vmatprep.subr.mxu0 0.0
  %758 = vmatpush1.msra.mxu0 0.0
  %759 = vmatprep.mubr.f32.mxu0 0.0
  %760 = vmatmul.mubr.f32.gmra.mrb[0].mxu0 %v648
  %v761 = vpop.f32.mrb[0].mxu0
  %v762 = vadd.f32 %v570, %v761
  %v763 = vpop.f32.mrb[0].mxu0
  %764 = vmatprep.mubr.f32.mxu0 0.0
  %765 = vmatmul.mubr.f32.gmra.mrb[0].mxu0 %v651
  %v766 = vpop.f32.mrb[0].mxu0
  %v767 = vadd.f32 %v575, %v766
  %v768 = vpop.f32.mrb[0].mxu0
  %769 = vmatprep.mubr.f32.mxu0 0.0
  %770 = vmatmul.mubr.f32.gmra.mrb[0].mxu0 %v654
  %v771 = vpop.f32.mrb[0].mxu0
  %v772 = vadd.f32 %v580, %v771
  %v773 = vpop.f32.mrb[0].mxu0
  %774 = vmatprep.mubr.f32.mxu0 0.0
  %775 = vmatmul.mubr.f32.gmra.mrb[0].mxu0 %v657
  %v776 = vpop.f32.mrb[0].mxu0
  %v777 = vadd.f32 %v585, %v776
  %v778 = vpop.f32.mrb[0].mxu0
  %779 = vmatprep.mubr.f32.mxu0 0.0
  %780 = vmatmul.mubr.f32.gmra.mrb[0].mxu0 %v660
  %v781 = vpop.f32.mrb[0].mxu0
  %v782 = vadd.f32 %v590, %v781
  %v783 = vpop.f32.mrb[0].mxu0
  %784 = vmatprep.mubr.f32.mxu0 0.0
  %785 = vmatmul.mubr.f32.gmra.mrb[0].mxu0 %v663
  %v786 = vpop.f32.mrb[0].mxu0
  %v787 = vadd.f32 %v595, %v786
  %v788 = vpop.f32.mrb[0].mxu0
  %789 = vmatprep.mubr.f32.mxu0 0.0
  %790 = vmatmul.mubr.f32.gmra.mrb[0].mxu0 %v666
  %v791 = vpop.f32.mrb[0].mxu0
  %v792 = vadd.f32 %v600, %v791
  %v793 = vpop.f32.mrb[0].mxu0
  %794 = vmatprep.mubr.f32.mxu0 0.0
  %795 = vmatmul.mubr.f32.gmra.mrb[0].mxu0 %v669
  %v796 = vpop.f32.mrb[0].mxu0
  %v797 = vadd.f32 %v605, %v796
  %v798 = vpop.f32.mrb[0].mxu0
  %799 = vmatprep.mubr.f32.mxu0 0.0
  %800 = vmatmul.mubr.f32.gmra.mrb[0].mxu0 %v672
  %v801 = vpop.f32.mrb[0].mxu0
  %v802 = vadd.f32 %v610, %v801
  %v803 = vpop.f32.mrb[0].mxu0
  %804 = vmatprep.mubr.f32.mxu0 0.0
  %805 = vmatmul.mubr.f32.gmra.mrb[0].mxu0 %v675
  %v806 = vpop.f32.mrb[0].mxu0
  %v807 = vadd.f32 %v615, %v806
  %v808 = vpop.f32.mrb[0].mxu0
  %809 = vmatprep.mubr.f32.mxu0 0.0
  %810 = vmatmul.mubr.f32.gmra.mrb[0].mxu0 %v678
  %v811 = vpop.f32.mrb[0].mxu0
  %v812 = vadd.f32 %v620, %v811
  %v813 = vpop.f32.mrb[0].mxu0
  %814 = vmatprep.mubr.f32.mxu0 0.0
  %815 = vmatmul.mubr.f32.gmra.mrb[0].mxu0 %v681
  %v816 = vpop.f32.mrb[0].mxu0
  %v817 = vadd.f32 %v625, %v816
  %v818 = vpop.f32.mrb[0].mxu0
  %819 = vmatprep.mubr.f32.mxu0 0.0
  %820 = vmatmul.mubr.f32.gmra.mrb[0].mxu0 %v684
  %v821 = vpop.f32.mrb[0].mxu0
  %v822 = vadd.f32 %v630, %v821
  %v823 = vpop.f32.mrb[0].mxu0
  %824 = vmatprep.mubr.f32.mxu0 0.0
  %825 = vmatmul.mubr.f32.gmra.mrb[0].mxu0 %v687
  %v826 = vpop.f32.mrb[0].mxu0
  %v827 = vadd.f32 %v635, %v826
  %v828 = vpop.f32.mrb[0].mxu0
  %829 = vmatprep.mubr.f32.mxu0 0.0
  %830 = vmatmul.mubr.f32.gmra.mrb[0].mxu0 %v690
  %v831 = vpop.f32.mrb[0].mxu0
  %v832 = vadd.f32 %v640, %v831
  %v833 = vpop.f32.mrb[0].mxu0
  %834 = vmatprep.mubr.f32.mxu0 0.0
  %835 = vmatmul.mubr.f32.gmra.mrb[0].mxu0 %v693
  %v836 = vpop.f32.mrb[0].mxu0
  %v837 = vadd.f32 %v645, %v836
  %v838 = vpop.f32.mrb[0].mxu0
  %839 = vdwg.mxu0
  %v840 = vrot.slane %v762, 4
  %v841 = vmax.f32 %v762, %v840
  %v842 = vrot.slane %v841, 2
  %v843 = vmax.f32 %v841, %v842
  %v844 = vrot.slane %v843, 1
  %v845 = vmax.f32 %v843, %v844
  %v846 = vrot.slane %v767, 4
  %v847 = vmax.f32 %v767, %v846
  %v848 = vrot.slane %v847, 2
  %v849 = vmax.f32 %v847, %v848
  %v850 = vrot.slane %v849, 1
  %v851 = vmax.f32 %v849, %v850
  %v852 = vrot.slane %v772, 4
  %v853 = vmax.f32 %v772, %v852
  %v854 = vrot.slane %v853, 2
  %v855 = vmax.f32 %v853, %v854
  %v856 = vrot.slane %v855, 1
  %v857 = vmax.f32 %v855, %v856
  %v858 = vrot.slane %v777, 4
  %v859 = vmax.f32 %v777, %v858
  %v860 = vrot.slane %v859, 2
  %v861 = vmax.f32 %v859, %v860
  %v862 = vrot.slane %v861, 1
  %v863 = vmax.f32 %v861, %v862
  %v864 = vrot.slane %v782, 4
  %v865 = vmax.f32 %v782, %v864
  %v866 = vrot.slane %v865, 2
  %v867 = vmax.f32 %v865, %v866
  %v868 = vrot.slane %v867, 1
  %v869 = vmax.f32 %v867, %v868
  %v870 = vrot.slane %v787, 4
  %v871 = vmax.f32 %v787, %v870
  %v872 = vrot.slane %v871, 2
  %v873 = vmax.f32 %v871, %v872
  %v874 = vrot.slane %v873, 1
  %v875 = vmax.f32 %v873, %v874
  %v876 = vrot.slane %v792, 4
  %v877 = vmax.f32 %v792, %v876
  %v878 = vrot.slane %v877, 2
  %v879 = vmax.f32 %v877, %v878
  %v880 = vrot.slane %v879, 1
  %v881 = vmax.f32 %v879, %v880
  %v882 = vrot.slane %v797, 4
  %v883 = vmax.f32 %v797, %v882
  %v884 = vrot.slane %v883, 2
  %v885 = vmax.f32 %v883, %v884
  %v886 = vrot.slane %v885, 1
  %v887 = vmax.f32 %v885, %v886
  %v888 = vrot.slane %v802, 4
  %v889 = vmax.f32 %v802, %v888
  %v890 = vrot.slane %v889, 2
  %v891 = vmax.f32 %v889, %v890
  %v892 = vrot.slane %v891, 1
  %v893 = vmax.f32 %v891, %v892
  %v894 = vrot.slane %v807, 4
  %v895 = vmax.f32 %v807, %v894
  %v896 = vrot.slane %v895, 2
  %v897 = vmax.f32 %v895, %v896
  %v898 = vrot.slane %v897, 1
  %v899 = vmax.f32 %v897, %v898
  %v900 = vrot.slane %v812, 4
  %v901 = vmax.f32 %v812, %v900
  %v902 = vrot.slane %v901, 2
  %v903 = vmax.f32 %v901, %v902
  %v904 = vrot.slane %v903, 1
  %v905 = vmax.f32 %v903, %v904
  %v906 = vrot.slane %v817, 4
  %v907 = vmax.f32 %v817, %v906
  %v908 = vrot.slane %v907, 2
  %v909 = vmax.f32 %v907, %v908
  %v910 = vrot.slane %v909, 1
  %v911 = vmax.f32 %v909, %v910
  %v912 = vrot.slane %v822, 4
  %v913 = vmax.f32 %v822, %v912
  %v914 = vrot.slane %v913, 2
  %v915 = vmax.f32 %v913, %v914
  %v916 = vrot.slane %v915, 1
  %v917 = vmax.f32 %v915, %v916
  %v918 = vrot.slane %v827, 4
  %v919 = vmax.f32 %v827, %v918
  %v920 = vrot.slane %v919, 2
  %v921 = vmax.f32 %v919, %v920
  %v922 = vrot.slane %v921, 1
  %v923 = vmax.f32 %v921, %v922
  %v924 = vrot.slane %v832, 4
  %v925 = vmax.f32 %v832, %v924
  %v926 = vrot.slane %v925, 2
  %v927 = vmax.f32 %v925, %v926
  %v928 = vrot.slane %v927, 1
  %v929 = vmax.f32 %v927, %v928
  %v930 = vrot.slane %v837, 4
  %v931 = vmax.f32 %v837, %v930
  %v932 = vrot.slane %v931, 2
  %v933 = vmax.f32 %v931, %v932
  %v934 = vrot.slane %v933, 1
  %v935 = vmax.f32 %v933, %v934
  %v936 = vlaneseq
  %v937 = vshrl.u32 %v936, 7
  %v938 = vsub.s32 2, %v937
  %v939 = vrot.slane %v96, %v938
  %v940 = vadd.f32 %v845, %v939
  %v941 = vadd.f32 %v851, %v939
  %v942 = vadd.f32 %v857, %v939
  %v943 = vadd.f32 %v863, %v939
  %v944 = vadd.f32 %v869, %v939
  %v945 = vadd.f32 %v875, %v939
  %v946 = vadd.f32 %v881, %v939
  %v947 = vadd.f32 %v887, %v939
  %v948 = vadd.f32 %v893, %v939
  %v949 = vadd.f32 %v899, %v939
  %v950 = vadd.f32 %v905, %v939
  %v951 = vadd.f32 %v911, %v939
  %v952 = vadd.f32 %v917, %v939
  %v953 = vadd.f32 %v923, %v939
  %v954 = vadd.f32 %v929, %v939
  %v955 = vadd.f32 %v935, %v939
  %v956 = vxor.u32 %v940, 2147483648
  %v957 = vxor.u32 %v941, 2147483648
  %v958 = vxor.u32 %v942, 2147483648
  %v959 = vxor.u32 %v943, 2147483648
  %v960 = vxor.u32 %v944, 2147483648
  %v961 = vxor.u32 %v945, 2147483648
  %v962 = vxor.u32 %v946, 2147483648
  %v963 = vxor.u32 %v947, 2147483648
  %v964 = vxor.u32 %v948, 2147483648
  %v965 = vxor.u32 %v949, 2147483648
  %v966 = vxor.u32 %v950, 2147483648
  %v967 = vxor.u32 %v951, 2147483648
  %v968 = vxor.u32 %v952, 2147483648
  %v969 = vxor.u32 %v953, 2147483648
  %v970 = vxor.u32 %v954, 2147483648
  %v971 = vxor.u32 %v955, 2147483648
  %v972 = vmul.f32 %v956, 1.442695
  %v973 = vpow.pop %v972
  %v974 = vmul.f32 %v957, 1.442695
  %v975 = vpow.pop %v974
  %v976 = vmul.f32 %v958, 1.442695
  %v977 = vpow.pop %v976
  %v978 = vmul.f32 %v959, 1.442695
  %v979 = vpow.pop %v978
  %v980 = vmul.f32 %v960, 1.442695
  %v981 = vpow.pop %v980
  %v982 = vmul.f32 %v961, 1.442695
  %v983 = vpow.pop %v982
  %v984 = vmul.f32 %v962, 1.442695
  %v985 = vpow.pop %v984
  %v986 = vmul.f32 %v963, 1.442695
  %v987 = vpow.pop %v986
  %v988 = vmul.f32 %v964, 1.442695
  %v989 = vpow.pop %v988
  %v990 = vmul.f32 %v965, 1.442695
  %v991 = vpow.pop %v990
  %v992 = vmul.f32 %v966, 1.442695
  %v993 = vpow.pop %v992
  %v994 = vmul.f32 %v967, 1.442695
  %v995 = vpow.pop %v994
  %v996 = vmul.f32 %v968, 1.442695
  %v997 = vpow.pop %v996
  %v998 = vmul.f32 %v969, 1.442695
  %v999 = vpow.pop %v998
  %v1000 = vmul.f32 %v970, 1.442695
  %v1001 = vpow.pop %v1000
  %v1002 = vmul.f32 %v971, 1.442695
  %v1003 = vpow.pop %v1002
  %v1004 = vadd.f32 %v973, 1.0
  %v1005 = vadd.f32 %v975, 1.0
  %v1006 = vadd.f32 %v977, 1.0
  %v1007 = vadd.f32 %v979, 1.0
  %v1008 = vadd.f32 %v981, 1.0
  %v1009 = vadd.f32 %v983, 1.0
  %v1010 = vadd.f32 %v985, 1.0
  %v1011 = vadd.f32 %v987, 1.0
  %v1012 = vadd.f32 %v989, 1.0
  %v1013 = vadd.f32 %v991, 1.0
  %v1014 = vadd.f32 %v993, 1.0
  %v1015 = vadd.f32 %v995, 1.0
  %v1016 = vadd.f32 %v997, 1.0
  %v1017 = vadd.f32 %v999, 1.0
  %v1018 = vadd.f32 %v1001, 1.0
  %v1019 = vadd.f32 %v1003, 1.0
  %v1020 = vrcp.pop %v1004
  %v1021 = vmul.f32 1.0, %v1020
  %v1022 = vrcp.pop %v1005
  %v1023 = vmul.f32 1.0, %v1022
  %v1024 = vrcp.pop %v1006
  %v1025 = vmul.f32 1.0, %v1024
  %v1026 = vrcp.pop %v1007
  %v1027 = vmul.f32 1.0, %v1026
  %v1028 = vrcp.pop %v1008
  %v1029 = vmul.f32 1.0, %v1028
  %v1030 = vrcp.pop %v1009
  %v1031 = vmul.f32 1.0, %v1030
  %v1032 = vrcp.pop %v1010
  %v1033 = vmul.f32 1.0, %v1032
  %v1034 = vrcp.pop %v1011
  %v1035 = vmul.f32 1.0, %v1034
  %v1036 = vrcp.pop %v1012
  %v1037 = vmul.f32 1.0, %v1036
  %v1038 = vrcp.pop %v1013
  %v1039 = vmul.f32 1.0, %v1038
  %v1040 = vrcp.pop %v1014
  %v1041 = vmul.f32 1.0, %v1040
  %v1042 = vrcp.pop %v1015
  %v1043 = vmul.f32 1.0, %v1042
  %v1044 = vrcp.pop %v1016
  %v1045 = vmul.f32 1.0, %v1044
  %v1046 = vrcp.pop %v1017
  %v1047 = vmul.f32 1.0, %v1046
  %v1048 = vrcp.pop %v1018
  %v1049 = vmul.f32 1.0, %v1048
  %v1050 = vrcp.pop %v1019
  %v1051 = vmul.f32 1.0, %v1050
  %v1052 = vlaneseq
  %v1053 = vshrl.u32 %v1052, 7
  %v1054 = vsub.s32 3, %v1053
  %v1055 = vrot.slane %v96, %v1054
  %1056 = vmatprep.subr.mxu0 0.0
  %1057 = vmatpush1.msra.mxu0 %v64
  %1058 = vmatprep.subr.mxu0 0.0
  %1059 = vmatpush1.msra.mxu0 %v66
  %1060 = vmatprep.subr.mxu0 0.0
  %1061 = vmatpush1.msra.mxu0 %v68
  %1062 = vmatprep.subr.mxu0 0.0
  %1063 = vmatpush1.msra.mxu0 %v70
  %1064 = vmatprep.subr.mxu0 0.0
  %1065 = vmatpush1.msra.mxu0 %v72
  %1066 = vmatprep.subr.mxu0 0.0
  %1067 = vmatpush1.msra.mxu0 %v74
  %1068 = vmatprep.subr.mxu0 0.0
  %1069 = vmatpush1.msra.mxu0 %v76
  %1070 = vmatprep.subr.mxu0 0.0
  %1071 = vmatpush1.msra.mxu0 %v78
  %1072 = vmatprep.subr.mxu0 0.0
  %1073 = vmatpush1.msra.mxu0 %v80
  %1074 = vmatprep.subr.mxu0 0.0
  %1075 = vmatpush1.msra.mxu0 %v82
  %1076 = vmatprep.subr.mxu0 0.0
  %1077 = vmatpush1.msra.mxu0 %v84
  %1078 = vmatprep.subr.mxu0 0.0
  %1079 = vmatpush1.msra.mxu0 %v86
  %1080 = vmatprep.subr.mxu0 0.0
  %1081 = vmatpush1.msra.mxu0 %v88
  %1082 = vmatprep.subr.mxu0 0.0
  %1083 = vmatpush1.msra.mxu0 %v90
  %1084 = vmatprep.subr.mxu0 0.0
  %1085 = vmatpush1.msra.mxu0 %v92
  %1086 = vmatprep.subr.mxu0 0.0
  %1087 = vmatpush1.msra.mxu0 %v94
  %1088 = vmatprep.subr.mxu0 0.0
  %1089 = vmatpush1.msra.mxu0 0.0
  %1090 = vmatprep.subr.mxu0 0.0
  %1091 = vmatpush1.msra.mxu0 0.0
  %1092 = vmatprep.subr.mxu0 0.0
  %1093 = vmatpush1.msra.mxu0 0.0
  %1094 = vmatprep.subr.mxu0 0.0
  %1095 = vmatpush1.msra.mxu0 0.0
  %1096 = vmatprep.subr.mxu0 0.0
  %1097 = vmatpush1.msra.mxu0 0.0
  %1098 = vmatprep.subr.mxu0 0.0
  %1099 = vmatpush1.msra.mxu0 0.0
  %1100 = vmatprep.subr.mxu0 0.0
  %1101 = vmatpush1.msra.mxu0 0.0
  %1102 = vmatprep.subr.mxu0 0.0
  %1103 = vmatpush1.msra.mxu0 0.0
  %1104 = vmatprep.subr.mxu0 0.0
  %1105 = vmatpush1.msra.mxu0 0.0
  %1106 = vmatprep.subr.mxu0 0.0
  %1107 = vmatpush1.msra.mxu0 0.0
  %1108 = vmatprep.subr.mxu0 0.0
  %1109 = vmatpush1.msra.mxu0 0.0
  %1110 = vmatprep.subr.mxu0 0.0
  %1111 = vmatpush1.msra.mxu0 0.0
  %1112 = vmatprep.subr.mxu0 0.0
  %1113 = vmatpush1.msra.mxu0 0.0
  %1114 = vmatprep.subr.mxu0 0.0
  %1115 = vmatpush1.msra.mxu0 0.0
  %1116 = vmatprep.subr.mxu0 0.0
  %1117 = vmatpush1.msra.mxu0 0.0
  %1118 = vmatprep.subr.mxu0 0.0
  %1119 = vmatpush1.msra.mxu0 0.0
  %1120 = vmatprep.mubr.f32.mxu0 0.0
  %1121 = vmatmul.mubr.f32.gmra.mrb[0].mxu0 %v198
  %v1122 = vpop.f32.mrb[0].mxu0
  %v1123 = vadd.f32 %v1055, %v1122
  %v1124 = vpop.f32.mrb[0].mxu0
  %1125 = vmatprep.mubr.f32.mxu0 0.0
  %1126 = vmatmul.mubr.f32.gmra.mrb[0].mxu0 %v200
  %v1127 = vpop.f32.mrb[0].mxu0
  %v1128 = vadd.f32 %v1055, %v1127
  %v1129 = vpop.f32.mrb[0].mxu0
  %1130 = vdwg.mxu0
  %v1131 = vlaneseq
  %v1132 = vshrl.u32 %v1131, 7
  %v1133 = vsub.s32 4, %v1132
  %v1134 = vrot.slane %v96, %v1133
  %1135 = vmatprep.subr.mxu0 0.0
  %1136 = vmatpush1.msra.mxu0 %v44
  %1137 = vmatprep.subr.mxu0 0.0
  %1138 = vmatpush1.msra.mxu0 %v50
  %1139 = vmatprep.subr.mxu0 0.0
  %1140 = vmatpush1.msra.mxu0 %v56
  %1141 = vmatprep.subr.mxu0 0.0
  %1142 = vmatpush1.msra.mxu0 %v62
  %1143 = vmatprep.subr.mxu0 0.0
  %1144 = vmatpush1.msra.mxu0 0.0
  %1145 = vmatprep.subr.mxu0 0.0
  %1146 = vmatpush1.msra.mxu0 0.0
  %1147 = vmatprep.subr.mxu0 0.0
  %1148 = vmatpush1.msra.mxu0 0.0
  %1149 = vmatprep.subr.mxu0 0.0
  %1150 = vmatpush1.msra.mxu0 0.0
  %1151 = vmatprep.subr.mxu0 0.0
  %1152 = vmatpush1.msra.mxu0 0.0
  %1153 = vmatprep.subr.mxu0 0.0
  %1154 = vmatpush1.msra.mxu0 0.0
  %1155 = vmatprep.subr.mxu0 0.0
  %1156 = vmatpush1.msra.mxu0 0.0
  %1157 = vmatprep.subr.mxu0 0.0
  %1158 = vmatpush1.msra.mxu0 0.0
  %1159 = vmatprep.subr.mxu0 0.0
  %1160 = vmatpush1.msra.mxu0 0.0
  %1161 = vmatprep.subr.mxu0 0.0
  %1162 = vmatpush1.msra.mxu0 0.0
  %1163 = vmatprep.subr.mxu0 0.0
  %1164 = vmatpush1.msra.mxu0 0.0
  %1165 = vmatprep.subr.mxu0 0.0
  %1166 = vmatpush1.msra.mxu0 0.0
  %1167 = vmatprep.subr.mxu0 0.0
  %1168 = vmatpush1.msra.mxu0 0.0
  %1169 = vmatprep.subr.mxu0 0.0
  %1170 = vmatpush1.msra.mxu0 0.0
  %1171 = vmatprep.subr.mxu0 0.0
  %1172 = vmatpush1.msra.mxu0 0.0
  %1173 = vmatprep.subr.mxu0 0.0
  %1174 = vmatpush1.msra.mxu0 0.0
  %1175 = vmatprep.subr.mxu0 0.0
  %1176 = vmatpush1.msra.mxu0 0.0
  %1177 = vmatprep.subr.mxu0 0.0
  %1178 = vmatpush1.msra.mxu0 0.0
  %1179 = vmatprep.subr.mxu0 0.0
  %1180 = vmatpush1.msra.mxu0 0.0
  %1181 = vmatprep.subr.mxu0 0.0
  %1182 = vmatpush1.msra.mxu0 0.0
  %1183 = vmatprep.subr.mxu0 0.0
  %1184 = vmatpush1.msra.mxu0 0.0
  %1185 = vmatprep.subr.mxu0 0.0
  %1186 = vmatpush1.msra.mxu0 0.0
  %1187 = vmatprep.subr.mxu0 0.0
  %1188 = vmatpush1.msra.mxu0 0.0
  %1189 = vmatprep.subr.mxu0 0.0
  %1190 = vmatpush1.msra.mxu0 0.0
  %1191 = vmatprep.subr.mxu0 0.0
  %1192 = vmatpush1.msra.mxu0 0.0
  %1193 = vmatprep.subr.mxu0 0.0
  %1194 = vmatpush1.msra.mxu0 0.0
  %1195 = vmatprep.subr.mxu0 0.0
  %1196 = vmatpush1.msra.mxu0 0.0
  %1197 = vmatprep.subr.mxu0 0.0
  %1198 = vmatpush1.msra.mxu0 0.0
  %1199 = vmatprep.mubr.f32.mxu0 0.0
  %1200 = vmatmul.mubr.f32.gmra.mrb[0].mxu0 %v103
  %v1201 = vpop.f32.mrb[0].mxu0
  %v1202 = vadd.f32 %v1134, %v1201
  %v1203 = vpop.f32.mrb[0].mxu0
  %1204 = vmatprep.mubr.f32.mxu0 0.0
  %1205 = vmatmul.mubr.f32.gmra.mrb[0].mxu0 %v106
  %v1206 = vpop.f32.mrb[0].mxu0
  %v1207 = vadd.f32 %v1134, %v1206
  %v1208 = vpop.f32.mrb[0].mxu0
  %1209 = vdwg.mxu0
  %v1210 = vadd.f32 %v1123, %v1202
  %v1211 = vadd.f32 %v1128, %v1207
  %v1212 = vxor.u32 %v1210, 2147483648
  %v1213 = vxor.u32 %v1211, 2147483648
  %v1214 = vmul.f32 %v1212, 1.442695
  %v1215 = vpow.pop %v1214
  %v1216 = vmul.f32 %v1213, 1.442695
  %v1217 = vpow.pop %v1216
  %v1218 = vadd.f32 %v1215, 1.0
  %v1219 = vadd.f32 %v1217, 1.0
  %v1220 = vrcp.pop %v1218
  %v1221 = vmul.f32 1.0, %v1220
  %v1222 = vrcp.pop %v1219
  %v1223 = vmul.f32 1.0, %v1222
  %1226 = vrot.lane.b32.xlu0 %v1202, 64
  %v1227 = vpop.permute.xlu0 %1226
  %1228 = vrot.lane.b32.xlu0 %v1207, 64
  %v1229 = vpop.permute.xlu0 %1228
  %v1232 = vmul.f32 %v1221, %v1227
  %v1233 = vmul.f32 %v1223, %v1229
  %1236 = vrot.lane.b32.xlu0 %v1232, 64
  %v1237 = vpop.permute.xlu0 %1236
  %1238 = vrot.lane.b32.xlu0 %v1233, 64
  %v1239 = vpop.permute.xlu0 %1238
  %v1242 = vadd.f32 %v1123, %v1237
  %v1243 = vadd.f32 %v1128, %v1239
  %v1244 = vtanh.pop %v1242
  %v1245 = vtanh.pop %v1243
  %v1246 = vsub.f32 1.0, %v1221
  %v1247 = vsub.f32 1.0, %v1223
  %1250 = vrot.lane.b32.xlu0 %v1244, 96
  %v1251 = vpop.permute.xlu0 %1250
  %1252 = vrot.lane.b32.xlu0 %v1245, 96
  %v1253 = vpop.permute.xlu0 %1252
  %v1256 = vmul.f32 %v1246, %v1251
  %v1257 = vmul.f32 %v1247, %v1253
  %1258 = vrot.lane.b32.xlu0 %v22, 32
  %v1259 = vpop.permute.xlu0 %1258
  %1260 = vrot.lane.b32.xlu0 %v23, 32
  %v1261 = vpop.permute.xlu0 %1260
  %v1264 = vmul.f32 %v1221, %v1259
  %v1265 = vmul.f32 %v1223, %v1261
  %v1266 = vadd.f32 %v1256, %v1264
  %v1267 = vadd.f32 %v1257, %v1265
  %v1268 = vlaneseq
  %v1269 = vshrl.u32 %v1268, 7
  %v1270 = vsub.s32 5, %v1269
  %v1271 = vrot.slane %v96, %v1270
  %v1288 = vrot.slane %v1023, 7
  %vm1289 = vcmask 1041409
  %v1290 = vsel %vm1289, %v1288, %v1021
  %v1291 = vrot.slane %v1025, 6
  %vm1292 = vcmask 1042434
  %v1293 = vsel %vm1292, %v1291, %v1290
  %v1294 = vrot.slane %v1027, 5
  %vm1295 = vcmask 1043459
  %v1296 = vsel %vm1295, %v1294, %v1293
  %v1297 = vrot.slane %v1029, 4
  %vm1298 = vcmask 1044484
  %v1299 = vsel %vm1298, %v1297, %v1296
  %v1300 = vrot.slane %v1031, 3
  %vm1301 = vcmask 1045509
  %v1302 = vsel %vm1301, %v1300, %v1299
  %v1303 = vrot.slane %v1033, 2
  %vm1304 = vcmask 1046534
  %v1305 = vsel %vm1304, %v1303, %v1302
  %v1306 = vrot.slane %v1035, 1
  %vm1307 = vcmask 1047559
  %v1308 = vsel %vm1307, %v1306, %v1305
  %v1309 = vrot.slane %v1039, 7
  %v1310 = vsel %vm1289, %v1309, %v1037
  %v1311 = vrot.slane %v1041, 6
  %v1312 = vsel %vm1292, %v1311, %v1310
  %v1313 = vrot.slane %v1043, 5
  %v1314 = vsel %vm1295, %v1313, %v1312
  %v1315 = vrot.slane %v1045, 4
  %v1316 = vsel %vm1298, %v1315, %v1314
  %v1317 = vrot.slane %v1047, 3
  %v1318 = vsel %vm1301, %v1317, %v1316
  %v1319 = vrot.slane %v1049, 2
  %v1320 = vsel %vm1304, %v1319, %v1318
  %v1321 = vrot.slane %v1051, 1
  %v1322 = vsel %vm1307, %v1321, %v1320
  %1325 = vmatprep.subr.mxu0 0.0
  %1326 = vmatpush1.msra.mxu0 %v65
  %1327 = vmatprep.subr.mxu0 0.0
  %1328 = vmatpush1.msra.mxu0 %v67
  %1329 = vmatprep.subr.mxu0 0.0
  %1330 = vmatpush1.msra.mxu0 %v69
  %1331 = vmatprep.subr.mxu0 0.0
  %1332 = vmatpush1.msra.mxu0 %v71
  %1333 = vmatprep.subr.mxu0 0.0
  %1334 = vmatpush1.msra.mxu0 %v73
  %1335 = vmatprep.subr.mxu0 0.0
  %1336 = vmatpush1.msra.mxu0 %v75
  %1337 = vmatprep.subr.mxu0 0.0
  %1338 = vmatpush1.msra.mxu0 %v77
  %1339 = vmatprep.subr.mxu0 0.0
  %1340 = vmatpush1.msra.mxu0 %v79
  %1341 = vmatprep.subr.mxu0 0.0
  %1342 = vmatpush1.msra.mxu0 %v81
  %1343 = vmatprep.subr.mxu0 0.0
  %1344 = vmatpush1.msra.mxu0 %v83
  %1345 = vmatprep.subr.mxu0 0.0
  %1346 = vmatpush1.msra.mxu0 %v85
  %1347 = vmatprep.subr.mxu0 0.0
  %1348 = vmatpush1.msra.mxu0 %v87
  %1349 = vmatprep.subr.mxu0 0.0
  %1350 = vmatpush1.msra.mxu0 %v89
  %1351 = vmatprep.subr.mxu0 0.0
  %1352 = vmatpush1.msra.mxu0 %v91
  %1353 = vmatprep.subr.mxu0 0.0
  %1354 = vmatpush1.msra.mxu0 %v93
  %1355 = vmatprep.subr.mxu0 0.0
  %1356 = vmatpush1.msra.mxu0 %v95
  %1357 = vmatprep.subr.mxu0 0.0
  %1358 = vmatpush1.msra.mxu0 0.0
  %1359 = vmatprep.subr.mxu0 0.0
  %1360 = vmatpush1.msra.mxu0 0.0
  %1361 = vmatprep.subr.mxu0 0.0
  %1362 = vmatpush1.msra.mxu0 0.0
  %1363 = vmatprep.subr.mxu0 0.0
  %1364 = vmatpush1.msra.mxu0 0.0
  %1365 = vmatprep.subr.mxu0 0.0
  %1366 = vmatpush1.msra.mxu0 0.0
  %1367 = vmatprep.subr.mxu0 0.0
  %1368 = vmatpush1.msra.mxu0 0.0
  %1369 = vmatprep.subr.mxu0 0.0
  %1370 = vmatpush1.msra.mxu0 0.0
  %1371 = vmatprep.subr.mxu0 0.0
  %1372 = vmatpush1.msra.mxu0 0.0
  %1373 = vmatprep.subr.mxu0 0.0
  %1374 = vmatpush1.msra.mxu0 0.0
  %1375 = vmatprep.subr.mxu0 0.0
  %1376 = vmatpush1.msra.mxu0 0.0
  %1377 = vmatprep.subr.mxu0 0.0
  %1378 = vmatpush1.msra.mxu0 0.0
  %1379 = vmatprep.subr.mxu0 0.0
  %1380 = vmatpush1.msra.mxu0 0.0
  %1381 = vmatprep.subr.mxu0 0.0
  %1382 = vmatpush1.msra.mxu0 0.0
  %1383 = vmatprep.subr.mxu0 0.0
  %1384 = vmatpush1.msra.mxu0 0.0
  %1385 = vmatprep.subr.mxu0 0.0
  %1386 = vmatpush1.msra.mxu0 0.0
  %1387 = vmatprep.subr.mxu0 0.0
  %1388 = vmatpush1.msra.mxu0 0.0
  %1389 = vmatprep.mubr.f32.mxu0 0.0
  %1390 = vmatmul.mubr.f32.gmra.mrb[0].mxu0 %v1308
  %v1391 = vpop.f32.mrb[0].mxu0
  %v1392 = vadd.f32 %v1271, %v1391
  %v1393 = vpop.f32.mrb[0].mxu0
  %1394 = vmatprep.mubr.f32.mxu0 0.0
  %1395 = vmatmul.mubr.f32.gmra.mrb[0].mxu0 %v1322
  %v1396 = vpop.f32.mrb[0].mxu0
  %v1397 = vadd.f32 %v1271, %v1396
  %v1398 = vpop.f32.mrb[0].mxu0
  %1399 = vdwg.mxu0
  %v1400 = vlaneseq
  %v1401 = vshrl.u32 %v1400, 7
  %v1402 = vsub.s32 6, %v1401
  %v1403 = vrot.slane %v96, %v1402
  %1404 = vmatprep.subr.mxu0 0.0
  %1405 = vmatpush1.msra.mxu0 %v45
  %1406 = vmatprep.subr.mxu0 0.0
  %1407 = vmatpush1.msra.mxu0 %v51
  %1408 = vmatprep.subr.mxu0 0.0
  %1409 = vmatpush1.msra.mxu0 %v57
  %1410 = vmatprep.subr.mxu0 0.0
  %1411 = vmatpush1.msra.mxu0 %v63
  %1412 = vmatprep.subr.mxu0 0.0
  %1413 = vmatpush1.msra.mxu0 0.0
  %1414 = vmatprep.subr.mxu0 0.0
  %1415 = vmatpush1.msra.mxu0 0.0
  %1416 = vmatprep.subr.mxu0 0.0
  %1417 = vmatpush1.msra.mxu0 0.0
  %1418 = vmatprep.subr.mxu0 0.0
  %1419 = vmatpush1.msra.mxu0 0.0
  %1420 = vmatprep.subr.mxu0 0.0
  %1421 = vmatpush1.msra.mxu0 0.0
  %1422 = vmatprep.subr.mxu0 0.0
  %1423 = vmatpush1.msra.mxu0 0.0
  %1424 = vmatprep.subr.mxu0 0.0
  %1425 = vmatpush1.msra.mxu0 0.0
  %1426 = vmatprep.subr.mxu0 0.0
  %1427 = vmatpush1.msra.mxu0 0.0
  %1428 = vmatprep.subr.mxu0 0.0
  %1429 = vmatpush1.msra.mxu0 0.0
  %1430 = vmatprep.subr.mxu0 0.0
  %1431 = vmatpush1.msra.mxu0 0.0
  %1432 = vmatprep.subr.mxu0 0.0
  %1433 = vmatpush1.msra.mxu0 0.0
  %1434 = vmatprep.subr.mxu0 0.0
  %1435 = vmatpush1.msra.mxu0 0.0
  %1436 = vmatprep.subr.mxu0 0.0
  %1437 = vmatpush1.msra.mxu0 0.0
  %1438 = vmatprep.subr.mxu0 0.0
  %1439 = vmatpush1.msra.mxu0 0.0
  %1440 = vmatprep.subr.mxu0 0.0
  %1441 = vmatpush1.msra.mxu0 0.0
  %1442 = vmatprep.subr.mxu0 0.0
  %1443 = vmatpush1.msra.mxu0 0.0
  %1444 = vmatprep.subr.mxu0 0.0
  %1445 = vmatpush1.msra.mxu0 0.0
  %1446 = vmatprep.subr.mxu0 0.0
  %1447 = vmatpush1.msra.mxu0 0.0
  %1448 = vmatprep.subr.mxu0 0.0
  %1449 = vmatpush1.msra.mxu0 0.0
  %1450 = vmatprep.subr.mxu0 0.0
  %1451 = vmatpush1.msra.mxu0 0.0
  %1452 = vmatprep.subr.mxu0 0.0
  %1453 = vmatpush1.msra.mxu0 0.0
  %1454 = vmatprep.subr.mxu0 0.0
  %1455 = vmatpush1.msra.mxu0 0.0
  %1456 = vmatprep.subr.mxu0 0.0
  %1457 = vmatpush1.msra.mxu0 0.0
  %1458 = vmatprep.subr.mxu0 0.0
  %1459 = vmatpush1.msra.mxu0 0.0
  %1460 = vmatprep.subr.mxu0 0.0
  %1461 = vmatpush1.msra.mxu0 0.0
  %1462 = vmatprep.subr.mxu0 0.0
  %1463 = vmatpush1.msra.mxu0 0.0
  %1464 = vmatprep.subr.mxu0 0.0
  %1465 = vmatpush1.msra.mxu0 0.0
  %1466 = vmatprep.subr.mxu0 0.0
  %1467 = vmatpush1.msra.mxu0 0.0
  %1468 = vmatprep.mubr.f32.mxu0 0.0
  %1469 = vmatmul.mubr.f32.gmra.mrb[0].mxu0 %v103
  %v1470 = vpop.f32.mrb[0].mxu0
  %v1471 = vadd.f32 %v1403, %v1470
  %v1472 = vpop.f32.mrb[0].mxu0
  %1473 = vmatprep.mubr.f32.mxu0 0.0
  %1474 = vmatmul.mubr.f32.gmra.mrb[0].mxu0 %v106
  %v1475 = vpop.f32.mrb[0].mxu0
  %v1476 = vadd.f32 %v1403, %v1475
  %v1477 = vpop.f32.mrb[0].mxu0
  %1478 = vdwg.mxu0
  %v1479 = vadd.f32 %v1392, %v1471
  %v1480 = vadd.f32 %v1397, %v1476
  %v1481 = vxor.u32 %v1479, 2147483648
  %v1482 = vxor.u32 %v1480, 2147483648
  %v1483 = vmul.f32 %v1481, 1.442695
  %v1484 = vpow.pop %v1483
  %v1485 = vmul.f32 %v1482, 1.442695
  %v1486 = vpow.pop %v1485
  %v1487 = vadd.f32 %v1484, 1.0
  %v1488 = vadd.f32 %v1486, 1.0
  %v1489 = vrcp.pop %v1487
  %v1490 = vmul.f32 1.0, %v1489
  %v1491 = vrcp.pop %v1488
  %v1492 = vmul.f32 1.0, %v1491
  %1495 = vrot.lane.b32.xlu0 %v1471, 64
  %v1496 = vpop.permute.xlu0 %1495
  %1497 = vrot.lane.b32.xlu0 %v1476, 64
  %v1498 = vpop.permute.xlu0 %1497
  %v1501 = vmul.f32 %v1490, %v1496
  %v1502 = vmul.f32 %v1492, %v1498
  %1505 = vrot.lane.b32.xlu0 %v1501, 64
  %v1506 = vpop.permute.xlu0 %1505
  %1507 = vrot.lane.b32.xlu0 %v1502, 64
  %v1508 = vpop.permute.xlu0 %1507
  %v1511 = vadd.f32 %v1392, %v1506
  %v1512 = vadd.f32 %v1397, %v1508
  %v1513 = vtanh.pop %v1511
  %v1514 = vtanh.pop %v1512
  %v1515 = vsub.f32 1.0, %v1490
  %v1516 = vsub.f32 1.0, %v1492
  %1519 = vrot.lane.b32.xlu0 %v1513, 96
  %v1520 = vpop.permute.xlu0 %1519
  %1521 = vrot.lane.b32.xlu0 %v1514, 96
  %v1522 = vpop.permute.xlu0 %1521
  %v1525 = vmul.f32 %v1515, %v1520
  %v1526 = vmul.f32 %v1516, %v1522
  %v1527 = vmul.f32 %v1490, %v1259
  %v1528 = vmul.f32 %v1492, %v1261
  %v1529 = vadd.f32 %v1525, %v1527
  %v1530 = vadd.f32 %v1526, %v1528
  %1533 = vrot.lane.b32.xlu0 %v1529, 96
  %v1534 = vpop.permute.xlu0 %1533
  %1535 = vrot.lane.b32.xlu0 %v1530, 96
  %v1536 = vpop.permute.xlu0 %1535
  %v1539 = vadd.f32 %v22, %v1534
  %v1540 = vadd.f32 %v23, %v1536
  %1543 = vrot.lane.b32.xlu0 %v1266, 96
  %v1544 = vpop.permute.xlu0 %1543
  %1545 = vrot.lane.b32.xlu0 %v1267, 96
  %v1546 = vpop.permute.xlu0 %1545
  %v1549 = vadd.f32 %v1539, %v1544
  %v1550 = vadd.f32 %v1540, %v1546
  %v1551 = vsel %vm101, %v1544, 0
  %v1553 = vsel %vm101, %v1546, 0
  %1555 = vmatprep.subr.mxu0 0.0
  %1556 = vmatpush1.msra.mxu0 %v40
  %1557 = vmatprep.subr.mxu0 0.0
  %1558 = vmatpush1.msra.mxu0 %v46
  %1559 = vmatprep.subr.mxu0 0.0
  %1560 = vmatpush1.msra.mxu0 %v52
  %1561 = vmatprep.subr.mxu0 0.0
  %1562 = vmatpush1.msra.mxu0 %v58
  %1563 = vmatprep.subr.mxu0 0.0
  %1564 = vmatpush1.msra.mxu0 0.0
  %1565 = vmatprep.subr.mxu0 0.0
  %1566 = vmatpush1.msra.mxu0 0.0
  %1567 = vmatprep.subr.mxu0 0.0
  %1568 = vmatpush1.msra.mxu0 0.0
  %1569 = vmatprep.subr.mxu0 0.0
  %1570 = vmatpush1.msra.mxu0 0.0
  %1571 = vmatprep.subr.mxu0 0.0
  %1572 = vmatpush1.msra.mxu0 0.0
  %1573 = vmatprep.subr.mxu0 0.0
  %1574 = vmatpush1.msra.mxu0 0.0
  %1575 = vmatprep.subr.mxu0 0.0
  %1576 = vmatpush1.msra.mxu0 0.0
  %1577 = vmatprep.subr.mxu0 0.0
  %1578 = vmatpush1.msra.mxu0 0.0
  %1579 = vmatprep.subr.mxu0 0.0
  %1580 = vmatpush1.msra.mxu0 0.0
  %1581 = vmatprep.subr.mxu0 0.0
  %1582 = vmatpush1.msra.mxu0 0.0
  %1583 = vmatprep.subr.mxu0 0.0
  %1584 = vmatpush1.msra.mxu0 0.0
  %1585 = vmatprep.subr.mxu0 0.0
  %1586 = vmatpush1.msra.mxu0 0.0
  %1587 = vmatprep.subr.mxu0 0.0
  %1588 = vmatpush1.msra.mxu0 0.0
  %1589 = vmatprep.subr.mxu0 0.0
  %1590 = vmatpush1.msra.mxu0 0.0
  %1591 = vmatprep.subr.mxu0 0.0
  %1592 = vmatpush1.msra.mxu0 0.0
  %1593 = vmatprep.subr.mxu0 0.0
  %1594 = vmatpush1.msra.mxu0 0.0
  %1595 = vmatprep.subr.mxu0 0.0
  %1596 = vmatpush1.msra.mxu0 0.0
  %1597 = vmatprep.subr.mxu0 0.0
  %1598 = vmatpush1.msra.mxu0 0.0
  %1599 = vmatprep.subr.mxu0 0.0
  %1600 = vmatpush1.msra.mxu0 0.0
  %1601 = vmatprep.subr.mxu0 0.0
  %1602 = vmatpush1.msra.mxu0 0.0
  %1603 = vmatprep.subr.mxu0 0.0
  %1604 = vmatpush1.msra.mxu0 0.0
  %1605 = vmatprep.subr.mxu0 0.0
  %1606 = vmatpush1.msra.mxu0 0.0
  %1607 = vmatprep.subr.mxu0 0.0
  %1608 = vmatpush1.msra.mxu0 0.0
  %1609 = vmatprep.subr.mxu0 0.0
  %1610 = vmatpush1.msra.mxu0 0.0
  %1611 = vmatprep.subr.mxu0 0.0
  %1612 = vmatpush1.msra.mxu0 0.0
  %1613 = vmatprep.subr.mxu0 0.0
  %1614 = vmatpush1.msra.mxu0 0.0
  %1615 = vmatprep.subr.mxu0 0.0
  %1616 = vmatpush1.msra.mxu0 0.0
  %1617 = vmatprep.subr.mxu0 0.0
  %1618 = vmatpush1.msra.mxu0 0.0
  %1619 = vmatprep.mubr.f32.mxu0 0.0
  %1620 = vmatmul.mubr.f32.gmra.mrb[0].mxu0 %v1551
  %v1621 = vpop.f32.mrb[0].mxu0
  %v1622 = vadd.f32 %v100, %v1621
  %v1623 = vpop.f32.mrb[0].mxu0
  %1624 = vmatprep.mubr.f32.mxu0 0.0
  %1625 = vmatmul.mubr.f32.gmra.mrb[0].mxu0 %v1553
  %v1626 = vpop.f32.mrb[0].mxu0
  %v1627 = vadd.f32 %v100, %v1626
  %v1628 = vpop.f32.mrb[0].mxu0
  %1629 = vdwg.mxu0
  %1630 = vmax.xlane.f32.xlu0 %v1622
  %v1631 = vpop.xlane.xlu0 %1630
  %1632 = vmax.xlane.f32.xlu0 %v1627
  %v1633 = vpop.xlane.xlu0 %1632
  %v1634 = vsub.f32 %v1622, %v1631
  %v1635 = vsub.f32 %v1627, %v1633
  %v1636 = vmul.f32 %v1634, 1.442695
  %v1637 = vpow.pop %v1636
  %v1638 = vmul.f32 %v1635, 1.442695
  %v1639 = vpow.pop %v1638
  %1640 = vadd.xlane.f32.xlu0 %v1637
  %v1641 = vpop.xlane.xlu0 %1640
  %1642 = vadd.xlane.f32.xlu0 %v1639
  %v1643 = vpop.xlane.xlu0 %1642
  %v1644 = vrcp.pop %v1641
  %v1645 = vmul.f32 %v1637, %v1644
  %v1646 = vrcp.pop %v1643
  %v1647 = vmul.f32 %v1639, %v1646
  %v1648 = vsel %vm101, %v1534, 0
  %v1650 = vsel %vm101, %v1536, 0
  %1652 = vmatprep.subr.mxu0 0.0
  %1653 = vmatpush1.msra.mxu0 %v41
  %1654 = vmatprep.subr.mxu0 0.0
  %1655 = vmatpush1.msra.mxu0 %v47
  %1656 = vmatprep.subr.mxu0 0.0
  %1657 = vmatpush1.msra.mxu0 %v53
  %1658 = vmatprep.subr.mxu0 0.0
  %1659 = vmatpush1.msra.mxu0 %v59
  %1660 = vmatprep.subr.mxu0 0.0
  %1661 = vmatpush1.msra.mxu0 0.0
  %1662 = vmatprep.subr.mxu0 0.0
  %1663 = vmatpush1.msra.mxu0 0.0
  %1664 = vmatprep.subr.mxu0 0.0
  %1665 = vmatpush1.msra.mxu0 0.0
  %1666 = vmatprep.subr.mxu0 0.0
  %1667 = vmatpush1.msra.mxu0 0.0
  %1668 = vmatprep.subr.mxu0 0.0
  %1669 = vmatpush1.msra.mxu0 0.0
  %1670 = vmatprep.subr.mxu0 0.0
  %1671 = vmatpush1.msra.mxu0 0.0
  %1672 = vmatprep.subr.mxu0 0.0
  %1673 = vmatpush1.msra.mxu0 0.0
  %1674 = vmatprep.subr.mxu0 0.0
  %1675 = vmatpush1.msra.mxu0 0.0
  %1676 = vmatprep.subr.mxu0 0.0
  %1677 = vmatpush1.msra.mxu0 0.0
  %1678 = vmatprep.subr.mxu0 0.0
  %1679 = vmatpush1.msra.mxu0 0.0
  %1680 = vmatprep.subr.mxu0 0.0
  %1681 = vmatpush1.msra.mxu0 0.0
  %1682 = vmatprep.subr.mxu0 0.0
  %1683 = vmatpush1.msra.mxu0 0.0
  %1684 = vmatprep.subr.mxu0 0.0
  %1685 = vmatpush1.msra.mxu0 0.0
  %1686 = vmatprep.subr.mxu0 0.0
  %1687 = vmatpush1.msra.mxu0 0.0
  %1688 = vmatprep.subr.mxu0 0.0
  %1689 = vmatpush1.msra.mxu0 0.0
  %1690 = vmatprep.subr.mxu0 0.0
  %1691 = vmatpush1.msra.mxu0 0.0
  %1692 = vmatprep.subr.mxu0 0.0
  %1693 = vmatpush1.msra.mxu0 0.0
  %1694 = vmatprep.subr.mxu0 0.0
  %1695 = vmatpush1.msra.mxu0 0.0
  %1696 = vmatprep.subr.mxu0 0.0
  %1697 = vmatpush1.msra.mxu0 0.0
  %1698 = vmatprep.subr.mxu0 0.0
  %1699 = vmatpush1.msra.mxu0 0.0
  %1700 = vmatprep.subr.mxu0 0.0
  %1701 = vmatpush1.msra.mxu0 0.0
  %1702 = vmatprep.subr.mxu0 0.0
  %1703 = vmatpush1.msra.mxu0 0.0
  %1704 = vmatprep.subr.mxu0 0.0
  %1705 = vmatpush1.msra.mxu0 0.0
  %1706 = vmatprep.subr.mxu0 0.0
  %1707 = vmatpush1.msra.mxu0 0.0
  %1708 = vmatprep.subr.mxu0 0.0
  %1709 = vmatpush1.msra.mxu0 0.0
  %1710 = vmatprep.subr.mxu0 0.0
  %1711 = vmatpush1.msra.mxu0 0.0
  %1712 = vmatprep.subr.mxu0 0.0
  %1713 = vmatpush1.msra.mxu0 0.0
  %1714 = vmatprep.subr.mxu0 0.0
  %1715 = vmatpush1.msra.mxu0 0.0
  %1716 = vmatprep.mubr.f32.mxu0 0.0
  %1717 = vmatmul.mubr.f32.gmra.mrb[0].mxu0 %v1648
  %v1718 = vpop.f32.mrb[0].mxu0
  %v1719 = vadd.f32 %v204, %v1718
  %v1720 = vpop.f32.mrb[0].mxu0
  %1721 = vmatprep.mubr.f32.mxu0 0.0
  %1722 = vmatmul.mubr.f32.gmra.mrb[0].mxu0 %v1650
  %v1723 = vpop.f32.mrb[0].mxu0
  %v1724 = vadd.f32 %v204, %v1723
  %v1725 = vpop.f32.mrb[0].mxu0
  %1726 = vdwg.mxu0
  %1727 = vmatprep.subr.mxu0 0.0
  %1728 = vmatpush1.msra.mxu0 %v42
  %1729 = vmatprep.subr.mxu0 0.0
  %1730 = vmatpush1.msra.mxu0 %v48
  %1731 = vmatprep.subr.mxu0 0.0
  %1732 = vmatpush1.msra.mxu0 %v54
  %1733 = vmatprep.subr.mxu0 0.0
  %1734 = vmatpush1.msra.mxu0 %v60
  %1735 = vmatprep.subr.mxu0 0.0
  %1736 = vmatpush1.msra.mxu0 0.0
  %1737 = vmatprep.subr.mxu0 0.0
  %1738 = vmatpush1.msra.mxu0 0.0
  %1739 = vmatprep.subr.mxu0 0.0
  %1740 = vmatpush1.msra.mxu0 0.0
  %1741 = vmatprep.subr.mxu0 0.0
  %1742 = vmatpush1.msra.mxu0 0.0
  %1743 = vmatprep.subr.mxu0 0.0
  %1744 = vmatpush1.msra.mxu0 0.0
  %1745 = vmatprep.subr.mxu0 0.0
  %1746 = vmatpush1.msra.mxu0 0.0
  %1747 = vmatprep.subr.mxu0 0.0
  %1748 = vmatpush1.msra.mxu0 0.0
  %1749 = vmatprep.subr.mxu0 0.0
  %1750 = vmatpush1.msra.mxu0 0.0
  %1751 = vmatprep.subr.mxu0 0.0
  %1752 = vmatpush1.msra.mxu0 0.0
  %1753 = vmatprep.subr.mxu0 0.0
  %1754 = vmatpush1.msra.mxu0 0.0
  %1755 = vmatprep.subr.mxu0 0.0
  %1756 = vmatpush1.msra.mxu0 0.0
  %1757 = vmatprep.subr.mxu0 0.0
  %1758 = vmatpush1.msra.mxu0 0.0
  %1759 = vmatprep.subr.mxu0 0.0
  %1760 = vmatpush1.msra.mxu0 0.0
  %1761 = vmatprep.subr.mxu0 0.0
  %1762 = vmatpush1.msra.mxu0 0.0
  %1763 = vmatprep.subr.mxu0 0.0
  %1764 = vmatpush1.msra.mxu0 0.0
  %1765 = vmatprep.subr.mxu0 0.0
  %1766 = vmatpush1.msra.mxu0 0.0
  %1767 = vmatprep.subr.mxu0 0.0
  %1768 = vmatpush1.msra.mxu0 0.0
  %1769 = vmatprep.subr.mxu0 0.0
  %1770 = vmatpush1.msra.mxu0 0.0
  %1771 = vmatprep.subr.mxu0 0.0
  %1772 = vmatpush1.msra.mxu0 0.0
  %1773 = vmatprep.subr.mxu0 0.0
  %1774 = vmatpush1.msra.mxu0 0.0
  %1775 = vmatprep.subr.mxu0 0.0
  %1776 = vmatpush1.msra.mxu0 0.0
  %1777 = vmatprep.subr.mxu0 0.0
  %1778 = vmatpush1.msra.mxu0 0.0
  %1779 = vmatprep.subr.mxu0 0.0
  %1780 = vmatpush1.msra.mxu0 0.0
  %1781 = vmatprep.subr.mxu0 0.0
  %1782 = vmatpush1.msra.mxu0 0.0
  %1783 = vmatprep.subr.mxu0 0.0
  %1784 = vmatpush1.msra.mxu0 0.0
  %1785 = vmatprep.subr.mxu0 0.0
  %1786 = vmatpush1.msra.mxu0 0.0
  %1787 = vmatprep.subr.mxu0 0.0
  %1788 = vmatpush1.msra.mxu0 0.0
  %1789 = vmatprep.subr.mxu0 0.0
  %1790 = vmatpush1.msra.mxu0 0.0
  %1791 = vmatprep.mubr.f32.mxu0 0.0
  %1792 = vmatmul.mubr.f32.gmra.mrb[0].mxu0 %v1648
  %v1793 = vpop.f32.mrb[0].mxu0
  %v1794 = vadd.f32 0.0, %v1793
  %v1795 = vpop.f32.mrb[0].mxu0
  %1796 = vmatprep.mubr.f32.mxu0 0.0
  %1797 = vmatmul.mubr.f32.gmra.mrb[0].mxu0 %v1650
  %v1798 = vpop.f32.mrb[0].mxu0
  %v1799 = vadd.f32 0.0, %v1798
  %v1800 = vpop.f32.mrb[0].mxu0
  %1801 = vdwg.mxu0
  %v1804 = vcombine.high %v1719, %v1719
  %v1806 = vunpack.c.l.s4 1966171168
  %v1807 = vunpack.c.0.s8 %v1806
  %v1808 = vlaneseq
  %v1809 = vshrl.u32 %v1808, 7
  %v1810 = vsub.s32 %v1807, %v1809
  %v1811 = vrot.slane %v1719, %v1810
  %v1813 = vunpack.c.l.s4 1966171168
  %v1814 = vunpack.c.0.s8 %v1813
  %v1815 = vlaneseq
  %v1816 = vshrl.u32 %v1815, 7
  %v1817 = vsub.s32 %v1814, %v1816
  %v1818 = vrot.slane %v1804, %v1817
  %v1819 = vcombine.high %v1811, %v1811
  %v1820 = vcombine.high %v1818, %v1818
  %v1822 = vunpack.c.l.s4 1966171168
  %v1823 = vunpack.c.0.s8 %v1822
  %v1824 = vlaneseq
  %v1825 = vshrl.u32 %v1824, 7
  %v1826 = vsub.s32 %v1823, %v1825
  %v1827 = vrot.slane %v1811, %v1826
  %v1829 = vunpack.c.l.s4 1966171168
  %v1830 = vunpack.c.0.s8 %v1829
  %v1831 = vlaneseq
  %v1832 = vshrl.u32 %v1831, 7
  %v1833 = vsub.s32 %v1830, %v1832
  %v1834 = vrot.slane %v1818, %v1833
  %v1836 = vunpack.c.l.s4 1966171168
  %v1837 = vunpack.c.0.s8 %v1836
  %v1838 = vlaneseq
  %v1839 = vshrl.u32 %v1838, 7
  %v1840 = vsub.s32 %v1837, %v1839
  %v1841 = vrot.slane %v1819, %v1840
  %v1843 = vunpack.c.l.s4 1966171168
  %v1844 = vunpack.c.0.s8 %v1843
  %v1845 = vlaneseq
  %v1846 = vshrl.u32 %v1845, 7
  %v1847 = vsub.s32 %v1844, %v1846
  %v1848 = vrot.slane %v1820, %v1847
  %v1849 = vcombine.high %v1827, %v1827
  %v1850 = vcombine.high %v1834, %v1834
  %v1851 = vcombine.high %v1841, %v1841
  %v1852 = vcombine.high %v1848, %v1848
  %v1853 = vcombine.high %v1724, %v1724
  %v1855 = vunpack.c.l.s4 1966171168
  %v1856 = vunpack.c.0.s8 %v1855
  %v1857 = vlaneseq
  %v1858 = vshrl.u32 %v1857, 7
  %v1859 = vsub.s32 %v1856, %v1858
  %v1860 = vrot.slane %v1724, %v1859
  %v1862 = vunpack.c.l.s4 1966171168
  %v1863 = vunpack.c.0.s8 %v1862
  %v1864 = vlaneseq
  %v1865 = vshrl.u32 %v1864, 7
  %v1866 = vsub.s32 %v1863, %v1865
  %v1867 = vrot.slane %v1853, %v1866
  %v1868 = vcombine.high %v1860, %v1860
  %v1869 = vcombine.high %v1867, %v1867
  %v1871 = vunpack.c.l.s4 1966171168
  %v1872 = vunpack.c.0.s8 %v1871
  %v1873 = vlaneseq
  %v1874 = vshrl.u32 %v1873, 7
  %v1875 = vsub.s32 %v1872, %v1874
  %v1876 = vrot.slane %v1860, %v1875
  %v1878 = vunpack.c.l.s4 1966171168
  %v1879 = vunpack.c.0.s8 %v1878
  %v1880 = vlaneseq
  %v1881 = vshrl.u32 %v1880, 7
  %v1882 = vsub.s32 %v1879, %v1881
  %v1883 = vrot.slane %v1867, %v1882
  %v1885 = vunpack.c.l.s4 1966171168
  %v1886 = vunpack.c.0.s8 %v1885
  %v1887 = vlaneseq
  %v1888 = vshrl.u32 %v1887, 7
  %v1889 = vsub.s32 %v1886, %v1888
  %v1890 = vrot.slane %v1868, %v1889
  %v1892 = vunpack.c.l.s4 1966171168
  %v1893 = vunpack.c.0.s8 %v1892
  %v1894 = vlaneseq
  %v1895 = vshrl.u32 %v1894, 7
  %v1896 = vsub.s32 %v1893, %v1895
  %v1897 = vrot.slane %v1869, %v1896
  %v1898 = vcombine.high %v1876, %v1876
  %v1899 = vcombine.high %v1883, %v1883
  %v1900 = vcombine.high %v1890, %v1890
  %v1901 = vcombine.high %v1897, %v1897
  %v1902 = vlaneseq
  %v1903 = vshrl.u32 %v1902, 7
  %v1904 = vsub.s32 0, %v1903
  %v1905 = vrot.slane %v1827, %v1904
  %v1906 = vlaneseq
  %v1907 = vshrl.u32 %v1906, 7
  %v1908 = vsub.s32 0, %v1907
  %v1909 = vrot.slane %v1841, %v1908
  %v1910 = vlaneseq
  %v1911 = vshrl.u32 %v1910, 7
  %v1912 = vsub.s32 0, %v1911
  %v1913 = vrot.slane %v1849, %v1912
  %v1914 = vlaneseq
  %v1915 = vshrl.u32 %v1914, 7
  %v1916 = vsub.s32 0, %v1915
  %v1917 = vrot.slane %v1851, %v1916
  %v1918 = vlaneseq
  %v1919 = vshrl.u32 %v1918, 7
  %v1920 = vsub.s32 0, %v1919
  %v1921 = vrot.slane %v1834, %v1920
  %v1922 = vlaneseq
  %v1923 = vshrl.u32 %v1922, 7
  %v1924 = vsub.s32 0, %v1923
  %v1925 = vrot.slane %v1848, %v1924
  %v1926 = vlaneseq
  %v1927 = vshrl.u32 %v1926, 7
  %v1928 = vsub.s32 0, %v1927
  %v1929 = vrot.slane %v1850, %v1928
  %v1930 = vlaneseq
  %v1931 = vshrl.u32 %v1930, 7
  %v1932 = vsub.s32 0, %v1931
  %v1933 = vrot.slane %v1852, %v1932
  %v1934 = vlaneseq
  %v1935 = vshrl.u32 %v1934, 7
  %v1936 = vsub.s32 0, %v1935
  %v1937 = vrot.slane %v1876, %v1936
  %v1938 = vlaneseq
  %v1939 = vshrl.u32 %v1938, 7
  %v1940 = vsub.s32 0, %v1939
  %v1941 = vrot.slane %v1890, %v1940
  %v1942 = vlaneseq
  %v1943 = vshrl.u32 %v1942, 7
  %v1944 = vsub.s32 0, %v1943
  %v1945 = vrot.slane %v1898, %v1944
  %v1946 = vlaneseq
  %v1947 = vshrl.u32 %v1946, 7
  %v1948 = vsub.s32 0, %v1947
  %v1949 = vrot.slane %v1900, %v1948
  %v1950 = vlaneseq
  %v1951 = vshrl.u32 %v1950, 7
  %v1952 = vsub.s32 0, %v1951
  %v1953 = vrot.slane %v1883, %v1952
  %v1954 = vlaneseq
  %v1955 = vshrl.u32 %v1954, 7
  %v1956 = vsub.s32 0, %v1955
  %v1957 = vrot.slane %v1897, %v1956
  %v1958 = vlaneseq
  %v1959 = vshrl.u32 %v1958, 7
  %v1960 = vsub.s32 0, %v1959
  %v1961 = vrot.slane %v1899, %v1960
  %v1962 = vlaneseq
  %v1963 = vshrl.u32 %v1962, 7
  %v1964 = vsub.s32 0, %v1963
  %v1965 = vrot.slane %v1901, %v1964
  %v1982 = vadd.f32 %v1905, %v1794
  %v1983 = vadd.f32 %v1909, %v1794
  %v1984 = vadd.f32 %v1913, %v1794
  %v1985 = vadd.f32 %v1917, %v1794
  %v1986 = vadd.f32 %v1921, %v1794
  %v1987 = vadd.f32 %v1925, %v1794
  %v1988 = vadd.f32 %v1929, %v1794
  %v1989 = vadd.f32 %v1933, %v1794
  %v1990 = vadd.f32 %v1937, %v1799
  %v1991 = vadd.f32 %v1941, %v1799
  %v1992 = vadd.f32 %v1945, %v1799
  %v1993 = vadd.f32 %v1949, %v1799
  %v1994 = vadd.f32 %v1953, %v1799
  %v1995 = vadd.f32 %v1957, %v1799
  %v1996 = vadd.f32 %v1961, %v1799
  %v1997 = vadd.f32 %v1965, %v1799
  %v1998 = vmax.f32 %v1982, 0.0
  %v1999 = vmax.f32 %v1983, 0.0
  %v2000 = vmax.f32 %v1984, 0.0
  %v2001 = vmax.f32 %v1985, 0.0
  %v2002 = vmax.f32 %v1986, 0.0
  %v2003 = vmax.f32 %v1987, 0.0
  %v2004 = vmax.f32 %v1988, 0.0
  %v2005 = vmax.f32 %v1989, 0.0
  %v2006 = vmax.f32 %v1990, 0.0
  %v2007 = vmax.f32 %v1991, 0.0
  %v2008 = vmax.f32 %v1992, 0.0
  %v2009 = vmax.f32 %v1993, 0.0
  %v2010 = vmax.f32 %v1994, 0.0
  %v2011 = vmax.f32 %v1995, 0.0
  %v2012 = vmax.f32 %v1996, 0.0
  %v2013 = vmax.f32 %v1997, 0.0
  %v2015 = vsel %vm101, %v1998, 0
  %v2018 = vsel %vm101, %v1999, 0
  %v2021 = vsel %vm101, %v2000, 0
  %v2024 = vsel %vm101, %v2001, 0
  %v2027 = vsel %vm101, %v2002, 0
  %v2030 = vsel %vm101, %v2003, 0
  %v2033 = vsel %vm101, %v2004, 0
  %v2036 = vsel %vm101, %v2005, 0
  %v2039 = vsel %vm101, %v2006, 0
  %v2042 = vsel %vm101, %v2007, 0
  %v2045 = vsel %vm101, %v2008, 0
  %v2048 = vsel %vm101, %v2009, 0
  %v2051 = vsel %vm101, %v2010, 0
  %v2054 = vsel %vm101, %v2011, 0
  %v2057 = vsel %vm101, %v2012, 0
  %v2060 = vsel %vm101, %v2013, 0
  %2062 = vmatprep.subr.mxu0 0.0
  %2063 = vmatpush1.msra.mxu0 %v43
  %2064 = vmatprep.subr.mxu0 0.0
  %2065 = vmatpush1.msra.mxu0 %v49
  %2066 = vmatprep.subr.mxu0 0.0
  %2067 = vmatpush1.msra.mxu0 %v55
  %2068 = vmatprep.subr.mxu0 0.0
  %2069 = vmatpush1.msra.mxu0 %v61
  %2070 = vmatprep.subr.mxu0 0.0
  %2071 = vmatpush1.msra.mxu0 0.0
  %2072 = vmatprep.subr.mxu0 0.0
  %2073 = vmatpush1.msra.mxu0 0.0
  %2074 = vmatprep.subr.mxu0 0.0
  %2075 = vmatpush1.msra.mxu0 0.0
  %2076 = vmatprep.subr.mxu0 0.0
  %2077 = vmatpush1.msra.mxu0 0.0
  %2078 = vmatprep.subr.mxu0 0.0
  %2079 = vmatpush1.msra.mxu0 0.0
  %2080 = vmatprep.subr.mxu0 0.0
  %2081 = vmatpush1.msra.mxu0 0.0
  %2082 = vmatprep.subr.mxu0 0.0
  %2083 = vmatpush1.msra.mxu0 0.0
  %2084 = vmatprep.subr.mxu0 0.0
  %2085 = vmatpush1.msra.mxu0 0.0
  %2086 = vmatprep.subr.mxu0 0.0
  %2087 = vmatpush1.msra.mxu0 0.0
  %2088 = vmatprep.subr.mxu0 0.0
  %2089 = vmatpush1.msra.mxu0 0.0
  %2090 = vmatprep.subr.mxu0 0.0
  %2091 = vmatpush1.msra.mxu0 0.0
  %2092 = vmatprep.subr.mxu0 0.0
  %2093 = vmatpush1.msra.mxu0 0.0
  %2094 = vmatprep.subr.mxu0 0.0
  %2095 = vmatpush1.msra.mxu0 0.0
  %2096 = vmatprep.subr.mxu0 0.0
  %2097 = vmatpush1.msra.mxu0 0.0
  %2098 = vmatprep.subr.mxu0 0.0
  %2099 = vmatpush1.msra.mxu0 0.0
  %2100 = vmatprep.subr.mxu0 0.0
  %2101 = vmatpush1.msra.mxu0 0.0
  %2102 = vmatprep.subr.mxu0 0.0
  %2103 = vmatpush1.msra.mxu0 0.0
  %2104 = vmatprep.subr.mxu0 0.0
  %2105 = vmatpush1.msra.mxu0 0.0
  %2106 = vmatprep.subr.mxu0 0.0
  %2107 = vmatpush1.msra.mxu0 0.0
  %2108 = vmatprep.subr.mxu0 0.0
  %2109 = vmatpush1.msra.mxu0 0.0
  %2110 = vmatprep.subr.mxu0 0.0
  %2111 = vmatpush1.msra.mxu0 0.0
  %2112 = vmatprep.subr.mxu0 0.0
  %2113 = vmatpush1.msra.mxu0 0.0
  %2114 = vmatprep.subr.mxu0 0.0
  %2115 = vmatpush1.msra.mxu0 0.0
  %2116 = vmatprep.subr.mxu0 0.0
  %2117 = vmatpush1.msra.mxu0 0.0
  %2118 = vmatprep.subr.mxu0 0.0
  %2119 = vmatpush1.msra.mxu0 0.0
  %2120 = vmatprep.subr.mxu0 0.0
  %2121 = vmatpush1.msra.mxu0 0.0
  %2122 = vmatprep.subr.mxu0 0.0
  %2123 = vmatpush1.msra.mxu0 0.0
  %2124 = vmatprep.subr.mxu0 0.0
  %2125 = vmatpush1.msra.mxu0 0.0
  %2126 = vmatprep.mubr.f32.mxu0 0.0
  %2127 = vmatmul.mubr.f32.gmra.mrb[0].mxu0 %v2015
  %v2128 = vpop.f32.mrb[0].mxu0
  %v2129 = vadd.f32 %v570, %v2128
  %v2130 = vpop.f32.mrb[0].mxu0
  %2131 = vmatprep.mubr.f32.mxu0 0.0
  %2132 = vmatmul.mubr.f32.gmra.mrb[0].mxu0 %v2018
  %v2133 = vpop.f32.mrb[0].mxu0
  %v2134 = vadd.f32 %v575, %v2133
  %v2135 = vpop.f32.mrb[0].mxu0
  %2136 = vmatprep.mubr.f32.mxu0 0.0
  %2137 = vmatmul.mubr.f32.gmra.mrb[0].mxu0 %v2021
  %v2138 = vpop.f32.mrb[0].mxu0
  %v2139 = vadd.f32 %v580, %v2138
  %v2140 = vpop.f32.mrb[0].mxu0
  %2141 = vmatprep.mubr.f32.mxu0 0.0
  %2142 = vmatmul.mubr.f32.gmra.mrb[0].mxu0 %v2024
  %v2143 = vpop.f32.mrb[0].mxu0
  %v2144 = vadd.f32 %v585, %v2143
  %v2145 = vpop.f32.mrb[0].mxu0
  %2146 = vmatprep.mubr.f32.mxu0 0.0
  %2147 = vmatmul.mubr.f32.gmra.mrb[0].mxu0 %v2027
  %v2148 = vpop.f32.mrb[0].mxu0
  %v2149 = vadd.f32 %v590, %v2148
  %v2150 = vpop.f32.mrb[0].mxu0
  %2151 = vmatprep.mubr.f32.mxu0 0.0
  %2152 = vmatmul.mubr.f32.gmra.mrb[0].mxu0 %v2030
  %v2153 = vpop.f32.mrb[0].mxu0
  %v2154 = vadd.f32 %v595, %v2153
  %v2155 = vpop.f32.mrb[0].mxu0
  %2156 = vmatprep.mubr.f32.mxu0 0.0
  %2157 = vmatmul.mubr.f32.gmra.mrb[0].mxu0 %v2033
  %v2158 = vpop.f32.mrb[0].mxu0
  %v2159 = vadd.f32 %v600, %v2158
  %v2160 = vpop.f32.mrb[0].mxu0
  %2161 = vmatprep.mubr.f32.mxu0 0.0
  %2162 = vmatmul.mubr.f32.gmra.mrb[0].mxu0 %v2036
  %v2163 = vpop.f32.mrb[0].mxu0
  %v2164 = vadd.f32 %v605, %v2163
  %v2165 = vpop.f32.mrb[0].mxu0
  %2166 = vmatprep.mubr.f32.mxu0 0.0
  %2167 = vmatmul.mubr.f32.gmra.mrb[0].mxu0 %v2039
  %v2168 = vpop.f32.mrb[0].mxu0
  %v2169 = vadd.f32 %v610, %v2168
  %v2170 = vpop.f32.mrb[0].mxu0
  %2171 = vmatprep.mubr.f32.mxu0 0.0
  %2172 = vmatmul.mubr.f32.gmra.mrb[0].mxu0 %v2042
  %v2173 = vpop.f32.mrb[0].mxu0
  %v2174 = vadd.f32 %v615, %v2173
  %v2175 = vpop.f32.mrb[0].mxu0
  %2176 = vmatprep.mubr.f32.mxu0 0.0
  %2177 = vmatmul.mubr.f32.gmra.mrb[0].mxu0 %v2045
  %v2178 = vpop.f32.mrb[0].mxu0
  %v2179 = vadd.f32 %v620, %v2178
  %v2180 = vpop.f32.mrb[0].mxu0
  %2181 = vmatprep.mubr.f32.mxu0 0.0
  %2182 = vmatmul.mubr.f32.gmra.mrb[0].mxu0 %v2048
  %v2183 = vpop.f32.mrb[0].mxu0
  %v2184 = vadd.f32 %v625, %v2183
  %v2185 = vpop.f32.mrb[0].mxu0
  %2186 = vmatprep.mubr.f32.mxu0 0.0
  %2187 = vmatmul.mubr.f32.gmra.mrb[0].mxu0 %v2051
  %v2188 = vpop.f32.mrb[0].mxu0
  %v2189 = vadd.f32 %v630, %v2188
  %v2190 = vpop.f32.mrb[0].mxu0
  %2191 = vmatprep.mubr.f32.mxu0 0.0
  %2192 = vmatmul.mubr.f32.gmra.mrb[0].mxu0 %v2054
  %v2193 = vpop.f32.mrb[0].mxu0
  %v2194 = vadd.f32 %v635, %v2193
  %v2195 = vpop.f32.mrb[0].mxu0
  %2196 = vmatprep.mubr.f32.mxu0 0.0
  %2197 = vmatmul.mubr.f32.gmra.mrb[0].mxu0 %v2057
  %v2198 = vpop.f32.mrb[0].mxu0
  %v2199 = vadd.f32 %v640, %v2198
  %v2200 = vpop.f32.mrb[0].mxu0
  %2201 = vmatprep.mubr.f32.mxu0 0.0
  %2202 = vmatmul.mubr.f32.gmra.mrb[0].mxu0 %v2060
  %v2203 = vpop.f32.mrb[0].mxu0
  %v2204 = vadd.f32 %v645, %v2203
  %v2205 = vpop.f32.mrb[0].mxu0
  %2206 = vdwg.mxu0
  %v2207 = vrot.slane %v2129, 4
  %v2208 = vmax.f32 %v2129, %v2207
  %v2209 = vrot.slane %v2208, 2
  %v2210 = vmax.f32 %v2208, %v2209
  %v2211 = vrot.slane %v2210, 1
  %v2212 = vmax.f32 %v2210, %v2211
  %v2213 = vrot.slane %v2134, 4
  %v2214 = vmax.f32 %v2134, %v2213
  %v2215 = vrot.slane %v2214, 2
  %v2216 = vmax.f32 %v2214, %v2215
  %v2217 = vrot.slane %v2216, 1
  %v2218 = vmax.f32 %v2216, %v2217
  %v2219 = vrot.slane %v2139, 4
  %v2220 = vmax.f32 %v2139, %v2219
  %v2221 = vrot.slane %v2220, 2
  %v2222 = vmax.f32 %v2220, %v2221
  %v2223 = vrot.slane %v2222, 1
  %v2224 = vmax.f32 %v2222, %v2223
  %v2225 = vrot.slane %v2144, 4
  %v2226 = vmax.f32 %v2144, %v2225
  %v2227 = vrot.slane %v2226, 2
  %v2228 = vmax.f32 %v2226, %v2227
  %v2229 = vrot.slane %v2228, 1
  %v2230 = vmax.f32 %v2228, %v2229
  %v2231 = vrot.slane %v2149, 4
  %v2232 = vmax.f32 %v2149, %v2231
  %v2233 = vrot.slane %v2232, 2
  %v2234 = vmax.f32 %v2232, %v2233
  %v2235 = vrot.slane %v2234, 1
  %v2236 = vmax.f32 %v2234, %v2235
  %v2237 = vrot.slane %v2154, 4
  %v2238 = vmax.f32 %v2154, %v2237
  %v2239 = vrot.slane %v2238, 2
  %v2240 = vmax.f32 %v2238, %v2239
  %v2241 = vrot.slane %v2240, 1
  %v2242 = vmax.f32 %v2240, %v2241
  %v2243 = vrot.slane %v2159, 4
  %v2244 = vmax.f32 %v2159, %v2243
  %v2245 = vrot.slane %v2244, 2
  %v2246 = vmax.f32 %v2244, %v2245
  %v2247 = vrot.slane %v2246, 1
  %v2248 = vmax.f32 %v2246, %v2247
  %v2249 = vrot.slane %v2164, 4
  %v2250 = vmax.f32 %v2164, %v2249
  %v2251 = vrot.slane %v2250, 2
  %v2252 = vmax.f32 %v2250, %v2251
  %v2253 = vrot.slane %v2252, 1
  %v2254 = vmax.f32 %v2252, %v2253
  %v2255 = vrot.slane %v2169, 4
  %v2256 = vmax.f32 %v2169, %v2255
  %v2257 = vrot.slane %v2256, 2
  %v2258 = vmax.f32 %v2256, %v2257
  %v2259 = vrot.slane %v2258, 1
  %v2260 = vmax.f32 %v2258, %v2259
  %v2261 = vrot.slane %v2174, 4
  %v2262 = vmax.f32 %v2174, %v2261
  %v2263 = vrot.slane %v2262, 2
  %v2264 = vmax.f32 %v2262, %v2263
  %v2265 = vrot.slane %v2264, 1
  %v2266 = vmax.f32 %v2264, %v2265
  %v2267 = vrot.slane %v2179, 4
  %v2268 = vmax.f32 %v2179, %v2267
  %v2269 = vrot.slane %v2268, 2
  %v2270 = vmax.f32 %v2268, %v2269
  %v2271 = vrot.slane %v2270, 1
  %v2272 = vmax.f32 %v2270, %v2271
  %v2273 = vrot.slane %v2184, 4
  %v2274 = vmax.f32 %v2184, %v2273
  %v2275 = vrot.slane %v2274, 2
  %v2276 = vmax.f32 %v2274, %v2275
  %v2277 = vrot.slane %v2276, 1
  %v2278 = vmax.f32 %v2276, %v2277
  %v2279 = vrot.slane %v2189, 4
  %v2280 = vmax.f32 %v2189, %v2279
  %v2281 = vrot.slane %v2280, 2
  %v2282 = vmax.f32 %v2280, %v2281
  %v2283 = vrot.slane %v2282, 1
  %v2284 = vmax.f32 %v2282, %v2283
  %v2285 = vrot.slane %v2194, 4
  %v2286 = vmax.f32 %v2194, %v2285
  %v2287 = vrot.slane %v2286, 2
  %v2288 = vmax.f32 %v2286, %v2287
  %v2289 = vrot.slane %v2288, 1
  %v2290 = vmax.f32 %v2288, %v2289
  %v2291 = vrot.slane %v2199, 4
  %v2292 = vmax.f32 %v2199, %v2291
  %v2293 = vrot.slane %v2292, 2
  %v2294 = vmax.f32 %v2292, %v2293
  %v2295 = vrot.slane %v2294, 1
  %v2296 = vmax.f32 %v2294, %v2295
  %v2297 = vrot.slane %v2204, 4
  %v2298 = vmax.f32 %v2204, %v2297
  %v2299 = vrot.slane %v2298, 2
  %v2300 = vmax.f32 %v2298, %v2299
  %v2301 = vrot.slane %v2300, 1
  %v2302 = vmax.f32 %v2300, %v2301
  %v2303 = vadd.f32 %v2212, %v939
  %v2304 = vadd.f32 %v2218, %v939
  %v2305 = vadd.f32 %v2224, %v939
  %v2306 = vadd.f32 %v2230, %v939
  %v2307 = vadd.f32 %v2236, %v939
  %v2308 = vadd.f32 %v2242, %v939
  %v2309 = vadd.f32 %v2248, %v939
  %v2310 = vadd.f32 %v2254, %v939
  %v2311 = vadd.f32 %v2260, %v939
  %v2312 = vadd.f32 %v2266, %v939
  %v2313 = vadd.f32 %v2272, %v939
  %v2314 = vadd.f32 %v2278, %v939
  %v2315 = vadd.f32 %v2284, %v939
  %v2316 = vadd.f32 %v2290, %v939
  %v2317 = vadd.f32 %v2296, %v939
  %v2318 = vadd.f32 %v2302, %v939
  %v2319 = vxor.u32 %v2303, 2147483648
  %v2320 = vxor.u32 %v2304, 2147483648
  %v2321 = vxor.u32 %v2305, 2147483648
  %v2322 = vxor.u32 %v2306, 2147483648
  %v2323 = vxor.u32 %v2307, 2147483648
  %v2324 = vxor.u32 %v2308, 2147483648
  %v2325 = vxor.u32 %v2309, 2147483648
  %v2326 = vxor.u32 %v2310, 2147483648
  %v2327 = vxor.u32 %v2311, 2147483648
  %v2328 = vxor.u32 %v2312, 2147483648
  %v2329 = vxor.u32 %v2313, 2147483648
  %v2330 = vxor.u32 %v2314, 2147483648
  %v2331 = vxor.u32 %v2315, 2147483648
  %v2332 = vxor.u32 %v2316, 2147483648
  %v2333 = vxor.u32 %v2317, 2147483648
  %v2334 = vxor.u32 %v2318, 2147483648
  %v2335 = vmul.f32 %v2319, 1.442695
  %v2336 = vpow.pop %v2335
  %v2337 = vmul.f32 %v2320, 1.442695
  %v2338 = vpow.pop %v2337
  %v2339 = vmul.f32 %v2321, 1.442695
  %v2340 = vpow.pop %v2339
  %v2341 = vmul.f32 %v2322, 1.442695
  %v2342 = vpow.pop %v2341
  %v2343 = vmul.f32 %v2323, 1.442695
  %v2344 = vpow.pop %v2343
  %v2345 = vmul.f32 %v2324, 1.442695
  %v2346 = vpow.pop %v2345
  %v2347 = vmul.f32 %v2325, 1.442695
  %v2348 = vpow.pop %v2347
  %v2349 = vmul.f32 %v2326, 1.442695
  %v2350 = vpow.pop %v2349
  %v2351 = vmul.f32 %v2327, 1.442695
  %v2352 = vpow.pop %v2351
  %v2353 = vmul.f32 %v2328, 1.442695
  %v2354 = vpow.pop %v2353
  %v2355 = vmul.f32 %v2329, 1.442695
  %v2356 = vpow.pop %v2355
  %v2357 = vmul.f32 %v2330, 1.442695
  %v2358 = vpow.pop %v2357
  %v2359 = vmul.f32 %v2331, 1.442695
  %v2360 = vpow.pop %v2359
  %v2361 = vmul.f32 %v2332, 1.442695
  %v2362 = vpow.pop %v2361
  %v2363 = vmul.f32 %v2333, 1.442695
  %v2364 = vpow.pop %v2363
  %v2365 = vmul.f32 %v2334, 1.442695
  %v2366 = vpow.pop %v2365
  %v2367 = vadd.f32 %v2336, 1.0
  %v2368 = vadd.f32 %v2338, 1.0
  %v2369 = vadd.f32 %v2340, 1.0
  %v2370 = vadd.f32 %v2342, 1.0
  %v2371 = vadd.f32 %v2344, 1.0
  %v2372 = vadd.f32 %v2346, 1.0
  %v2373 = vadd.f32 %v2348, 1.0
  %v2374 = vadd.f32 %v2350, 1.0
  %v2375 = vadd.f32 %v2352, 1.0
  %v2376 = vadd.f32 %v2354, 1.0
  %v2377 = vadd.f32 %v2356, 1.0
  %v2378 = vadd.f32 %v2358, 1.0
  %v2379 = vadd.f32 %v2360, 1.0
  %v2380 = vadd.f32 %v2362, 1.0
  %v2381 = vadd.f32 %v2364, 1.0
  %v2382 = vadd.f32 %v2366, 1.0
  %v2383 = vrcp.pop %v2367
  %v2384 = vmul.f32 1.0, %v2383
  %v2385 = vrcp.pop %v2368
  %v2386 = vmul.f32 1.0, %v2385
  %v2387 = vrcp.pop %v2369
  %v2388 = vmul.f32 1.0, %v2387
  %v2389 = vrcp.pop %v2370
  %v2390 = vmul.f32 1.0, %v2389
  %v2391 = vrcp.pop %v2371
  %v2392 = vmul.f32 1.0, %v2391
  %v2393 = vrcp.pop %v2372
  %v2394 = vmul.f32 1.0, %v2393
  %v2395 = vrcp.pop %v2373
  %v2396 = vmul.f32 1.0, %v2395
  %v2397 = vrcp.pop %v2374
  %v2398 = vmul.f32 1.0, %v2397
  %v2399 = vrcp.pop %v2375
  %v2400 = vmul.f32 1.0, %v2399
  %v2401 = vrcp.pop %v2376
  %v2402 = vmul.f32 1.0, %v2401
  %v2403 = vrcp.pop %v2377
  %v2404 = vmul.f32 1.0, %v2403
  %v2405 = vrcp.pop %v2378
  %v2406 = vmul.f32 1.0, %v2405
  %v2407 = vrcp.pop %v2379
  %v2408 = vmul.f32 1.0, %v2407
  %v2409 = vrcp.pop %v2380
  %v2410 = vmul.f32 1.0, %v2409
  %v2411 = vrcp.pop %v2381
  %v2412 = vmul.f32 1.0, %v2411
  %v2413 = vrcp.pop %v2382
  %v2414 = vmul.f32 1.0, %v2413
  %2415 = vmatprep.subr.mxu0 0.0
  %2416 = vmatpush1.msra.mxu0 %v64
  %2417 = vmatprep.subr.mxu0 0.0
  %2418 = vmatpush1.msra.mxu0 %v66
  %2419 = vmatprep.subr.mxu0 0.0
  %2420 = vmatpush1.msra.mxu0 %v68
  %2421 = vmatprep.subr.mxu0 0.0
  %2422 = vmatpush1.msra.mxu0 %v70
  %2423 = vmatprep.subr.mxu0 0.0
  %2424 = vmatpush1.msra.mxu0 %v72
  %2425 = vmatprep.subr.mxu0 0.0
  %2426 = vmatpush1.msra.mxu0 %v74
  %2427 = vmatprep.subr.mxu0 0.0
  %2428 = vmatpush1.msra.mxu0 %v76
  %2429 = vmatprep.subr.mxu0 0.0
  %2430 = vmatpush1.msra.mxu0 %v78
  %2431 = vmatprep.subr.mxu0 0.0
  %2432 = vmatpush1.msra.mxu0 %v80
  %2433 = vmatprep.subr.mxu0 0.0
  %2434 = vmatpush1.msra.mxu0 %v82
  %2435 = vmatprep.subr.mxu0 0.0
  %2436 = vmatpush1.msra.mxu0 %v84
  %2437 = vmatprep.subr.mxu0 0.0
  %2438 = vmatpush1.msra.mxu0 %v86
  %2439 = vmatprep.subr.mxu0 0.0
  %2440 = vmatpush1.msra.mxu0 %v88
  %2441 = vmatprep.subr.mxu0 0.0
  %2442 = vmatpush1.msra.mxu0 %v90
  %2443 = vmatprep.subr.mxu0 0.0
  %2444 = vmatpush1.msra.mxu0 %v92
  %2445 = vmatprep.subr.mxu0 0.0
  %2446 = vmatpush1.msra.mxu0 %v94
  %2447 = vmatprep.subr.mxu0 0.0
  %2448 = vmatpush1.msra.mxu0 0.0
  %2449 = vmatprep.subr.mxu0 0.0
  %2450 = vmatpush1.msra.mxu0 0.0
  %2451 = vmatprep.subr.mxu0 0.0
  %2452 = vmatpush1.msra.mxu0 0.0
  %2453 = vmatprep.subr.mxu0 0.0
  %2454 = vmatpush1.msra.mxu0 0.0
  %2455 = vmatprep.subr.mxu0 0.0
  %2456 = vmatpush1.msra.mxu0 0.0
  %2457 = vmatprep.subr.mxu0 0.0
  %2458 = vmatpush1.msra.mxu0 0.0
  %2459 = vmatprep.subr.mxu0 0.0
  %2460 = vmatpush1.msra.mxu0 0.0
  %2461 = vmatprep.subr.mxu0 0.0
  %2462 = vmatpush1.msra.mxu0 0.0
  %2463 = vmatprep.subr.mxu0 0.0
  %2464 = vmatpush1.msra.mxu0 0.0
  %2465 = vmatprep.subr.mxu0 0.0
  %2466 = vmatpush1.msra.mxu0 0.0
  %2467 = vmatprep.subr.mxu0 0.0
  %2468 = vmatpush1.msra.mxu0 0.0
  %2469 = vmatprep.subr.mxu0 0.0
  %2470 = vmatpush1.msra.mxu0 0.0
  %2471 = vmatprep.subr.mxu0 0.0
  %2472 = vmatpush1.msra.mxu0 0.0
  %2473 = vmatprep.subr.mxu0 0.0
  %2474 = vmatpush1.msra.mxu0 0.0
  %2475 = vmatprep.subr.mxu0 0.0
  %2476 = vmatpush1.msra.mxu0 0.0
  %2477 = vmatprep.subr.mxu0 0.0
  %2478 = vmatpush1.msra.mxu0 0.0
  %2479 = vmatprep.mubr.f32.mxu0 0.0
  %2480 = vmatmul.mubr.f32.gmra.mrb[0].mxu0 %v1645
  %v2481 = vpop.f32.mrb[0].mxu0
  %v2482 = vadd.f32 %v1055, %v2481
  %v2483 = vpop.f32.mrb[0].mxu0
  %2484 = vmatprep.mubr.f32.mxu0 0.0
  %2485 = vmatmul.mubr.f32.gmra.mrb[0].mxu0 %v1647
  %v2486 = vpop.f32.mrb[0].mxu0
  %v2487 = vadd.f32 %v1055, %v2486
  %v2488 = vpop.f32.mrb[0].mxu0
  %2489 = vdwg.mxu0
  %v2491 = vsel %vm101, %v1549, 0
  %v2494 = vsel %vm101, %v1550, 0
  %2496 = vmatprep.subr.mxu0 0.0
  %2497 = vmatpush1.msra.mxu0 %v44
  %2498 = vmatprep.subr.mxu0 0.0
  %2499 = vmatpush1.msra.mxu0 %v50
  %2500 = vmatprep.subr.mxu0 0.0
  %2501 = vmatpush1.msra.mxu0 %v56
  %2502 = vmatprep.subr.mxu0 0.0
  %2503 = vmatpush1.msra.mxu0 %v62
  %2504 = vmatprep.subr.mxu0 0.0
  %2505 = vmatpush1.msra.mxu0 0.0
  %2506 = vmatprep.subr.mxu0 0.0
  %2507 = vmatpush1.msra.mxu0 0.0
  %2508 = vmatprep.subr.mxu0 0.0
  %2509 = vmatpush1.msra.mxu0 0.0
  %2510 = vmatprep.subr.mxu0 0.0
  %2511 = vmatpush1.msra.mxu0 0.0
  %2512 = vmatprep.subr.mxu0 0.0
  %2513 = vmatpush1.msra.mxu0 0.0
  %2514 = vmatprep.subr.mxu0 0.0
  %2515 = vmatpush1.msra.mxu0 0.0
  %2516 = vmatprep.subr.mxu0 0.0
  %2517 = vmatpush1.msra.mxu0 0.0
  %2518 = vmatprep.subr.mxu0 0.0
  %2519 = vmatpush1.msra.mxu0 0.0
  %2520 = vmatprep.subr.mxu0 0.0
  %2521 = vmatpush1.msra.mxu0 0.0
  %2522 = vmatprep.subr.mxu0 0.0
  %2523 = vmatpush1.msra.mxu0 0.0
  %2524 = vmatprep.subr.mxu0 0.0
  %2525 = vmatpush1.msra.mxu0 0.0
  %2526 = vmatprep.subr.mxu0 0.0
  %2527 = vmatpush1.msra.mxu0 0.0
  %2528 = vmatprep.subr.mxu0 0.0
  %2529 = vmatpush1.msra.mxu0 0.0
  %2530 = vmatprep.subr.mxu0 0.0
  %2531 = vmatpush1.msra.mxu0 0.0
  %2532 = vmatprep.subr.mxu0 0.0
  %2533 = vmatpush1.msra.mxu0 0.0
  %2534 = vmatprep.subr.mxu0 0.0
  %2535 = vmatpush1.msra.mxu0 0.0
  %2536 = vmatprep.subr.mxu0 0.0
  %2537 = vmatpush1.msra.mxu0 0.0
  %2538 = vmatprep.subr.mxu0 0.0
  %2539 = vmatpush1.msra.mxu0 0.0
  %2540 = vmatprep.subr.mxu0 0.0
  %2541 = vmatpush1.msra.mxu0 0.0
  %2542 = vmatprep.subr.mxu0 0.0
  %2543 = vmatpush1.msra.mxu0 0.0
  %2544 = vmatprep.subr.mxu0 0.0
  %2545 = vmatpush1.msra.mxu0 0.0
  %2546 = vmatprep.subr.mxu0 0.0
  %2547 = vmatpush1.msra.mxu0 0.0
  %2548 = vmatprep.subr.mxu0 0.0
  %2549 = vmatpush1.msra.mxu0 0.0
  %2550 = vmatprep.subr.mxu0 0.0
  %2551 = vmatpush1.msra.mxu0 0.0
  %2552 = vmatprep.subr.mxu0 0.0
  %2553 = vmatpush1.msra.mxu0 0.0
  %2554 = vmatprep.subr.mxu0 0.0
  %2555 = vmatpush1.msra.mxu0 0.0
  %2556 = vmatprep.subr.mxu0 0.0
  %2557 = vmatpush1.msra.mxu0 0.0
  %2558 = vmatprep.subr.mxu0 0.0
  %2559 = vmatpush1.msra.mxu0 0.0
  %2560 = vmatprep.mubr.f32.mxu0 0.0
  %2561 = vmatmul.mubr.f32.gmra.mrb[0].mxu0 %v2491
  %v2562 = vpop.f32.mrb[0].mxu0
  %v2563 = vadd.f32 %v1134, %v2562
  %v2564 = vpop.f32.mrb[0].mxu0
  %2565 = vmatprep.mubr.f32.mxu0 0.0
  %2566 = vmatmul.mubr.f32.gmra.mrb[0].mxu0 %v2494
  %v2567 = vpop.f32.mrb[0].mxu0
  %v2568 = vadd.f32 %v1134, %v2567
  %v2569 = vpop.f32.mrb[0].mxu0
  %2570 = vdwg.mxu0
  %v2571 = vadd.f32 %v2482, %v2563
  %v2572 = vadd.f32 %v2487, %v2568
  %v2573 = vxor.u32 %v2571, 2147483648
  %v2574 = vxor.u32 %v2572, 2147483648
  %v2575 = vmul.f32 %v2573, 1.442695
  %v2576 = vpow.pop %v2575
  %v2577 = vmul.f32 %v2574, 1.442695
  %v2578 = vpow.pop %v2577
  %v2579 = vadd.f32 %v2576, 1.0
  %v2580 = vadd.f32 %v2578, 1.0
  %v2581 = vrcp.pop %v2579
  %v2582 = vmul.f32 1.0, %v2581
  %v2583 = vrcp.pop %v2580
  %v2584 = vmul.f32 1.0, %v2583
  %2587 = vrot.lane.b32.xlu0 %v2563, 64
  %v2588 = vpop.permute.xlu0 %2587
  %2589 = vrot.lane.b32.xlu0 %v2568, 64
  %v2590 = vpop.permute.xlu0 %2589
  %v2593 = vmul.f32 %v2582, %v2588
  %v2594 = vmul.f32 %v2584, %v2590
  %2597 = vrot.lane.b32.xlu0 %v2593, 64
  %v2598 = vpop.permute.xlu0 %2597
  %2599 = vrot.lane.b32.xlu0 %v2594, 64
  %v2600 = vpop.permute.xlu0 %2599
  %v2603 = vadd.f32 %v2482, %v2598
  %v2604 = vadd.f32 %v2487, %v2600
  %v2605 = vtanh.pop %v2603
  %v2606 = vtanh.pop %v2604
  %v2607 = vsub.f32 1.0, %v2582
  %v2608 = vsub.f32 1.0, %v2584
  %2611 = vrot.lane.b32.xlu0 %v2605, 96
  %v2612 = vpop.permute.xlu0 %2611
  %2613 = vrot.lane.b32.xlu0 %v2606, 96
  %v2614 = vpop.permute.xlu0 %2613
  %v2617 = vmul.f32 %v2607, %v2612
  %v2618 = vmul.f32 %v2608, %v2614
  %2619 = vrot.lane.b32.xlu0 %v1549, 32
  %v2620 = vpop.permute.xlu0 %2619
  %2621 = vrot.lane.b32.xlu0 %v1550, 32
  %v2622 = vpop.permute.xlu0 %2621
  %v2625 = vmul.f32 %v2582, %v2620
  %v2626 = vmul.f32 %v2584, %v2622
  %v2627 = vadd.f32 %v2617, %v2625
  %v2628 = vadd.f32 %v2618, %v2626
  %v2645 = vrot.slane %v2386, 7
  %v2646 = vsel %vm1289, %v2645, %v2384
  %v2647 = vrot.slane %v2388, 6
  %v2648 = vsel %vm1292, %v2647, %v2646
  %v2649 = vrot.slane %v2390, 5
  %v2650 = vsel %vm1295, %v2649, %v2648
  %v2651 = vrot.slane %v2392, 4
  %v2652 = vsel %vm1298, %v2651, %v2650
  %v2653 = vrot.slane %v2394, 3
  %v2654 = vsel %vm1301, %v2653, %v2652
  %v2655 = vrot.slane %v2396, 2
  %v2656 = vsel %vm1304, %v2655, %v2654
  %v2657 = vrot.slane %v2398, 1
  %v2658 = vsel %vm1307, %v2657, %v2656
  %v2659 = vrot.slane %v2402, 7
  %v2660 = vsel %vm1289, %v2659, %v2400
  %v2661 = vrot.slane %v2404, 6
  %v2662 = vsel %vm1292, %v2661, %v2660
  %v2663 = vrot.slane %v2406, 5
  %v2664 = vsel %vm1295, %v2663, %v2662
  %v2665 = vrot.slane %v2408, 4
  %v2666 = vsel %vm1298, %v2665, %v2664
  %v2667 = vrot.slane %v2410, 3
  %v2668 = vsel %vm1301, %v2667, %v2666
  %v2669 = vrot.slane %v2412, 2
  %v2670 = vsel %vm1304, %v2669, %v2668
  %v2671 = vrot.slane %v2414, 1
  %v2672 = vsel %vm1307, %v2671, %v2670
  %2675 = vmatprep.subr.mxu0 0.0
  %2676 = vmatpush1.msra.mxu0 %v65
  %2677 = vmatprep.subr.mxu0 0.0
  %2678 = vmatpush1.msra.mxu0 %v67
  %2679 = vmatprep.subr.mxu0 0.0
  %2680 = vmatpush1.msra.mxu0 %v69
  %2681 = vmatprep.subr.mxu0 0.0
  %2682 = vmatpush1.msra.mxu0 %v71
  %2683 = vmatprep.subr.mxu0 0.0
  %2684 = vmatpush1.msra.mxu0 %v73
  %2685 = vmatprep.subr.mxu0 0.0
  %2686 = vmatpush1.msra.mxu0 %v75
  %2687 = vmatprep.subr.mxu0 0.0
  %2688 = vmatpush1.msra.mxu0 %v77
  %2689 = vmatprep.subr.mxu0 0.0
  %2690 = vmatpush1.msra.mxu0 %v79
  %2691 = vmatprep.subr.mxu0 0.0
  %2692 = vmatpush1.msra.mxu0 %v81
  %2693 = vmatprep.subr.mxu0 0.0
  %2694 = vmatpush1.msra.mxu0 %v83
  %2695 = vmatprep.subr.mxu0 0.0
  %2696 = vmatpush1.msra.mxu0 %v85
  %2697 = vmatprep.subr.mxu0 0.0
  %2698 = vmatpush1.msra.mxu0 %v87
  %2699 = vmatprep.subr.mxu0 0.0
  %2700 = vmatpush1.msra.mxu0 %v89
  %2701 = vmatprep.subr.mxu0 0.0
  %2702 = vmatpush1.msra.mxu0 %v91
  %2703 = vmatprep.subr.mxu0 0.0
  %2704 = vmatpush1.msra.mxu0 %v93
  %2705 = vmatprep.subr.mxu0 0.0
  %2706 = vmatpush1.msra.mxu0 %v95
  %2707 = vmatprep.subr.mxu0 0.0
  %2708 = vmatpush1.msra.mxu0 0.0
  %2709 = vmatprep.subr.mxu0 0.0
  %2710 = vmatpush1.msra.mxu0 0.0
  %2711 = vmatprep.subr.mxu0 0.0
  %2712 = vmatpush1.msra.mxu0 0.0
  %2713 = vmatprep.subr.mxu0 0.0
  %2714 = vmatpush1.msra.mxu0 0.0
  %2715 = vmatprep.subr.mxu0 0.0
  %2716 = vmatpush1.msra.mxu0 0.0
  %2717 = vmatprep.subr.mxu0 0.0
  %2718 = vmatpush1.msra.mxu0 0.0
  %2719 = vmatprep.subr.mxu0 0.0
  %2720 = vmatpush1.msra.mxu0 0.0
  %2721 = vmatprep.subr.mxu0 0.0
  %2722 = vmatpush1.msra.mxu0 0.0
  %2723 = vmatprep.subr.mxu0 0.0
  %2724 = vmatpush1.msra.mxu0 0.0
  %2725 = vmatprep.subr.mxu0 0.0
  %2726 = vmatpush1.msra.mxu0 0.0
  %2727 = vmatprep.subr.mxu0 0.0
  %2728 = vmatpush1.msra.mxu0 0.0
  %2729 = vmatprep.subr.mxu0 0.0
  %2730 = vmatpush1.msra.mxu0 0.0
  %2731 = vmatprep.subr.mxu0 0.0
  %2732 = vmatpush1.msra.mxu0 0.0
  %2733 = vmatprep.subr.mxu0 0.0
  %2734 = vmatpush1.msra.mxu0 0.0
  %2735 = vmatprep.subr.mxu0 0.0
  %2736 = vmatpush1.msra.mxu0 0.0
  %2737 = vmatprep.subr.mxu0 0.0
  %2738 = vmatpush1.msra.mxu0 0.0
  %2739 = vmatprep.mubr.f32.mxu0 0.0
  %2740 = vmatmul.mubr.f32.gmra.mrb[0].mxu0 %v2658
  %v2741 = vpop.f32.mrb[0].mxu0
  %v2742 = vadd.f32 %v1271, %v2741
  %v2743 = vpop.f32.mrb[0].mxu0
  %2744 = vmatprep.mubr.f32.mxu0 0.0
  %2745 = vmatmul.mubr.f32.gmra.mrb[0].mxu0 %v2672
  %v2746 = vpop.f32.mrb[0].mxu0
  %v2747 = vadd.f32 %v1271, %v2746
  %v2748 = vpop.f32.mrb[0].mxu0
  %2749 = vdwg.mxu0
  %2750 = vmatprep.subr.mxu0 0.0
  %2751 = vmatpush1.msra.mxu0 %v45
  %2752 = vmatprep.subr.mxu0 0.0
  %2753 = vmatpush1.msra.mxu0 %v51
  %2754 = vmatprep.subr.mxu0 0.0
  %2755 = vmatpush1.msra.mxu0 %v57
  %2756 = vmatprep.subr.mxu0 0.0
  %2757 = vmatpush1.msra.mxu0 %v63
  %2758 = vmatprep.subr.mxu0 0.0
  %2759 = vmatpush1.msra.mxu0 0.0
  %2760 = vmatprep.subr.mxu0 0.0
  %2761 = vmatpush1.msra.mxu0 0.0
  %2762 = vmatprep.subr.mxu0 0.0
  %2763 = vmatpush1.msra.mxu0 0.0
  %2764 = vmatprep.subr.mxu0 0.0
  %2765 = vmatpush1.msra.mxu0 0.0
  %2766 = vmatprep.subr.mxu0 0.0
  %2767 = vmatpush1.msra.mxu0 0.0
  %2768 = vmatprep.subr.mxu0 0.0
  %2769 = vmatpush1.msra.mxu0 0.0
  %2770 = vmatprep.subr.mxu0 0.0
  %2771 = vmatpush1.msra.mxu0 0.0
  %2772 = vmatprep.subr.mxu0 0.0
  %2773 = vmatpush1.msra.mxu0 0.0
  %2774 = vmatprep.subr.mxu0 0.0
  %2775 = vmatpush1.msra.mxu0 0.0
  %2776 = vmatprep.subr.mxu0 0.0
  %2777 = vmatpush1.msra.mxu0 0.0
  %2778 = vmatprep.subr.mxu0 0.0
  %2779 = vmatpush1.msra.mxu0 0.0
  %2780 = vmatprep.subr.mxu0 0.0
  %2781 = vmatpush1.msra.mxu0 0.0
  %2782 = vmatprep.subr.mxu0 0.0
  %2783 = vmatpush1.msra.mxu0 0.0
  %2784 = vmatprep.subr.mxu0 0.0
  %2785 = vmatpush1.msra.mxu0 0.0
  %2786 = vmatprep.subr.mxu0 0.0
  %2787 = vmatpush1.msra.mxu0 0.0
  %2788 = vmatprep.subr.mxu0 0.0
  %2789 = vmatpush1.msra.mxu0 0.0
  %2790 = vmatprep.subr.mxu0 0.0
  %2791 = vmatpush1.msra.mxu0 0.0
  %2792 = vmatprep.subr.mxu0 0.0
  %2793 = vmatpush1.msra.mxu0 0.0
  %2794 = vmatprep.subr.mxu0 0.0
  %2795 = vmatpush1.msra.mxu0 0.0
  %2796 = vmatprep.subr.mxu0 0.0
  %2797 = vmatpush1.msra.mxu0 0.0
  %2798 = vmatprep.subr.mxu0 0.0
  %2799 = vmatpush1.msra.mxu0 0.0
  %2800 = vmatprep.subr.mxu0 0.0
  %2801 = vmatpush1.msra.mxu0 0.0
  %2802 = vmatprep.subr.mxu0 0.0
  %2803 = vmatpush1.msra.mxu0 0.0
  %2804 = vmatprep.subr.mxu0 0.0
  %2805 = vmatpush1.msra.mxu0 0.0
  %2806 = vmatprep.subr.mxu0 0.0
  %2807 = vmatpush1.msra.mxu0 0.0
  %2808 = vmatprep.subr.mxu0 0.0
  %2809 = vmatpush1.msra.mxu0 0.0
  %2810 = vmatprep.subr.mxu0 0.0
  %2811 = vmatpush1.msra.mxu0 0.0
  %2812 = vmatprep.subr.mxu0 0.0
  %2813 = vmatpush1.msra.mxu0 0.0
  %2814 = vmatprep.mubr.f32.mxu0 0.0
  %2815 = vmatmul.mubr.f32.gmra.mrb[0].mxu0 %v2491
  %v2816 = vpop.f32.mrb[0].mxu0
  %v2817 = vadd.f32 %v1403, %v2816
  %v2818 = vpop.f32.mrb[0].mxu0
  %2819 = vmatprep.mubr.f32.mxu0 0.0
  %2820 = vmatmul.mubr.f32.gmra.mrb[0].mxu0 %v2494
  %v2821 = vpop.f32.mrb[0].mxu0
  %v2822 = vadd.f32 %v1403, %v2821
  %v2823 = vpop.f32.mrb[0].mxu0
  %2824 = vdwg.mxu0
  %v2825 = vadd.f32 %v2742, %v2817
  %v2826 = vadd.f32 %v2747, %v2822
  %v2827 = vxor.u32 %v2825, 2147483648
  %v2828 = vxor.u32 %v2826, 2147483648
  %v2829 = vmul.f32 %v2827, 1.442695
  %v2830 = vpow.pop %v2829
  %v2831 = vmul.f32 %v2828, 1.442695
  %v2832 = vpow.pop %v2831
  %v2833 = vadd.f32 %v2830, 1.0
  %v2834 = vadd.f32 %v2832, 1.0
  %v2835 = vrcp.pop %v2833
  %v2836 = vmul.f32 1.0, %v2835
  %v2837 = vrcp.pop %v2834
  %v2838 = vmul.f32 1.0, %v2837
  %2841 = vrot.lane.b32.xlu0 %v2817, 64
  %v2842 = vpop.permute.xlu0 %2841
  %2843 = vrot.lane.b32.xlu0 %v2822, 64
  %v2844 = vpop.permute.xlu0 %2843
  %v2847 = vmul.f32 %v2836, %v2842
  %v2848 = vmul.f32 %v2838, %v2844
  %2851 = vrot.lane.b32.xlu0 %v2847, 64
  %v2852 = vpop.permute.xlu0 %2851
  %2853 = vrot.lane.b32.xlu0 %v2848, 64
  %v2854 = vpop.permute.xlu0 %2853
  %v2857 = vadd.f32 %v2742, %v2852
  %v2858 = vadd.f32 %v2747, %v2854
  %v2859 = vtanh.pop %v2857
  %v2860 = vtanh.pop %v2858
  %v2861 = vsub.f32 1.0, %v2836
  %v2862 = vsub.f32 1.0, %v2838
  %2865 = vrot.lane.b32.xlu0 %v2859, 96
  %v2866 = vpop.permute.xlu0 %2865
  %2867 = vrot.lane.b32.xlu0 %v2860, 96
  %v2868 = vpop.permute.xlu0 %2867
  %v2871 = vmul.f32 %v2861, %v2866
  %v2872 = vmul.f32 %v2862, %v2868
  %v2873 = vmul.f32 %v2836, %v2620
  %v2874 = vmul.f32 %v2838, %v2622
  %v2875 = vadd.f32 %v2871, %v2873
  %v2876 = vadd.f32 %v2872, %v2874
  %2879 = vrot.lane.b32.xlu0 %v2627, 96
  %v2880 = vpop.permute.xlu0 %2879
  %2881 = vrot.lane.b32.xlu0 %v2628, 96
  %v2882 = vpop.permute.xlu0 %2881
  %v2883 = vsel %vm101, %v2880, 0
  %v2885 = vsel %vm101, %v2882, 0
  %2887 = vmatprep.subr.mxu0 0.0
  %2888 = vmatpush1.msra.mxu0 %v40
  %2889 = vmatprep.subr.mxu0 0.0
  %2890 = vmatpush1.msra.mxu0 %v46
  %2891 = vmatprep.subr.mxu0 0.0
  %2892 = vmatpush1.msra.mxu0 %v52
  %2893 = vmatprep.subr.mxu0 0.0
  %2894 = vmatpush1.msra.mxu0 %v58
  %2895 = vmatprep.subr.mxu0 0.0
  %2896 = vmatpush1.msra.mxu0 0.0
  %2897 = vmatprep.subr.mxu0 0.0
  %2898 = vmatpush1.msra.mxu0 0.0
  %2899 = vmatprep.subr.mxu0 0.0
  %2900 = vmatpush1.msra.mxu0 0.0
  %2901 = vmatprep.subr.mxu0 0.0
  %2902 = vmatpush1.msra.mxu0 0.0
  %2903 = vmatprep.subr.mxu0 0.0
  %2904 = vmatpush1.msra.mxu0 0.0
  %2905 = vmatprep.subr.mxu0 0.0
  %2906 = vmatpush1.msra.mxu0 0.0
  %2907 = vmatprep.subr.mxu0 0.0
  %2908 = vmatpush1.msra.mxu0 0.0
  %2909 = vmatprep.subr.mxu0 0.0
  %2910 = vmatpush1.msra.mxu0 0.0
  %2911 = vmatprep.subr.mxu0 0.0
  %2912 = vmatpush1.msra.mxu0 0.0
  %2913 = vmatprep.subr.mxu0 0.0
  %2914 = vmatpush1.msra.mxu0 0.0
  %2915 = vmatprep.subr.mxu0 0.0
  %2916 = vmatpush1.msra.mxu0 0.0
  %2917 = vmatprep.subr.mxu0 0.0
  %2918 = vmatpush1.msra.mxu0 0.0
  %2919 = vmatprep.subr.mxu0 0.0
  %2920 = vmatpush1.msra.mxu0 0.0
  %2921 = vmatprep.subr.mxu0 0.0
  %2922 = vmatpush1.msra.mxu0 0.0
  %2923 = vmatprep.subr.mxu0 0.0
  %2924 = vmatpush1.msra.mxu0 0.0
  %2925 = vmatprep.subr.mxu0 0.0
  %2926 = vmatpush1.msra.mxu0 0.0
  %2927 = vmatprep.subr.mxu0 0.0
  %2928 = vmatpush1.msra.mxu0 0.0
  %2929 = vmatprep.subr.mxu0 0.0
  %2930 = vmatpush1.msra.mxu0 0.0
  %2931 = vmatprep.subr.mxu0 0.0
  %2932 = vmatpush1.msra.mxu0 0.0
  %2933 = vmatprep.subr.mxu0 0.0
  %2934 = vmatpush1.msra.mxu0 0.0
  %2935 = vmatprep.subr.mxu0 0.0
  %2936 = vmatpush1.msra.mxu0 0.0
  %2937 = vmatprep.subr.mxu0 0.0
  %2938 = vmatpush1.msra.mxu0 0.0
  %2939 = vmatprep.subr.mxu0 0.0
  %2940 = vmatpush1.msra.mxu0 0.0
  %2941 = vmatprep.subr.mxu0 0.0
  %2942 = vmatpush1.msra.mxu0 0.0
  %2943 = vmatprep.subr.mxu0 0.0
  %2944 = vmatpush1.msra.mxu0 0.0
  %2945 = vmatprep.subr.mxu0 0.0
  %2946 = vmatpush1.msra.mxu0 0.0
  %2947 = vmatprep.subr.mxu0 0.0
  %2948 = vmatpush1.msra.mxu0 0.0
  %2949 = vmatprep.subr.mxu0 0.0
  %2950 = vmatpush1.msra.mxu0 0.0
  %2951 = vmatprep.mubr.f32.mxu0 0.0
  %2952 = vmatmul.mubr.f32.gmra.mrb[0].mxu0 %v2883
  %v2953 = vpop.f32.mrb[0].mxu0
  %v2954 = vadd.f32 %v100, %v2953
  %v2955 = vpop.f32.mrb[0].mxu0
  %2956 = vmatprep.mubr.f32.mxu0 0.0
  %2957 = vmatmul.mubr.f32.gmra.mrb[0].mxu0 %v2885
  %v2958 = vpop.f32.mrb[0].mxu0
  %v2959 = vadd.f32 %v100, %v2958
  %v2960 = vpop.f32.mrb[0].mxu0
  %2961 = vdwg.mxu0
  %2962 = vst [vmem:[%s5] sm:$0xff] %v2954
  %2963 = vst [vmem:[%s5 + $0x8] sm:$0xff] %v2959
  %2966 = vrot.lane.b32.xlu0 %v2875, 96
  %v2967 = vpop.permute.xlu0 %2966
  %2968 = vrot.lane.b32.xlu0 %v2876, 96
  %v2969 = vpop.permute.xlu0 %2968
  %v2970 = vsel %vm101, %v2967, 0
  %v2972 = vsel %vm101, %v2969, 0
  %2974 = vmatprep.subr.mxu0 0.0
  %2975 = vmatpush1.msra.mxu0 %v41
  %2976 = vmatprep.subr.mxu0 0.0
  %2977 = vmatpush1.msra.mxu0 %v47
  %2978 = vmatprep.subr.mxu0 0.0
  %2979 = vmatpush1.msra.mxu0 %v53
  %2980 = vmatprep.subr.mxu0 0.0
  %2981 = vmatpush1.msra.mxu0 %v59
  %2982 = vmatprep.subr.mxu0 0.0
  %2983 = vmatpush1.msra.mxu0 0.0
  %2984 = vmatprep.subr.mxu0 0.0
  %2985 = vmatpush1.msra.mxu0 0.0
  %2986 = vmatprep.subr.mxu0 0.0
  %2987 = vmatpush1.msra.mxu0 0.0
  %2988 = vmatprep.subr.mxu0 0.0
  %2989 = vmatpush1.msra.mxu0 0.0
  %2990 = vmatprep.subr.mxu0 0.0
  %2991 = vmatpush1.msra.mxu0 0.0
  %2992 = vmatprep.subr.mxu0 0.0
  %2993 = vmatpush1.msra.mxu0 0.0
  %2994 = vmatprep.subr.mxu0 0.0
  %2995 = vmatpush1.msra.mxu0 0.0
  %2996 = vmatprep.subr.mxu0 0.0
  %2997 = vmatpush1.msra.mxu0 0.0
  %2998 = vmatprep.subr.mxu0 0.0
  %2999 = vmatpush1.msra.mxu0 0.0
  %3000 = vmatprep.subr.mxu0 0.0
  %3001 = vmatpush1.msra.mxu0 0.0
  %3002 = vmatprep.subr.mxu0 0.0
  %3003 = vmatpush1.msra.mxu0 0.0
  %3004 = vmatprep.subr.mxu0 0.0
  %3005 = vmatpush1.msra.mxu0 0.0
  %3006 = vmatprep.subr.mxu0 0.0
  %3007 = vmatpush1.msra.mxu0 0.0
  %3008 = vmatprep.subr.mxu0 0.0
  %3009 = vmatpush1.msra.mxu0 0.0
  %3010 = vmatprep.subr.mxu0 0.0
  %3011 = vmatpush1.msra.mxu0 0.0
  %3012 = vmatprep.subr.mxu0 0.0
  %3013 = vmatpush1.msra.mxu0 0.0
  %3014 = vmatprep.subr.mxu0 0.0
  %3015 = vmatpush1.msra.mxu0 0.0
  %3016 = vmatprep.subr.mxu0 0.0
  %3017 = vmatpush1.msra.mxu0 0.0
  %3018 = vmatprep.subr.mxu0 0.0
  %3019 = vmatpush1.msra.mxu0 0.0
  %3020 = vmatprep.subr.mxu0 0.0
  %3021 = vmatpush1.msra.mxu0 0.0
  %3022 = vmatprep.subr.mxu0 0.0
  %3023 = vmatpush1.msra.mxu0 0.0
  %3024 = vmatprep.subr.mxu0 0.0
  %3025 = vmatpush1.msra.mxu0 0.0
  %3026 = vmatprep.subr.mxu0 0.0
  %3027 = vmatpush1.msra.mxu0 0.0
  %3028 = vmatprep.subr.mxu0 0.0
  %3029 = vmatpush1.msra.mxu0 0.0
  %3030 = vmatprep.subr.mxu0 0.0
  %3031 = vmatpush1.msra.mxu0 0.0
  %3032 = vmatprep.subr.mxu0 0.0
  %3033 = vmatpush1.msra.mxu0 0.0
  %3034 = vmatprep.subr.mxu0 0.0
  %3035 = vmatpush1.msra.mxu0 0.0
  %3036 = vmatprep.subr.mxu0 0.0
  %3037 = vmatpush1.msra.mxu0 0.0
  %3038 = vmatprep.mubr.f32.mxu0 0.0
  %3039 = vmatmul.mubr.f32.gmra.mrb[0].mxu0 %v2970
  %v3040 = vpop.f32.mrb[0].mxu0
  %v3041 = vadd.f32 %v204, %v3040
  %v3042 = vpop.f32.mrb[0].mxu0
  %3043 = vmatprep.mubr.f32.mxu0 0.0
  %3044 = vmatmul.mubr.f32.gmra.mrb[0].mxu0 %v2972
  %v3045 = vpop.f32.mrb[0].mxu0
  %v3046 = vadd.f32 %v204, %v3045
  %v3047 = vpop.f32.mrb[0].mxu0
  %3048 = vdwg.mxu0
  %3049 = vmatprep.subr.mxu0 0.0
  %3050 = vmatpush1.msra.mxu0 %v42
  %3051 = vmatprep.subr.mxu0 0.0
  %3052 = vmatpush1.msra.mxu0 %v48
  %3053 = vmatprep.subr.mxu0 0.0
  %3054 = vmatpush1.msra.mxu0 %v54
  %3055 = vmatprep.subr.mxu0 0.0
  %3056 = vmatpush1.msra.mxu0 %v60
  %3057 = vmatprep.subr.mxu0 0.0
  %3058 = vmatpush1.msra.mxu0 0.0
  %3059 = vmatprep.subr.mxu0 0.0
  %3060 = vmatpush1.msra.mxu0 0.0
  %3061 = vmatprep.subr.mxu0 0.0
  %3062 = vmatpush1.msra.mxu0 0.0
  %3063 = vmatprep.subr.mxu0 0.0
  %3064 = vmatpush1.msra.mxu0 0.0
  %3065 = vmatprep.subr.mxu0 0.0
  %3066 = vmatpush1.msra.mxu0 0.0
  %3067 = vmatprep.subr.mxu0 0.0
  %3068 = vmatpush1.msra.mxu0 0.0
  %3069 = vmatprep.subr.mxu0 0.0
  %3070 = vmatpush1.msra.mxu0 0.0
  %3071 = vmatprep.subr.mxu0 0.0
  %3072 = vmatpush1.msra.mxu0 0.0
  %3073 = vmatprep.subr.mxu0 0.0
  %3074 = vmatpush1.msra.mxu0 0.0
  %3075 = vmatprep.subr.mxu0 0.0
  %3076 = vmatpush1.msra.mxu0 0.0
  %3077 = vmatprep.subr.mxu0 0.0
  %3078 = vmatpush1.msra.mxu0 0.0
  %3079 = vmatprep.subr.mxu0 0.0
  %3080 = vmatpush1.msra.mxu0 0.0
  %3081 = vmatprep.subr.mxu0 0.0
  %3082 = vmatpush1.msra.mxu0 0.0
  %3083 = vmatprep.subr.mxu0 0.0
  %3084 = vmatpush1.msra.mxu0 0.0
  %3085 = vmatprep.subr.mxu0 0.0
  %3086 = vmatpush1.msra.mxu0 0.0
  %3087 = vmatprep.subr.mxu0 0.0
  %3088 = vmatpush1.msra.mxu0 0.0
  %3089 = vmatprep.subr.mxu0 0.0
  %3090 = vmatpush1.msra.mxu0 0.0
  %3091 = vmatprep.subr.mxu0 0.0
  %3092 = vmatpush1.msra.mxu0 0.0
  %3093 = vmatprep.subr.mxu0 0.0
  %3094 = vmatpush1.msra.mxu0 0.0
  %3095 = vmatprep.subr.mxu0 0.0
  %3096 = vmatpush1.msra.mxu0 0.0
  %3097 = vmatprep.subr.mxu0 0.0
  %3098 = vmatpush1.msra.mxu0 0.0
  %3099 = vmatprep.subr.mxu0 0.0
  %3100 = vmatpush1.msra.mxu0 0.0
  %3101 = vmatprep.subr.mxu0 0.0
  %3102 = vmatpush1.msra.mxu0 0.0
  %3103 = vmatprep.subr.mxu0 0.0
  %3104 = vmatpush1.msra.mxu0 0.0
  %3105 = vmatprep.subr.mxu0 0.0
  %3106 = vmatpush1.msra.mxu0 0.0
  %3107 = vmatprep.subr.mxu0 0.0
  %3108 = vmatpush1.msra.mxu0 0.0
  %3109 = vmatprep.subr.mxu0 0.0
  %3110 = vmatpush1.msra.mxu0 0.0
  %3111 = vmatprep.subr.mxu0 0.0
  %3112 = vmatpush1.msra.mxu0 0.0
  %3113 = vmatprep.mubr.f32.mxu0 0.0
  %3114 = vmatmul.mubr.f32.gmra.mrb[0].mxu0 %v2970
  %v3115 = vpop.f32.mrb[0].mxu0
  %v3116 = vadd.f32 0.0, %v3115
  %v3117 = vpop.f32.mrb[0].mxu0
  %3118 = vmatprep.mubr.f32.mxu0 0.0
  %3119 = vmatmul.mubr.f32.gmra.mrb[0].mxu0 %v2972
  %v3120 = vpop.f32.mrb[0].mxu0
  %v3121 = vadd.f32 0.0, %v3120
  %v3122 = vpop.f32.mrb[0].mxu0
  %3123 = vdwg.mxu0
  %v3126 = vcombine.high %v3041, %v3041
  %v3128 = vunpack.c.l.s4 1966171168
  %v3129 = vunpack.c.0.s8 %v3128
  %v3130 = vlaneseq
  %v3131 = vshrl.u32 %v3130, 7
  %v3132 = vsub.s32 %v3129, %v3131
  %v3133 = vrot.slane %v3041, %v3132
  %v3135 = vunpack.c.l.s4 1966171168
  %v3136 = vunpack.c.0.s8 %v3135
  %v3137 = vlaneseq
  %v3138 = vshrl.u32 %v3137, 7
  %v3139 = vsub.s32 %v3136, %v3138
  %v3140 = vrot.slane %v3126, %v3139
  %v3141 = vcombine.high %v3133, %v3133
  %v3142 = vcombine.high %v3140, %v3140
  %v3144 = vunpack.c.l.s4 1966171168
  %v3145 = vunpack.c.0.s8 %v3144
  %v3146 = vlaneseq
  %v3147 = vshrl.u32 %v3146, 7
  %v3148 = vsub.s32 %v3145, %v3147
  %v3149 = vrot.slane %v3133, %v3148
  %v3151 = vunpack.c.l.s4 1966171168
  %v3152 = vunpack.c.0.s8 %v3151
  %v3153 = vlaneseq
  %v3154 = vshrl.u32 %v3153, 7
  %v3155 = vsub.s32 %v3152, %v3154
  %v3156 = vrot.slane %v3140, %v3155
  %v3158 = vunpack.c.l.s4 1966171168
  %v3159 = vunpack.c.0.s8 %v3158
  %v3160 = vlaneseq
  %v3161 = vshrl.u32 %v3160, 7
  %v3162 = vsub.s32 %v3159, %v3161
  %v3163 = vrot.slane %v3141, %v3162
  %v3165 = vunpack.c.l.s4 1966171168
  %v3166 = vunpack.c.0.s8 %v3165
  %v3167 = vlaneseq
  %v3168 = vshrl.u32 %v3167, 7
  %v3169 = vsub.s32 %v3166, %v3168
  %v3170 = vrot.slane %v3142, %v3169
  %v3171 = vcombine.high %v3149, %v3149
  %v3172 = vcombine.high %v3156, %v3156
  %v3173 = vcombine.high %v3163, %v3163
  %v3174 = vcombine.high %v3170, %v3170
  %v3175 = vcombine.high %v3046, %v3046
  %v3177 = vunpack.c.l.s4 1966171168
  %v3178 = vunpack.c.0.s8 %v3177
  %v3179 = vlaneseq
  %v3180 = vshrl.u32 %v3179, 7
  %v3181 = vsub.s32 %v3178, %v3180
  %v3182 = vrot.slane %v3046, %v3181
  %v3184 = vunpack.c.l.s4 1966171168
  %v3185 = vunpack.c.0.s8 %v3184
  %v3186 = vlaneseq
  %v3187 = vshrl.u32 %v3186, 7
  %v3188 = vsub.s32 %v3185, %v3187
  %v3189 = vrot.slane %v3175, %v3188
  %v3190 = vcombine.high %v3182, %v3182
  %v3191 = vcombine.high %v3189, %v3189
  %v3193 = vunpack.c.l.s4 1966171168
  %v3194 = vunpack.c.0.s8 %v3193
  %v3195 = vlaneseq
  %v3196 = vshrl.u32 %v3195, 7
  %v3197 = vsub.s32 %v3194, %v3196
  %v3198 = vrot.slane %v3182, %v3197
  %v3200 = vunpack.c.l.s4 1966171168
  %v3201 = vunpack.c.0.s8 %v3200
  %v3202 = vlaneseq
  %v3203 = vshrl.u32 %v3202, 7
  %v3204 = vsub.s32 %v3201, %v3203
  %v3205 = vrot.slane %v3189, %v3204
  %v3207 = vunpack.c.l.s4 1966171168
  %v3208 = vunpack.c.0.s8 %v3207
  %v3209 = vlaneseq
  %v3210 = vshrl.u32 %v3209, 7
  %v3211 = vsub.s32 %v3208, %v3210
  %v3212 = vrot.slane %v3190, %v3211
  %v3214 = vunpack.c.l.s4 1966171168
  %v3215 = vunpack.c.0.s8 %v3214
  %v3216 = vlaneseq
  %v3217 = vshrl.u32 %v3216, 7
  %v3218 = vsub.s32 %v3215, %v3217
  %v3219 = vrot.slane %v3191, %v3218
  %v3220 = vcombine.high %v3198, %v3198
  %v3221 = vcombine.high %v3205, %v3205
  %v3222 = vcombine.high %v3212, %v3212
  %v3223 = vcombine.high %v3219, %v3219
  %v3224 = vlaneseq
  %v3225 = vshrl.u32 %v3224, 7
  %v3226 = vsub.s32 0, %v3225
  %v3227 = vrot.slane %v3149, %v3226
  %v3228 = vlaneseq
  %v3229 = vshrl.u32 %v3228, 7
  %v3230 = vsub.s32 0, %v3229
  %v3231 = vrot.slane %v3163, %v3230
  %v3232 = vlaneseq
  %v3233 = vshrl.u32 %v3232, 7
  %v3234 = vsub.s32 0, %v3233
  %v3235 = vrot.slane %v3171, %v3234
  %v3236 = vlaneseq
  %v3237 = vshrl.u32 %v3236, 7
  %v3238 = vsub.s32 0, %v3237
  %v3239 = vrot.slane %v3173, %v3238
  %v3240 = vlaneseq
  %v3241 = vshrl.u32 %v3240, 7
  %v3242 = vsub.s32 0, %v3241
  %v3243 = vrot.slane %v3156, %v3242
  %v3244 = vlaneseq
  %v3245 = vshrl.u32 %v3244, 7
  %v3246 = vsub.s32 0, %v3245
  %v3247 = vrot.slane %v3170, %v3246
  %v3248 = vlaneseq
  %v3249 = vshrl.u32 %v3248, 7
  %v3250 = vsub.s32 0, %v3249
  %v3251 = vrot.slane %v3172, %v3250
  %v3252 = vlaneseq
  %v3253 = vshrl.u32 %v3252, 7
  %v3254 = vsub.s32 0, %v3253
  %v3255 = vrot.slane %v3174, %v3254
  %v3256 = vlaneseq
  %v3257 = vshrl.u32 %v3256, 7
  %v3258 = vsub.s32 0, %v3257
  %v3259 = vrot.slane %v3198, %v3258
  %v3260 = vlaneseq
  %v3261 = vshrl.u32 %v3260, 7
  %v3262 = vsub.s32 0, %v3261
  %v3263 = vrot.slane %v3212, %v3262
  %v3264 = vlaneseq
  %v3265 = vshrl.u32 %v3264, 7
  %v3266 = vsub.s32 0, %v3265
  %v3267 = vrot.slane %v3220, %v3266
  %v3268 = vlaneseq
  %v3269 = vshrl.u32 %v3268, 7
  %v3270 = vsub.s32 0, %v3269
  %v3271 = vrot.slane %v3222, %v3270
  %v3272 = vlaneseq
  %v3273 = vshrl.u32 %v3272, 7
  %v3274 = vsub.s32 0, %v3273
  %v3275 = vrot.slane %v3205, %v3274
  %v3276 = vlaneseq
  %v3277 = vshrl.u32 %v3276, 7
  %v3278 = vsub.s32 0, %v3277
  %v3279 = vrot.slane %v3219, %v3278
  %v3280 = vlaneseq
  %v3281 = vshrl.u32 %v3280, 7
  %v3282 = vsub.s32 0, %v3281
  %v3283 = vrot.slane %v3221, %v3282
  %v3284 = vlaneseq
  %v3285 = vshrl.u32 %v3284, 7
  %v3286 = vsub.s32 0, %v3285
  %v3287 = vrot.slane %v3223, %v3286
  %v3304 = vadd.f32 %v3227, %v3116
  %v3305 = vadd.f32 %v3231, %v3116
  %v3306 = vadd.f32 %v3235, %v3116
  %v3307 = vadd.f32 %v3239, %v3116
  %v3308 = vadd.f32 %v3243, %v3116
  %v3309 = vadd.f32 %v3247, %v3116
  %v3310 = vadd.f32 %v3251, %v3116
  %v3311 = vadd.f32 %v3255, %v3116
  %v3312 = vadd.f32 %v3259, %v3121
  %v3313 = vadd.f32 %v3263, %v3121
  %v3314 = vadd.f32 %v3267, %v3121
  %v3315 = vadd.f32 %v3271, %v3121
  %v3316 = vadd.f32 %v3275, %v3121
  %v3317 = vadd.f32 %v3279, %v3121
  %v3318 = vadd.f32 %v3283, %v3121
  %v3319 = vadd.f32 %v3287, %v3121
  %v3320 = vmax.f32 %v3304, 0.0
  %v3321 = vmax.f32 %v3305, 0.0
  %v3322 = vmax.f32 %v3306, 0.0
  %v3323 = vmax.f32 %v3307, 0.0
  %v3324 = vmax.f32 %v3308, 0.0
  %v3325 = vmax.f32 %v3309, 0.0
  %v3326 = vmax.f32 %v3310, 0.0
  %v3327 = vmax.f32 %v3311, 0.0
  %v3328 = vmax.f32 %v3312, 0.0
  %v3329 = vmax.f32 %v3313, 0.0
  %v3330 = vmax.f32 %v3314, 0.0
  %v3331 = vmax.f32 %v3315, 0.0
  %v3332 = vmax.f32 %v3316, 0.0
  %v3333 = vmax.f32 %v3317, 0.0
  %v3334 = vmax.f32 %v3318, 0.0
  %v3335 = vmax.f32 %v3319, 0.0
  %v3337 = vsel %vm101, %v3320, 0
  %v3340 = vsel %vm101, %v3321, 0
  %v3343 = vsel %vm101, %v3322, 0
  %v3346 = vsel %vm101, %v3323, 0
  %v3349 = vsel %vm101, %v3324, 0
  %v3352 = vsel %vm101, %v3325, 0
  %v3355 = vsel %vm101, %v3326, 0
  %v3358 = vsel %vm101, %v3327, 0
  %v3361 = vsel %vm101, %v3328, 0
  %v3364 = vsel %vm101, %v3329, 0
  %v3367 = vsel %vm101, %v3330, 0
  %v3370 = vsel %vm101, %v3331, 0
  %v3373 = vsel %vm101, %v3332, 0
  %v3376 = vsel %vm101, %v3333, 0
  %v3379 = vsel %vm101, %v3334, 0
  %v3382 = vsel %vm101, %v3335, 0
  %3384 = vmatprep.subr.mxu0 0.0
  %3385 = vmatpush1.msra.mxu0 %v43
  %3386 = vmatprep.subr.mxu0 0.0
  %3387 = vmatpush1.msra.mxu0 %v49
  %3388 = vmatprep.subr.mxu0 0.0
  %3389 = vmatpush1.msra.mxu0 %v55
  %3390 = vmatprep.subr.mxu0 0.0
  %3391 = vmatpush1.msra.mxu0 %v61
  %3392 = vmatprep.subr.mxu0 0.0
  %3393 = vmatpush1.msra.mxu0 0.0
  %3394 = vmatprep.subr.mxu0 0.0
  %3395 = vmatpush1.msra.mxu0 0.0
  %3396 = vmatprep.subr.mxu0 0.0
  %3397 = vmatpush1.msra.mxu0 0.0
  %3398 = vmatprep.subr.mxu0 0.0
  %3399 = vmatpush1.msra.mxu0 0.0
  %3400 = vmatprep.subr.mxu0 0.0
  %3401 = vmatpush1.msra.mxu0 0.0
  %3402 = vmatprep.subr.mxu0 0.0
  %3403 = vmatpush1.msra.mxu0 0.0
  %3404 = vmatprep.subr.mxu0 0.0
  %3405 = vmatpush1.msra.mxu0 0.0
  %3406 = vmatprep.subr.mxu0 0.0
  %3407 = vmatpush1.msra.mxu0 0.0
  %3408 = vmatprep.subr.mxu0 0.0
  %3409 = vmatpush1.msra.mxu0 0.0
  %3410 = vmatprep.subr.mxu0 0.0
  %3411 = vmatpush1.msra.mxu0 0.0
  %3412 = vmatprep.subr.mxu0 0.0
  %3413 = vmatpush1.msra.mxu0 0.0
  %3414 = vmatprep.subr.mxu0 0.0
  %3415 = vmatpush1.msra.mxu0 0.0
  %3416 = vmatprep.subr.mxu0 0.0
  %3417 = vmatpush1.msra.mxu0 0.0
  %3418 = vmatprep.subr.mxu0 0.0
  %3419 = vmatpush1.msra.mxu0 0.0
  %3420 = vmatprep.subr.mxu0 0.0
  %3421 = vmatpush1.msra.mxu0 0.0
  %3422 = vmatprep.subr.mxu0 0.0
  %3423 = vmatpush1.msra.mxu0 0.0
  %3424 = vmatprep.subr.mxu0 0.0
  %3425 = vmatpush1.msra.mxu0 0.0
  %3426 = vmatprep.subr.mxu0 0.0
  %3427 = vmatpush1.msra.mxu0 0.0
  %3428 = vmatprep.subr.mxu0 0.0
  %3429 = vmatpush1.msra.mxu0 0.0
  %3430 = vmatprep.subr.mxu0 0.0
  %3431 = vmatpush1.msra.mxu0 0.0
  %3432 = vmatprep.subr.mxu0 0.0
  %3433 = vmatpush1.msra.mxu0 0.0
  %3434 = vmatprep.subr.mxu0 0.0
  %3435 = vmatpush1.msra.mxu0 0.0
  %3436 = vmatprep.subr.mxu0 0.0
  %3437 = vmatpush1.msra.mxu0 0.0
  %3438 = vmatprep.subr.mxu0 0.0
  %3439 = vmatpush1.msra.mxu0 0.0
  %3440 = vmatprep.subr.mxu0 0.0
  %3441 = vmatpush1.msra.mxu0 0.0
  %3442 = vmatprep.subr.mxu0 0.0
  %3443 = vmatpush1.msra.mxu0 0.0
  %3444 = vmatprep.subr.mxu0 0.0
  %3445 = vmatpush1.msra.mxu0 0.0
  %3446 = vmatprep.subr.mxu0 0.0
  %3447 = vmatpush1.msra.mxu0 0.0
  %3448 = vmatprep.mubr.f32.mxu0 0.0
  %3449 = vmatmul.mubr.f32.gmra.mrb[0].mxu0 %v3337
  %v3450 = vpop.f32.mrb[0].mxu0
  %v3451 = vadd.f32 %v939, %v3450
  %v3452 = vpop.f32.mrb[0].mxu0
  %3453 = vmatprep.mubr.f32.mxu0 0.0
  %3454 = vmatmul.mubr.f32.gmra.mrb[0].mxu0 %v3340
  %v3455 = vpop.f32.mrb[0].mxu0
  %v3456 = vadd.f32 %v939, %v3455
  %v3457 = vpop.f32.mrb[0].mxu0
  %3458 = vmatprep.mubr.f32.mxu0 0.0
  %3459 = vmatmul.mubr.f32.gmra.mrb[0].mxu0 %v3343
  %v3460 = vpop.f32.mrb[0].mxu0
  %v3461 = vadd.f32 %v939, %v3460
  %v3462 = vpop.f32.mrb[0].mxu0
  %3463 = vmatprep.mubr.f32.mxu0 0.0
  %3464 = vmatmul.mubr.f32.gmra.mrb[0].mxu0 %v3346
  %v3465 = vpop.f32.mrb[0].mxu0
  %v3466 = vadd.f32 %v939, %v3465
  %v3467 = vpop.f32.mrb[0].mxu0
  %3468 = vmatprep.mubr.f32.mxu0 0.0
  %3469 = vmatmul.mubr.f32.gmra.mrb[0].mxu0 %v3349
  %v3470 = vpop.f32.mrb[0].mxu0
  %v3471 = vadd.f32 %v939, %v3470
  %v3472 = vpop.f32.mrb[0].mxu0
  %3473 = vmatprep.mubr.f32.mxu0 0.0
  %3474 = vmatmul.mubr.f32.gmra.mrb[0].mxu0 %v3352
  %v3475 = vpop.f32.mrb[0].mxu0
  %v3476 = vadd.f32 %v939, %v3475
  %v3477 = vpop.f32.mrb[0].mxu0
  %3478 = vmatprep.mubr.f32.mxu0 0.0
  %3479 = vmatmul.mubr.f32.gmra.mrb[0].mxu0 %v3355
  %v3480 = vpop.f32.mrb[0].mxu0
  %v3481 = vadd.f32 %v939, %v3480
  %v3482 = vpop.f32.mrb[0].mxu0
  %3483 = vmatprep.mubr.f32.mxu0 0.0
  %3484 = vmatmul.mubr.f32.gmra.mrb[0].mxu0 %v3358
  %v3485 = vpop.f32.mrb[0].mxu0
  %v3486 = vadd.f32 %v939, %v3485
  %v3487 = vpop.f32.mrb[0].mxu0
  %3488 = vmatprep.mubr.f32.mxu0 0.0
  %3489 = vmatmul.mubr.f32.gmra.mrb[0].mxu0 %v3361
  %v3490 = vpop.f32.mrb[0].mxu0
  %v3491 = vadd.f32 %v939, %v3490
  %v3492 = vpop.f32.mrb[0].mxu0
  %3493 = vmatprep.mubr.f32.mxu0 0.0
  %3494 = vmatmul.mubr.f32.gmra.mrb[0].mxu0 %v3364
  %v3495 = vpop.f32.mrb[0].mxu0
  %v3496 = vadd.f32 %v939, %v3495
  %v3497 = vpop.f32.mrb[0].mxu0
  %3498 = vmatprep.mubr.f32.mxu0 0.0
  %3499 = vmatmul.mubr.f32.gmra.mrb[0].mxu0 %v3367
  %v3500 = vpop.f32.mrb[0].mxu0
  %v3501 = vadd.f32 %v939, %v3500
  %v3502 = vpop.f32.mrb[0].mxu0
  %3503 = vmatprep.mubr.f32.mxu0 0.0
  %3504 = vmatmul.mubr.f32.gmra.mrb[0].mxu0 %v3370
  %v3505 = vpop.f32.mrb[0].mxu0
  %v3506 = vadd.f32 %v939, %v3505
  %v3507 = vpop.f32.mrb[0].mxu0
  %3508 = vmatprep.mubr.f32.mxu0 0.0
  %3509 = vmatmul.mubr.f32.gmra.mrb[0].mxu0 %v3373
  %v3510 = vpop.f32.mrb[0].mxu0
  %v3511 = vadd.f32 %v939, %v3510
  %v3512 = vpop.f32.mrb[0].mxu0
  %3513 = vmatprep.mubr.f32.mxu0 0.0
  %3514 = vmatmul.mubr.f32.gmra.mrb[0].mxu0 %v3376
  %v3515 = vpop.f32.mrb[0].mxu0
  %v3516 = vadd.f32 %v939, %v3515
  %v3517 = vpop.f32.mrb[0].mxu0
  %3518 = vmatprep.mubr.f32.mxu0 0.0
  %3519 = vmatmul.mubr.f32.gmra.mrb[0].mxu0 %v3379
  %v3520 = vpop.f32.mrb[0].mxu0
  %v3521 = vadd.f32 %v939, %v3520
  %v3522 = vpop.f32.mrb[0].mxu0
  %3523 = vmatprep.mubr.f32.mxu0 0.0
  %3524 = vmatmul.mubr.f32.gmra.mrb[0].mxu0 %v3382
  %v3525 = vpop.f32.mrb[0].mxu0
  %v3526 = vadd.f32 %v939, %v3525
  %v3527 = vpop.f32.mrb[0].mxu0
  %3528 = vdwg.mxu0
  %3529 = vst [vmem:[%s6] sm:$0xff] %v3451
  %3530 = vst [vmem:[%s6 + $0x8] sm:$0xff] %v3456
  %3531 = vst [vmem:[%s6 + $0x10] sm:$0xff] %v3461
  %3532 = vst [vmem:[%s6 + $0x18] sm:$0xff] %v3466
  %3533 = vst [vmem:[%s6 + $0x20] sm:$0xff] %v3471
  %3534 = vst [vmem:[%s6 + $0x28] sm:$0xff] %v3476
  %3535 = vst [vmem:[%s6 + $0x30] sm:$0xff] %v3481
  %3536 = vst [vmem:[%s6 + $0x38] sm:$0xff] %v3486
  %3537 = vst [vmem:[%s6 + $0x40] sm:$0xff] %v3491
  %3538 = vst [vmem:[%s6 + $0x48] sm:$0xff] %v3496
  %3539 = vst [vmem:[%s6 + $0x50] sm:$0xff] %v3501
  %3540 = vst [vmem:[%s6 + $0x58] sm:$0xff] %v3506
  %3541 = vst [vmem:[%s6 + $0x60] sm:$0xff] %v3511
  %3542 = vst [vmem:[%s6 + $0x68] sm:$0xff] %v3516
  %3543 = vst [vmem:[%s6 + $0x70] sm:$0xff] %v3521
  %3544 = vst [vmem:[%s6 + $0x78] sm:$0xff] %v3526
  // Predicated region
  $region22: #{forward.1} parent=0 // pred_check
    _
  $region23: #{forward.1} parent=0 // pred_check_branch
    %3546 = sbr.rel (0) target = $region25
  $region24: #{forward.1} parent=0 // pred_region
    _
  $region25: #{forward.1} parent=0 // pred_fallthru
    _
  // Predicated region
  $region26: #{forward.1} parent=0 // pred_check
    _
  $region27: #{forward.1} parent=0 // pred_check_branch
    %3548 = sbr.rel (0) target = $region29
  $region28: #{forward.1} parent=0 // pred_region
    _
  $region29: #{forward.1} parent=0 // pred_fallthru
    _
  // Predicated region
  $region30: #{forward.1} parent=0 // pred_check
    _
  $region31: #{forward.1} parent=0 // pred_check_branch
    %3550 = sbr.rel (0) target = $region33
  $region32: #{forward.1} parent=0 // pred_region
    _
  $region33: #{forward.1} parent=0 // pred_fallthru
    _
  // Predicated region
  $region34: #{forward.1} parent=0 // pred_check
    _
  $region35: #{forward.1} parent=0 // pred_check_branch
    %3552 = sbr.rel (0) target = $region37
  $region36: #{forward.1} parent=0 // pred_region
    _
  $region37: #{forward.1} parent=0 // pred_fallthru
    _

</llo_original>
